<compile_context>
chip_gen: v7x
topology: tpu7x:2x2x1
jax: 0.10.0
libtpu: 0.0.40
codegen_flags: <defaults>
</compile_context>

<pallas_src>
import functools

import jax
import jax.numpy as jnp
from jax.experimental import pallas as pl
from jax.experimental.pallas import tpu as pltpu

X_DIM = 784        # fixed by x.view(-1, 784) in the reference module
LAT_PAD = 128      # lane-dense width of the packed [mu | log_var | 0-pad] output


def vae_kernel(
    x_ref, eps_ref,
    w1_ref, b1_ref, w2_ref, b2_ref,
    w3_ref, b3_ref,                      # fused fc31|fc32, padded to LAT_PAD cols
    w4_ref, b4_ref, w5_ref, b5_ref, w6_ref, b6_ref,
    recon_ref, mulv_ref,
):
    f32 = jnp.float32
    bf16 = jnp.bfloat16
    z_dim = eps_ref.shape[-1]

    # ---- encoder (bf16 matmuls, f32 accumulation, f32 elementwise) ----
    x = x_ref[...].astype(bf16)
    h = jnp.dot(x, w1_ref[...], preferred_element_type=f32) + b1_ref[...]
    h = jnp.maximum(h, 0.0)
    h = jnp.dot(h.astype(bf16), w2_ref[...], preferred_element_type=f32) + b2_ref[...]
    h = jnp.maximum(h, 0.0)

    # Fused mu/log_var projection, output already padded to 128 lanes.
    y = jnp.dot(h.astype(bf16), w3_ref[...], preferred_element_type=f32) + b3_ref[...]
    mulv_ref[...] = y.astype(mulv_ref.dtype)          # lane-dense full-width store

    mu = y[:, :z_dim]
    log_var = y[:, z_dim:2 * z_dim]

    # ---- sampling (reparameterization): z = eps * exp(0.5 * log_var) + mu ----
    std = jnp.exp(0.5 * log_var)
    z = eps_ref[...] * std + mu

    # ---- decoder ----
    d = jnp.dot(z.astype(bf16), w4_ref[...], preferred_element_type=f32) + b4_ref[...]
    d = jnp.maximum(d, 0.0)
    d = jnp.dot(d.astype(bf16), w5_ref[...], preferred_element_type=f32) + b5_ref[...]
    d = jnp.maximum(d, 0.0)
    recon = jnp.tanh(
        jnp.dot(d.astype(bf16), w6_ref[...], preferred_element_type=f32) + b6_ref[...]
    )
    recon_ref[...] = recon.astype(recon_ref.dtype)


@functools.partial(jax.jit, static_argnames=("tb",))
def vae_forward(x, eps, params, *, tb=128):
    """x: (B, 1, 28, 28) or (B, 784) f32.  eps: (B, z_dim) f32.

    Returns (reconstruction (B, 784), mu (B, z_dim), log_var (B, z_dim)).
    """
    bf16 = jnp.bfloat16
    x2 = x.reshape(-1, X_DIM).astype(jnp.float32)      # matches x.view(-1, 784)
    B = x2.shape[0]
    z_dim = eps.shape[-1]

    # Pad batch to a multiple of the batch tile so every grid step is full.
    bp = pl.cdiv(B, tb) * tb
    if bp != B:
        x2 = jnp.pad(x2, ((0, bp - B), (0, 0)))
        eps = jnp.pad(eps, ((0, bp - B), (0, 0)))

    # --- weight prep: bf16 weights, fused + lane-padded latent projection ---
    w3 = jnp.concatenate([params["w31"], params["w32"]], axis=1)   # (h2, 2z)
    b3 = jnp.concatenate([params["b31"], params["b32"]], axis=1)   # (1, 2z)
    w3p = jnp.pad(w3, ((0, 0), (0, LAT_PAD - 2 * z_dim))).astype(bf16)
    b3p = jnp.pad(b3, ((0, 0), (0, LAT_PAD - 2 * z_dim)))          # f32 bias

    w1 = params["w1"].astype(bf16)
    w2 = params["w2"].astype(bf16)
    w4 = params["w4"].astype(bf16)
    w5 = params["w5"].astype(bf16)
    w6 = params["w6"].astype(bf16)
    b1, b2, b4, b5, b6 = (params[k] for k in ("b1", "b2", "b4", "b5", "b6"))

    args = (x2, eps, w1, b1, w2, b2, w3p, b3p, w4, b4, w5, b5, w6, b6)

    def batch_spec(shape):
        return pl.BlockSpec(shape, lambda i: (i, 0))

    def resident_spec(arr):
        # Full-extent block, constant index_map -> stays resident in VMEM.
        return pl.BlockSpec(arr.shape, lambda i: (0, 0))

    in_specs = [
        batch_spec((tb, X_DIM)),        # x
        batch_spec((tb, z_dim)),        # eps
        resident_spec(w1), resident_spec(b1),
        resident_spec(w2), resident_spec(b2),
        resident_spec(w3p), resident_spec(b3p),
        resident_spec(w4), resident_spec(b4),
        resident_spec(w5), resident_spec(b5),
        resident_spec(w6), resident_spec(b6),
    ]
    out_specs = (
        batch_spec((tb, X_DIM)),        # reconstruction
        batch_spec((tb, LAT_PAD)),      # packed [mu | log_var | pad]
    )
    out_shapes = (
        jax.ShapeDtypeStruct((bp, X_DIM), jnp.float32),
        jax.ShapeDtypeStruct((bp, LAT_PAD), jnp.float32),
    )

    recon_p, mulv_p = pl.pallas_call(
        vae_kernel,
        out_shape=out_shapes,
        grid=(bp // tb,),
        in_specs=in_specs,
        out_specs=out_specs,
        compiler_params=pltpu.CompilerParams(
            dimension_semantics=("parallel",),     # megacore sharding on v7x
            vmem_limit_bytes=32 * 1024 * 1024,     # safe on v5e/v6e/v7x, ample headroom
        ),
    )(*args)

    recon = recon_p[:B]
    mu = mulv_p[:B, :z_dim]
    log_var = mulv_p[:B, z_dim:2 * z_dim]
    return recon, mu, log_var


def init_params(key, x_dim, h_dim1, h_dim2, z_dim):
    """Deterministic synthetic parameters (PyTorch Linear shapes, transposed)."""
    def linear(k, fan_in, fan_out):
        kw, kb = jax.random.split(k)
        bound = 1.0 / jnp.sqrt(fan_in)
        w = jax.random.uniform(kw, (fan_in, fan_out), jnp.float32, -bound, bound)
        b = jax.random.uniform(kb, (1, fan_out), jnp.float32, -bound, bound)
        return w, b

    keys = jax.random.split(key, 7)
    p = {}
    p["w1"], p["b1"] = linear(keys[0], x_dim, h_dim1)
    p["w2"], p["b2"] = linear(keys[1], h_dim1, h_dim2)
    p["w31"], p["b31"] = linear(keys[2], h_dim2, z_dim)
    p["w32"], p["b32"] = linear(keys[3], h_dim2, z_dim)
    p["w4"], p["b4"] = linear(keys[4], z_dim, h_dim2)
    p["w5"], p["b5"] = linear(keys[5], h_dim2, h_dim1)
    p["w6"], p["b6"] = linear(keys[6], h_dim1, x_dim)
    return p


def vae_reference(x, eps, p):
    """Pure-JAX reference with the same bf16-matmul / f32-elementwise math."""
    bf16 = jnp.bfloat16

    def lin(a, w, b):
        return jnp.dot(a.astype(bf16), w.astype(bf16),
                       preferred_element_type=jnp.float32) + b

    x2 = x.reshape(-1, X_DIM)
    h = jnp.maximum(lin(x2, p["w1"], p["b1"]), 0.0)
    h = jnp.maximum(lin(h, p["w2"], p["b2"]), 0.0)
    mu = lin(h, p["w31"], p["b31"])
    log_var = lin(h, p["w32"], p["b32"])
    z = eps * jnp.exp(0.5 * log_var) + mu
    d = jnp.maximum(lin(z, p["w4"], p["b4"]), 0.0)
    d = jnp.maximum(lin(d, p["w5"], p["b5"]), 0.0)
    recon = jnp.tanh(lin(d, p["w6"], p["b6"]))
    return recon, mu, log_var


if __name__ == "__main__":
    # x.view(-1, 784) fixes x_dim = 784 (MNIST-style).
    x_dim, h_dim1, h_dim2, z_dim = 784, 256, 128, 32
    batch = 256          # >= one full MXU tile of rows; grid of 2 batch tiles

    key = jax.random.PRNGKey(0)
    k_params, k_x, k_eps = jax.random.split(key, 3)

    params = init_params(k_params, x_dim, h_dim1, h_dim2, z_dim)
    x = jax.random.normal(k_x, (batch, 1, 28, 28), jnp.float32)
    # torch.randn_like(std) -> standard normal noise, generated here outside
    # the kernel and passed in so the kernel is deterministic.
    eps = jax.random.normal(k_eps, (batch, z_dim), jnp.float32)

    recon, mu, log_var = jax.block_until_ready(vae_forward(x, eps, params))

    r_ref, mu_ref, lv_ref = vae_reference(x, eps, params)
    assert recon.shape == (batch, 784)
    assert mu.shape == (batch, z_dim) and log_var.shape == (batch, z_dim)
    assert jnp.allclose(recon, r_ref, atol=1e-2, rtol=1e-2)
    assert jnp.allclose(mu, mu_ref, atol=1e-2, rtol=1e-2)
    assert jnp.allclose(log_var, lv_ref, atol=1e-2, rtol=1e-2)

    print("KERNEL_OK")
</pallas_src>

<mosaic_0001>
module attributes {stable_mosaic.version = 11 : i64} {
  func.func @vae_kernel(%arg0: i32, %arg1: memref<128x784xf32, #tpu.memory_space<vmem>>, %arg2: memref<128x32xf32, #tpu.memory_space<vmem>>, %arg3: memref<784x256xbf16, #tpu.memory_space<vmem>>, %arg4: memref<1x256xf32, #tpu.memory_space<vmem>>, %arg5: memref<256x128xbf16, #tpu.memory_space<vmem>>, %arg6: memref<1x128xf32, #tpu.memory_space<vmem>>, %arg7: memref<128x128xbf16, #tpu.memory_space<vmem>>, %arg8: memref<1x128xf32, #tpu.memory_space<vmem>>, %arg9: memref<32x128xbf16, #tpu.memory_space<vmem>>, %arg10: memref<1x128xf32, #tpu.memory_space<vmem>>, %arg11: memref<128x256xbf16, #tpu.memory_space<vmem>>, %arg12: memref<1x256xf32, #tpu.memory_space<vmem>>, %arg13: memref<256x784xbf16, #tpu.memory_space<vmem>>, %arg14: memref<1x784xf32, #tpu.memory_space<vmem>>, %arg15: memref<128x784xf32, #tpu.memory_space<vmem>>, %arg16: memref<128x128xf32, #tpu.memory_space<vmem>>) attributes {dimension_semantics = [#tpu.dimension_semantics<parallel>], iteration_bounds = array<i64: 2>, scalar_prefetch = 0 : i64, scratch_operands = 0 : i64, tpu.core_type = #tpu.core_type<tc>, window_params = [{transform_indices = @transform_0, window_bounds = array<i64: 128, 784>}, {transform_indices = @transform_1, window_bounds = array<i64: 128, 32>}, {pipeline_mode = #tpu.pipeline_mode<synchronous>, transform_indices = @transform_2, window_bounds = array<i64: 784, 256>}, {pipeline_mode = #tpu.pipeline_mode<synchronous>, transform_indices = @transform_3, window_bounds = array<i64: 1, 256>}, {pipeline_mode = #tpu.pipeline_mode<synchronous>, transform_indices = @transform_4, window_bounds = array<i64: 256, 128>}, {pipeline_mode = #tpu.pipeline_mode<synchronous>, transform_indices = @transform_5, window_bounds = array<i64: 1, 128>}, {pipeline_mode = #tpu.pipeline_mode<synchronous>, transform_indices = @transform_6, window_bounds = array<i64: 128, 128>}, {pipeline_mode = #tpu.pipeline_mode<synchronous>, transform_indices = @transform_7, window_bounds = array<i64: 1, 128>}, {pipeline_mode = #tpu.pipeline_mode<synchronous>, transform_indices = @transform_8, window_bounds = array<i64: 32, 128>}, {pipeline_mode = #tpu.pipeline_mode<synchronous>, transform_indices = @transform_9, window_bounds = array<i64: 1, 128>}, {pipeline_mode = #tpu.pipeline_mode<synchronous>, transform_indices = @transform_10, window_bounds = array<i64: 128, 256>}, {pipeline_mode = #tpu.pipeline_mode<synchronous>, transform_indices = @transform_11, window_bounds = array<i64: 1, 256>}, {pipeline_mode = #tpu.pipeline_mode<synchronous>, transform_indices = @transform_12, window_bounds = array<i64: 256, 784>}, {pipeline_mode = #tpu.pipeline_mode<synchronous>, transform_indices = @transform_13, window_bounds = array<i64: 1, 784>}, {transform_indices = @transform_14, window_bounds = array<i64: 128, 784>}, {transform_indices = @transform_15, window_bounds = array<i64: 128, 128>}]} {
    %c0 = arith.constant 0 : index
    %c0_0 = arith.constant 0 : index
    %0 = vector.load %arg1[%c0, %c0_0] : memref<128x784xf32, #tpu.memory_space<vmem>>, vector<128x784xf32>
    %1 = arith.truncf %0 : vector<128x784xf32> to vector<128x784xbf16>
    %c0_1 = arith.constant 0 : index
    %c0_2 = arith.constant 0 : index
    %2 = vector.load %arg3[%c0_1, %c0_2] : memref<784x256xbf16, #tpu.memory_space<vmem>>, vector<784x256xbf16>
    %cst = arith.constant dense<0.000000e+00> : vector<128x256xf32>
    %3 = tpu.matmul %1, %2, %cst {dimension_numbers = #tpu.dot_dimension_numbers<[1], [0], [0], [1], [0, 0, 1, 1], [], []>} : vector<128x784xbf16>, vector<784x256xbf16>, vector<128x256xf32> -> vector<128x256xf32>
    %c0_3 = arith.constant 0 : index
    %c0_4 = arith.constant 0 : index
    %4 = vector.load %arg4[%c0_3, %c0_4] : memref<1x256xf32, #tpu.memory_space<vmem>>, vector<1x256xf32>
    %5 = vector.broadcast %4 : vector<1x256xf32> to vector<128x256xf32>
    %6 = arith.addf %3, %5 : vector<128x256xf32>
    %cst_5 = arith.constant 0.000000e+00 : f32
    %7 = vector.broadcast %cst_5 : f32 to vector<128x256xf32>
    %8 = arith.maximumf %6, %7 : vector<128x256xf32>
    %9 = arith.truncf %8 : vector<128x256xf32> to vector<128x256xbf16>
    %c0_6 = arith.constant 0 : index
    %c0_7 = arith.constant 0 : index
    %10 = vector.load %arg5[%c0_6, %c0_7] : memref<256x128xbf16, #tpu.memory_space<vmem>>, vector<256x128xbf16>
    %cst_8 = arith.constant dense<0.000000e+00> : vector<128x128xf32>
    %11 = tpu.matmul %9, %10, %cst_8 {dimension_numbers = #tpu.dot_dimension_numbers<[1], [0], [0], [1], [0, 0, 1, 1], [], []>} : vector<128x256xbf16>, vector<256x128xbf16>, vector<128x128xf32> -> vector<128x128xf32>
    %c0_9 = arith.constant 0 : index
    %c0_10 = arith.constant 0 : index
    %12 = vector.load %arg6[%c0_9, %c0_10] : memref<1x128xf32, #tpu.memory_space<vmem>>, vector<1x128xf32>
    %13 = vector.broadcast %12 : vector<1x128xf32> to vector<128x128xf32>
    %14 = arith.addf %11, %13 : vector<128x128xf32>
    %cst_11 = arith.constant 0.000000e+00 : f32
    %15 = vector.broadcast %cst_11 : f32 to vector<128x128xf32>
    %16 = arith.maximumf %14, %15 : vector<128x128xf32>
    %17 = arith.truncf %16 : vector<128x128xf32> to vector<128x128xbf16>
    %c0_12 = arith.constant 0 : index
    %c0_13 = arith.constant 0 : index
    %18 = vector.load %arg7[%c0_12, %c0_13] : memref<128x128xbf16, #tpu.memory_space<vmem>>, vector<128x128xbf16>
    %cst_14 = arith.constant dense<0.000000e+00> : vector<128x128xf32>
    %19 = tpu.matmul %17, %18, %cst_14 {dimension_numbers = #tpu.dot_dimension_numbers<[1], [0], [0], [1], [0, 0, 1, 1], [], []>} : vector<128x128xbf16>, vector<128x128xbf16>, vector<128x128xf32> -> vector<128x128xf32>
    %c0_15 = arith.constant 0 : index
    %c0_16 = arith.constant 0 : index
    %20 = vector.load %arg8[%c0_15, %c0_16] : memref<1x128xf32, #tpu.memory_space<vmem>>, vector<1x128xf32>
    %21 = vector.broadcast %20 : vector<1x128xf32> to vector<128x128xf32>
    %22 = arith.addf %19, %21 : vector<128x128xf32>
    %c0_17 = arith.constant 0 : index
    %c0_18 = arith.constant 0 : index
    %23 = vector.load %arg16[%c0_17, %c0_18] : memref<128x128xf32, #tpu.memory_space<vmem>>, vector<128x128xf32>
    tpu.vector_store %arg16[%c0_17, %c0_18], %22 {strides = array<i32>} : memref<128x128xf32, #tpu.memory_space<vmem>>, vector<128x128xf32>,
    %24 = vector.extract_strided_slice %22 {offsets = [0, 0], sizes = [128, 32], strides = [1, 1]} : vector<128x128xf32> to vector<128x32xf32>
    %25 = vector.extract_strided_slice %22 {offsets = [0, 32], sizes = [128, 32], strides = [1, 1]} : vector<128x128xf32> to vector<128x32xf32>
    %cst_19 = arith.constant 5.000000e-01 : f32
    %26 = vector.broadcast %cst_19 : f32 to vector<128x32xf32>
    %27 = arith.mulf %26, %25 : vector<128x32xf32>
    %28 = math.exp %27 : vector<128x32xf32>
    %c0_20 = arith.constant 0 : index
    %c0_21 = arith.constant 0 : index
    %29 = vector.load %arg2[%c0_20, %c0_21] : memref<128x32xf32, #tpu.memory_space<vmem>>, vector<128x32xf32>
    %30 = arith.mulf %29, %28 : vector<128x32xf32>
    %31 = arith.addf %30, %24 : vector<128x32xf32>
    %32 = arith.truncf %31 : vector<128x32xf32> to vector<128x32xbf16>
    %c0_22 = arith.constant 0 : index
    %c0_23 = arith.constant 0 : index
    %33 = vector.load %arg9[%c0_22, %c0_23] : memref<32x128xbf16, #tpu.memory_space<vmem>>, vector<32x128xbf16>
    %cst_24 = arith.constant dense<0.000000e+00> : vector<128x128xf32>
    %34 = tpu.matmul %32, %33, %cst_24 {dimension_numbers = #tpu.dot_dimension_numbers<[1], [0], [0], [1], [0, 0, 1, 1], [], []>} : vector<128x32xbf16>, vector<32x128xbf16>, vector<128x128xf32> -> vector<128x128xf32>
    %c0_25 = arith.constant 0 : index
    %c0_26 = arith.constant 0 : index
    %35 = vector.load %arg10[%c0_25, %c0_26] : memref<1x128xf32, #tpu.memory_space<vmem>>, vector<1x128xf32>
    %36 = vector.broadcast %35 : vector<1x128xf32> to vector<128x128xf32>
    %37 = arith.addf %34, %36 : vector<128x128xf32>
    %cst_27 = arith.constant 0.000000e+00 : f32
    %38 = vector.broadcast %cst_27 : f32 to vector<128x128xf32>
    %39 = arith.maximumf %37, %38 : vector<128x128xf32>
    %40 = arith.truncf %39 : vector<128x128xf32> to vector<128x128xbf16>
    %c0_28 = arith.constant 0 : index
    %c0_29 = arith.constant 0 : index
    %41 = vector.load %arg11[%c0_28, %c0_29] : memref<128x256xbf16, #tpu.memory_space<vmem>>, vector<128x256xbf16>
    %cst_30 = arith.constant dense<0.000000e+00> : vector<128x256xf32>
    %42 = tpu.matmul %40, %41, %cst_30 {dimension_numbers = #tpu.dot_dimension_numbers<[1], [0], [0], [1], [0, 0, 1, 1], [], []>} : vector<128x128xbf16>, vector<128x256xbf16>, vector<128x256xf32> -> vector<128x256xf32>
    %c0_31 = arith.constant 0 : index
    %c0_32 = arith.constant 0 : index
    %43 = vector.load %arg12[%c0_31, %c0_32] : memref<1x256xf32, #tpu.memory_space<vmem>>, vector<1x256xf32>
    %44 = vector.broadcast %43 : vector<1x256xf32> to vector<128x256xf32>
    %45 = arith.addf %42, %44 : vector<128x256xf32>
    %cst_33 = arith.constant 0.000000e+00 : f32
    %46 = vector.broadcast %cst_33 : f32 to vector<128x256xf32>
    %47 = arith.maximumf %45, %46 : vector<128x256xf32>
    %48 = arith.truncf %47 : vector<128x256xf32> to vector<128x256xbf16>
    %c0_34 = arith.constant 0 : index
    %c0_35 = arith.constant 0 : index
    %49 = vector.load %arg13[%c0_34, %c0_35] : memref<256x784xbf16, #tpu.memory_space<vmem>>, vector<256x784xbf16>
    %cst_36 = arith.constant dense<0.000000e+00> : vector<128x784xf32>
    %50 = tpu.matmul %48, %49, %cst_36 {dimension_numbers = #tpu.dot_dimension_numbers<[1], [0], [0], [1], [0, 0, 1, 1], [], []>} : vector<128x256xbf16>, vector<256x784xbf16>, vector<128x784xf32> -> vector<128x784xf32>
    %c0_37 = arith.constant 0 : index
    %c0_38 = arith.constant 0 : index
    %51 = vector.load %arg14[%c0_37, %c0_38] : memref<1x784xf32, #tpu.memory_space<vmem>>, vector<1x784xf32>
    %52 = vector.broadcast %51 : vector<1x784xf32> to vector<128x784xf32>
    %53 = arith.addf %50, %52 : vector<128x784xf32>
    %54 = math.tanh %53 : vector<128x784xf32>
    %c0_39 = arith.constant 0 : index
    %c0_40 = arith.constant 0 : index
    %55 = vector.load %arg15[%c0_39, %c0_40] : memref<128x784xf32, #tpu.memory_space<vmem>>, vector<128x784xf32>
    tpu.vector_store %arg15[%c0_39, %c0_40], %54 {strides = array<i32>} : memref<128x784xf32, #tpu.memory_space<vmem>>, vector<128x784xf32>,
    return
  }
  func.func @transform_0(%arg0: i32) -> (i32, i32) {
    %c0_i32 = arith.constant 0 : i32
    %c0_i32_0 = arith.constant 0 : i32
    return %arg0, %c0_i32 : i32, i32
  }
  func.func @transform_1(%arg0: i32) -> (i32, i32) {
    %c0_i32 = arith.constant 0 : i32
    %c0_i32_0 = arith.constant 0 : i32
    return %arg0, %c0_i32 : i32, i32
  }
  func.func @transform_2(%arg0: i32) -> (i32, i32) {
    %c0_i32 = arith.constant 0 : i32
    %c0_i32_0 = arith.constant 0 : i32
    %c0_i32_1 = arith.constant 0 : i32
    return %c0_i32, %c0_i32_0 : i32, i32
  }
  func.func @transform_3(%arg0: i32) -> (i32, i32) {
    %c0_i32 = arith.constant 0 : i32
    %c0_i32_0 = arith.constant 0 : i32
    %c0_i32_1 = arith.constant 0 : i32
    return %c0_i32, %c0_i32_0 : i32, i32
  }
  func.func @transform_4(%arg0: i32) -> (i32, i32) {
    %c0_i32 = arith.constant 0 : i32
    %c0_i32_0 = arith.constant 0 : i32
    %c0_i32_1 = arith.constant 0 : i32
    return %c0_i32, %c0_i32_0 : i32, i32
  }
  func.func @transform_5(%arg0: i32) -> (i32, i32) {
    %c0_i32 = arith.constant 0 : i32
    %c0_i32_0 = arith.constant 0 : i32
    %c0_i32_1 = arith.constant 0 : i32
    return %c0_i32, %c0_i32_0 : i32, i32
  }
  func.func @transform_6(%arg0: i32) -> (i32, i32) {
    %c0_i32 = arith.constant 0 : i32
    %c0_i32_0 = arith.constant 0 : i32
    %c0_i32_1 = arith.constant 0 : i32
    return %c0_i32, %c0_i32_0 : i32, i32
  }
  func.func @transform_7(%arg0: i32) -> (i32, i32) {
    %c0_i32 = arith.constant 0 : i32
    %c0_i32_0 = arith.constant 0 : i32
    %c0_i32_1 = arith.constant 0 : i32
    return %c0_i32, %c0_i32_0 : i32, i32
  }
  func.func @transform_8(%arg0: i32) -> (i32, i32) {
    %c0_i32 = arith.constant 0 : i32
    %c0_i32_0 = arith.constant 0 : i32
    %c0_i32_1 = arith.constant 0 : i32
    return %c0_i32, %c0_i32_0 : i32, i32
  }
  func.func @transform_9(%arg0: i32) -> (i32, i32) {
    %c0_i32 = arith.constant 0 : i32
    %c0_i32_0 = arith.constant 0 : i32
    %c0_i32_1 = arith.constant 0 : i32
    return %c0_i32, %c0_i32_0 : i32, i32
  }
  func.func @transform_10(%arg0: i32) -> (i32, i32) {
    %c0_i32 = arith.constant 0 : i32
    %c0_i32_0 = arith.constant 0 : i32
    %c0_i32_1 = arith.constant 0 : i32
    return %c0_i32, %c0_i32_0 : i32, i32
  }
  func.func @transform_11(%arg0: i32) -> (i32, i32) {
    %c0_i32 = arith.constant 0 : i32
    %c0_i32_0 = arith.constant 0 : i32
    %c0_i32_1 = arith.constant 0 : i32
    return %c0_i32, %c0_i32_0 : i32, i32
  }
  func.func @transform_12(%arg0: i32) -> (i32, i32) {
    %c0_i32 = arith.constant 0 : i32
    %c0_i32_0 = arith.constant 0 : i32
    %c0_i32_1 = arith.constant 0 : i32
    return %c0_i32, %c0_i32_0 : i32, i32
  }
  func.func @transform_13(%arg0: i32) -> (i32, i32) {
    %c0_i32 = arith.constant 0 : i32
    %c0_i32_0 = arith.constant 0 : i32
    %c0_i32_1 = arith.constant 0 : i32
    return %c0_i32, %c0_i32_0 : i32, i32
  }
  func.func @transform_14(%arg0: i32) -> (i32, i32) {
    %c0_i32 = arith.constant 0 : i32
    %c0_i32_0 = arith.constant 0 : i32
    return %arg0, %c0_i32 : i32, i32
  }
  func.func @transform_15(%arg0: i32) -> (i32, i32) {
    %c0_i32 = arith.constant 0 : i32
    %c0_i32_0 = arith.constant 0 : i32
    return %arg0, %c0_i32 : i32, i32
  }
}

</mosaic_0001>

<llo_original>
// kernel: vae_forward.1
$region0: #{vae_forward.1}
  #allocation0 [shape = 'u32[]', space=smem, size = 0x4, offset = 0x4, fixed_abs, tag = 'smem constant byte address 0x4 - core index']
  #allocation1 [shape = 'u32[144,128]{1,0:T(1,128)}', space=vmem, size = 0x12000, scoped, tag = 'internal scratch']
  %s0 = inlined_call_operand.vmem [shape: f32[256,784], index: 0, kind: input, shape index: {}]
  %s1 = inlined_call_operand.vmem [shape: f32[256,32], index: 1, kind: input, shape index: {}]
  %s2 = inlined_call_operand.vmem [shape: bf16[784,256], index: 2, kind: input, shape index: {}]
  %s3 = inlined_call_operand.vmem [shape: f32[1,256], index: 3, kind: input, shape index: {}]
  %s4 = inlined_call_operand.vmem [shape: bf16[256,128], index: 4, kind: input, shape index: {}]
  %s5 = inlined_call_operand.vmem [shape: f32[1,128], index: 5, kind: input, shape index: {}]
  %s6 = inlined_call_operand.vmem [shape: bf16[128,128], index: 6, kind: input, shape index: {}]
  %s7 = inlined_call_operand.vmem [shape: f32[1,128], index: 7, kind: input, shape index: {}]
  %s8 = inlined_call_operand.vmem [shape: bf16[32,128], index: 8, kind: input, shape index: {}]
  %s9 = inlined_call_operand.vmem [shape: f32[1,128], index: 9, kind: input, shape index: {}]
  %s10 = inlined_call_operand.vmem [shape: bf16[128,256], index: 10, kind: input, shape index: {}]
  %s11 = inlined_call_operand.vmem [shape: f32[1,256], index: 11, kind: input, shape index: {}]
  %s12 = inlined_call_operand.vmem [shape: bf16[256,784], index: 12, kind: input, shape index: {}]
  %s13 = inlined_call_operand.vmem [shape: f32[1,784], index: 13, kind: input, shape index: {}]
  %s14 = inlined_call_operand.vmem [shape: f32[256,784], index: 14, kind: output, shape index: {0}]
  %s15 = inlined_call_operand.vmem [shape: f32[256,128], index: 15, kind: output, shape index: {1}]
  %16 = xla_tuple %s14, %s15
  %s17 = sld [smem:[#allocation0]]
  $region97: #{vae_forward.1} parent=0
    _
  %s19 = ssub.s32 1, %s17
  %s20 = scalar_select 0, %s19, %s17
  loop: start=0, step=1, limit=4
  $region2: #{vae_forward.1} parent=0 // loop_pre_header
    _
  $region3: #{vae_forward.1} parent=0 // loop_header
    %s22 = sphi 0, %s26
    %p23 = scmp.ge.s32.totalorder %s22, 4
    %s32 = sphi 0, %s34
    %s35 = sphi 0, %s32
    %s36 = sphi 0, %s35
    %s52 = sphi 0, %s36
    %s58 = sphi 0, %s60
    %s61 = sphi 0, %s58
    %s62 = sphi 0, %s61
    %s78 = sphi 0, %s62
    %s82 = sphi 0, %s82
    %s84 = sphi 0, %s82
    %s85 = sphi 0, %s84
    %s99 = sphi 0, %s85
    %s103 = sphi 0, %s103
    %s105 = sphi 0, %s103
    %s106 = sphi 0, %s105
    %s120 = sphi 0, %s106
    %s124 = sphi 0, %s124
    %s126 = sphi 0, %s124
    %s127 = sphi 0, %s126
    %s141 = sphi 0, %s127
    %s145 = sphi 0, %s145
    %s147 = sphi 0, %s145
    %s148 = sphi 0, %s147
    %s162 = sphi 0, %s148
    %s166 = sphi 0, %s166
    %s168 = sphi 0, %s166
    %s169 = sphi 0, %s168
    %s183 = sphi 0, %s169
    %s187 = sphi 0, %s187
    %s189 = sphi 0, %s187
    %s190 = sphi 0, %s189
    %s204 = sphi 0, %s190
    %s208 = sphi 0, %s208
    %s210 = sphi 0, %s208
    %s211 = sphi 0, %s210
    %s225 = sphi 0, %s211
    %s229 = sphi 0, %s229
    %s231 = sphi 0, %s229
    %s232 = sphi 0, %s231
    %s246 = sphi 0, %s232
    %s250 = sphi 0, %s250
    %s252 = sphi 0, %s250
    %s253 = sphi 0, %s252
    %s267 = sphi 0, %s253
    %s271 = sphi 0, %s271
    %s273 = sphi 0, %s271
    %s274 = sphi 0, %s273
    %s288 = sphi 0, %s274
    %s292 = sphi 0, %s292
    %s294 = sphi 0, %s292
    %s295 = sphi 0, %s294
    %s309 = sphi 0, %s295
    %s313 = sphi 0, %s313
    %s315 = sphi 0, %s313
    %s316 = sphi 0, %s315
    %s330 = sphi 0, %s316
    %s336 = sphi 0, %s338
    %s339 = sphi 0, %s336
    %s340 = sphi 0, %s339
    %s356 = sphi 0, %s340
    %s362 = sphi 0, %s364
    %s365 = sphi 0, %s362
    %s366 = sphi 0, %s365
    %s382 = sphi 0, %s366
  $region4: #{vae_forward.1} parent=0 // loop_header_branch
    %25 = sbr.rel (%p23) target = $region8
  $region5: #{vae_forward.1} parent=0 // loop_body
    %s27 = ssub.s32 %s22, 1
    %s28 = ssub.s32 %s22, 2
    %s29 = sadd.s32 %s22, 1
    %s30 = ssub.s32 %s22, %s29
    %p31 = scmp.eq.s32.totalorder %s30, 0
    %s33 = sadd.s32 %s32, 1
    %s34 = scalar_select %p31, %s32, %s33
    %p37 = pneg %p31
    %p38 = scmp.eq.s32.totalorder %s22, 1
    %p39 = por %p37, %p38
    %p40 = scmp.ne.s32.totalorder %s32, %s35
    %p41 = scmp.eq.s32.totalorder %s22, 0
    %p42 = por %p40, %p41
    %p43 = scmp.ne.s32.totalorder %s32, %s35
    %p44 = scmp.eq.s32.totalorder %s27, 1
    %p45 = por %p43, %p44
    %p46 = scmp.ne.s32.totalorder %s35, %s36
    %p47 = scmp.eq.s32.totalorder %s27, 0
    %p48 = por %p46, %p47
    %p49 = scmp.ne.s32.totalorder %s35, %s36
    %p50 = scmp.eq.s32.totalorder %s28, 1
    %p51 = por %p49, %p50
    %p53 = scmp.ne.s32.totalorder %s36, %s52
    %p54 = scmp.eq.s32.totalorder %s28, 0
    %p55 = por %p53, %p54
    %s56 = ssub.s32 %s22, %s29
    %p57 = scmp.eq.s32.totalorder %s56, 0
    %s59 = sadd.s32 %s58, 1
    %s60 = scalar_select %p57, %s58, %s59
    %p63 = pneg %p57
    %p64 = scmp.eq.s32.totalorder %s22, 1
    %p65 = por %p63, %p64
    %p66 = scmp.ne.s32.totalorder %s58, %s61
    %p67 = scmp.eq.s32.totalorder %s22, 0
    %p68 = por %p66, %p67
    %p69 = scmp.ne.s32.totalorder %s58, %s61
    %p70 = scmp.eq.s32.totalorder %s27, 1
    %p71 = por %p69, %p70
    %p72 = scmp.ne.s32.totalorder %s61, %s62
    %p73 = scmp.eq.s32.totalorder %s27, 0
    %p74 = por %p72, %p73
    %p75 = scmp.ne.s32.totalorder %s61, %s62
    %p76 = scmp.eq.s32.totalorder %s28, 1
    %p77 = por %p75, %p76
    %p79 = scmp.ne.s32.totalorder %s62, %s78
    %p80 = scmp.eq.s32.totalorder %s28, 0
    %p81 = por %p79, %p80
    %s83 = sadd.s32 %s82, 1
    %p86 = scmp.eq.s32.totalorder %s22, 1
    %p87 = scmp.ne.s32.totalorder %s82, %s84
    %p88 = scmp.eq.s32.totalorder %s22, 0
    %p89 = por %p87, %p88
    %p90 = scmp.ne.s32.totalorder %s82, %s84
    %p91 = scmp.eq.s32.totalorder %s27, 1
    %p92 = por %p90, %p91
    %p93 = scmp.ne.s32.totalorder %s84, %s85
    %p94 = scmp.eq.s32.totalorder %s27, 0
    %p95 = por %p93, %p94
    %p96 = scmp.ne.s32.totalorder %s84, %s85
    %p97 = scmp.eq.s32.totalorder %s28, 1
    %p98 = por %p96, %p97
    %p100 = scmp.ne.s32.totalorder %s85, %s99
    %p101 = scmp.eq.s32.totalorder %s28, 0
    %p102 = por %p100, %p101
    %s104 = sadd.s32 %s103, 1
    %p107 = scmp.eq.s32.totalorder %s22, 1
    %p108 = scmp.ne.s32.totalorder %s103, %s105
    %p109 = scmp.eq.s32.totalorder %s22, 0
    %p110 = por %p108, %p109
    %p111 = scmp.ne.s32.totalorder %s103, %s105
    %p112 = scmp.eq.s32.totalorder %s27, 1
    %p113 = por %p111, %p112
    %p114 = scmp.ne.s32.totalorder %s105, %s106
    %p115 = scmp.eq.s32.totalorder %s27, 0
    %p116 = por %p114, %p115
    %p117 = scmp.ne.s32.totalorder %s105, %s106
    %p118 = scmp.eq.s32.totalorder %s28, 1
    %p119 = por %p117, %p118
    %p121 = scmp.ne.s32.totalorder %s106, %s120
    %p122 = scmp.eq.s32.totalorder %s28, 0
    %p123 = por %p121, %p122
    %s125 = sadd.s32 %s124, 1
    %p128 = scmp.eq.s32.totalorder %s22, 1
    %p129 = scmp.ne.s32.totalorder %s124, %s126
    %p130 = scmp.eq.s32.totalorder %s22, 0
    %p131 = por %p129, %p130
    %p132 = scmp.ne.s32.totalorder %s124, %s126
    %p133 = scmp.eq.s32.totalorder %s27, 1
    %p134 = por %p132, %p133
    %p135 = scmp.ne.s32.totalorder %s126, %s127
    %p136 = scmp.eq.s32.totalorder %s27, 0
    %p137 = por %p135, %p136
    %p138 = scmp.ne.s32.totalorder %s126, %s127
    %p139 = scmp.eq.s32.totalorder %s28, 1
    %p140 = por %p138, %p139
    %p142 = scmp.ne.s32.totalorder %s127, %s141
    %p143 = scmp.eq.s32.totalorder %s28, 0
    %p144 = por %p142, %p143
    %s146 = sadd.s32 %s145, 1
    %p149 = scmp.eq.s32.totalorder %s22, 1
    %p150 = scmp.ne.s32.totalorder %s145, %s147
    %p151 = scmp.eq.s32.totalorder %s22, 0
    %p152 = por %p150, %p151
    %p153 = scmp.ne.s32.totalorder %s145, %s147
    %p154 = scmp.eq.s32.totalorder %s27, 1
    %p155 = por %p153, %p154
    %p156 = scmp.ne.s32.totalorder %s147, %s148
    %p157 = scmp.eq.s32.totalorder %s27, 0
    %p158 = por %p156, %p157
    %p159 = scmp.ne.s32.totalorder %s147, %s148
    %p160 = scmp.eq.s32.totalorder %s28, 1
    %p161 = por %p159, %p160
    %p163 = scmp.ne.s32.totalorder %s148, %s162
    %p164 = scmp.eq.s32.totalorder %s28, 0
    %p165 = por %p163, %p164
    %s167 = sadd.s32 %s166, 1
    %p170 = scmp.eq.s32.totalorder %s22, 1
    %p171 = scmp.ne.s32.totalorder %s166, %s168
    %p172 = scmp.eq.s32.totalorder %s22, 0
    %p173 = por %p171, %p172
    %p174 = scmp.ne.s32.totalorder %s166, %s168
    %p175 = scmp.eq.s32.totalorder %s27, 1
    %p176 = por %p174, %p175
    %p177 = scmp.ne.s32.totalorder %s168, %s169
    %p178 = scmp.eq.s32.totalorder %s27, 0
    %p179 = por %p177, %p178
    %p180 = scmp.ne.s32.totalorder %s168, %s169
    %p181 = scmp.eq.s32.totalorder %s28, 1
    %p182 = por %p180, %p181
    %p184 = scmp.ne.s32.totalorder %s169, %s183
    %p185 = scmp.eq.s32.totalorder %s28, 0
    %p186 = por %p184, %p185
    %s188 = sadd.s32 %s187, 1
    %p191 = scmp.eq.s32.totalorder %s22, 1
    %p192 = scmp.ne.s32.totalorder %s187, %s189
    %p193 = scmp.eq.s32.totalorder %s22, 0
    %p194 = por %p192, %p193
    %p195 = scmp.ne.s32.totalorder %s187, %s189
    %p196 = scmp.eq.s32.totalorder %s27, 1
    %p197 = por %p195, %p196
    %p198 = scmp.ne.s32.totalorder %s189, %s190
    %p199 = scmp.eq.s32.totalorder %s27, 0
    %p200 = por %p198, %p199
    %p201 = scmp.ne.s32.totalorder %s189, %s190
    %p202 = scmp.eq.s32.totalorder %s28, 1
    %p203 = por %p201, %p202
    %p205 = scmp.ne.s32.totalorder %s190, %s204
    %p206 = scmp.eq.s32.totalorder %s28, 0
    %p207 = por %p205, %p206
    %s209 = sadd.s32 %s208, 1
    %p212 = scmp.eq.s32.totalorder %s22, 1
    %p213 = scmp.ne.s32.totalorder %s208, %s210
    %p214 = scmp.eq.s32.totalorder %s22, 0
    %p215 = por %p213, %p214
    %p216 = scmp.ne.s32.totalorder %s208, %s210
    %p217 = scmp.eq.s32.totalorder %s27, 1
    %p218 = por %p216, %p217
    %p219 = scmp.ne.s32.totalorder %s210, %s211
    %p220 = scmp.eq.s32.totalorder %s27, 0
    %p221 = por %p219, %p220
    %p222 = scmp.ne.s32.totalorder %s210, %s211
    %p223 = scmp.eq.s32.totalorder %s28, 1
    %p224 = por %p222, %p223
    %p226 = scmp.ne.s32.totalorder %s211, %s225
    %p227 = scmp.eq.s32.totalorder %s28, 0
    %p228 = por %p226, %p227
    %s230 = sadd.s32 %s229, 1
    %p233 = scmp.eq.s32.totalorder %s22, 1
    %p234 = scmp.ne.s32.totalorder %s229, %s231
    %p235 = scmp.eq.s32.totalorder %s22, 0
    %p236 = por %p234, %p235
    %p237 = scmp.ne.s32.totalorder %s229, %s231
    %p238 = scmp.eq.s32.totalorder %s27, 1
    %p239 = por %p237, %p238
    %p240 = scmp.ne.s32.totalorder %s231, %s232
    %p241 = scmp.eq.s32.totalorder %s27, 0
    %p242 = por %p240, %p241
    %p243 = scmp.ne.s32.totalorder %s231, %s232
    %p244 = scmp.eq.s32.totalorder %s28, 1
    %p245 = por %p243, %p244
    %p247 = scmp.ne.s32.totalorder %s232, %s246
    %p248 = scmp.eq.s32.totalorder %s28, 0
    %p249 = por %p247, %p248
    %s251 = sadd.s32 %s250, 1
    %p254 = scmp.eq.s32.totalorder %s22, 1
    %p255 = scmp.ne.s32.totalorder %s250, %s252
    %p256 = scmp.eq.s32.totalorder %s22, 0
    %p257 = por %p255, %p256
    %p258 = scmp.ne.s32.totalorder %s250, %s252
    %p259 = scmp.eq.s32.totalorder %s27, 1
    %p260 = por %p258, %p259
    %p261 = scmp.ne.s32.totalorder %s252, %s253
    %p262 = scmp.eq.s32.totalorder %s27, 0
    %p263 = por %p261, %p262
    %p264 = scmp.ne.s32.totalorder %s252, %s253
    %p265 = scmp.eq.s32.totalorder %s28, 1
    %p266 = por %p264, %p265
    %p268 = scmp.ne.s32.totalorder %s253, %s267
    %p269 = scmp.eq.s32.totalorder %s28, 0
    %p270 = por %p268, %p269
    %s272 = sadd.s32 %s271, 1
    %p275 = scmp.eq.s32.totalorder %s22, 1
    %p276 = scmp.ne.s32.totalorder %s271, %s273
    %p277 = scmp.eq.s32.totalorder %s22, 0
    %p278 = por %p276, %p277
    %p279 = scmp.ne.s32.totalorder %s271, %s273
    %p280 = scmp.eq.s32.totalorder %s27, 1
    %p281 = por %p279, %p280
    %p282 = scmp.ne.s32.totalorder %s273, %s274
    %p283 = scmp.eq.s32.totalorder %s27, 0
    %p284 = por %p282, %p283
    %p285 = scmp.ne.s32.totalorder %s273, %s274
    %p286 = scmp.eq.s32.totalorder %s28, 1
    %p287 = por %p285, %p286
    %p289 = scmp.ne.s32.totalorder %s274, %s288
    %p290 = scmp.eq.s32.totalorder %s28, 0
    %p291 = por %p289, %p290
    %s293 = sadd.s32 %s292, 1
    %p296 = scmp.eq.s32.totalorder %s22, 1
    %p297 = scmp.ne.s32.totalorder %s292, %s294
    %p298 = scmp.eq.s32.totalorder %s22, 0
    %p299 = por %p297, %p298
    %p300 = scmp.ne.s32.totalorder %s292, %s294
    %p301 = scmp.eq.s32.totalorder %s27, 1
    %p302 = por %p300, %p301
    %p303 = scmp.ne.s32.totalorder %s294, %s295
    %p304 = scmp.eq.s32.totalorder %s27, 0
    %p305 = por %p303, %p304
    %p306 = scmp.ne.s32.totalorder %s294, %s295
    %p307 = scmp.eq.s32.totalorder %s28, 1
    %p308 = por %p306, %p307
    %p310 = scmp.ne.s32.totalorder %s295, %s309
    %p311 = scmp.eq.s32.totalorder %s28, 0
    %p312 = por %p310, %p311
    %s314 = sadd.s32 %s313, 1
    %p317 = scmp.eq.s32.totalorder %s22, 1
    %p318 = scmp.ne.s32.totalorder %s313, %s315
    %p319 = scmp.eq.s32.totalorder %s22, 0
    %p320 = por %p318, %p319
    %p321 = scmp.ne.s32.totalorder %s313, %s315
    %p322 = scmp.eq.s32.totalorder %s27, 1
    %p323 = por %p321, %p322
    %p324 = scmp.ne.s32.totalorder %s315, %s316
    %p325 = scmp.eq.s32.totalorder %s27, 0
    %p326 = por %p324, %p325
    %p327 = scmp.ne.s32.totalorder %s315, %s316
    %p328 = scmp.eq.s32.totalorder %s28, 1
    %p329 = por %p327, %p328
    %p331 = scmp.ne.s32.totalorder %s316, %s330
    %p332 = scmp.eq.s32.totalorder %s28, 0
    %p333 = por %p331, %p332
    %s334 = ssub.s32 %s22, %s29
    %p335 = scmp.eq.s32.totalorder %s334, 0
    %s337 = sadd.s32 %s336, 1
    %s338 = scalar_select %p335, %s336, %s337
    %p341 = pneg %p335
    %p342 = scmp.eq.s32.totalorder %s22, 1
    %p343 = por %p341, %p342
    %p344 = scmp.ne.s32.totalorder %s336, %s339
    %p345 = scmp.eq.s32.totalorder %s22, 0
    %p346 = por %p344, %p345
    %p347 = scmp.ne.s32.totalorder %s336, %s339
    %p348 = scmp.eq.s32.totalorder %s27, 1
    %p349 = por %p347, %p348
    %p350 = scmp.ne.s32.totalorder %s339, %s340
    %p351 = scmp.eq.s32.totalorder %s27, 0
    %p352 = por %p350, %p351
    %p353 = scmp.ne.s32.totalorder %s339, %s340
    %p354 = scmp.eq.s32.totalorder %s28, 1
    %p355 = por %p353, %p354
    %p357 = scmp.ne.s32.totalorder %s340, %s356
    %p358 = scmp.eq.s32.totalorder %s28, 0
    %p359 = por %p357, %p358
    %s360 = ssub.s32 %s22, %s29
    %p361 = scmp.eq.s32.totalorder %s360, 0
    %s363 = sadd.s32 %s362, 1
    %s364 = scalar_select %p361, %s362, %s363
    %p367 = pneg %p361
    %p368 = scmp.eq.s32.totalorder %s22, 1
    %p369 = por %p367, %p368
    %p370 = scmp.ne.s32.totalorder %s362, %s365
    %p371 = scmp.eq.s32.totalorder %s22, 0
    %p372 = por %p370, %p371
    %p373 = scmp.ne.s32.totalorder %s362, %s365
    %p374 = scmp.eq.s32.totalorder %s27, 1
    %p375 = por %p373, %p374
    %p376 = scmp.ne.s32.totalorder %s365, %s366
    %p377 = scmp.eq.s32.totalorder %s27, 0
    %p378 = por %p376, %p377
    %p379 = scmp.ne.s32.totalorder %s365, %s366
    %p380 = scmp.eq.s32.totalorder %s28, 1
    %p381 = por %p379, %p380
    %p383 = scmp.ne.s32.totalorder %s366, %s382
    %p384 = scmp.eq.s32.totalorder %s28, 0
    %p385 = por %p383, %p384
    %p386 = scmp.le.s32.totalorder 1, %s22
    %p387 = scmp.lt.s32.totalorder %s22, 3
    %p388 = pnand %p386, %p387
    %p389 = pneg %p388
    // Predicated region
    $region9: #{vae_forward.1} parent=5 // pred_check
      _
    $region10: #{vae_forward.1} parent=5 // pred_check_branch
      %391 = sbr.rel (%p388) target = $region12
    $region11: #{vae_forward.1} parent=5 // pred_region
      %s392 = ssub.s32 %s22, 1
      // Predicated region
      $region13: #{vae_forward.1} parent=11 // pred_check
        %p393 = pneg %p95
      $region14: #{vae_forward.1} parent=11 // pred_check_branch
        %395 = sbr.rel (%p393) target = $region16
      $region15: #{vae_forward.1} parent=11 // pred_region
        _
      $region16: #{vae_forward.1} parent=11 // pred_fallthru
        _
      // Predicated region
      $region17: #{vae_forward.1} parent=11 // pred_check
        %p396 = pneg %p116
      $region18: #{vae_forward.1} parent=11 // pred_check_branch
        %398 = sbr.rel (%p396) target = $region20
      $region19: #{vae_forward.1} parent=11 // pred_region
        _
      $region20: #{vae_forward.1} parent=11 // pred_fallthru
        _
      // Predicated region
      $region21: #{vae_forward.1} parent=11 // pred_check
        %p399 = pneg %p137
      $region22: #{vae_forward.1} parent=11 // pred_check_branch
        %401 = sbr.rel (%p399) target = $region24
      $region23: #{vae_forward.1} parent=11 // pred_region
        _
      $region24: #{vae_forward.1} parent=11 // pred_fallthru
        _
      // Predicated region
      $region25: #{vae_forward.1} parent=11 // pred_check
        %p402 = pneg %p158
      $region26: #{vae_forward.1} parent=11 // pred_check_branch
        %404 = sbr.rel (%p402) target = $region28
      $region27: #{vae_forward.1} parent=11 // pred_region
        _
      $region28: #{vae_forward.1} parent=11 // pred_fallthru
        _
      // Predicated region
      $region29: #{vae_forward.1} parent=11 // pred_check
        %p405 = pneg %p179
      $region30: #{vae_forward.1} parent=11 // pred_check_branch
        %407 = sbr.rel (%p405) target = $region32
      $region31: #{vae_forward.1} parent=11 // pred_region
        _
      $region32: #{vae_forward.1} parent=11 // pred_fallthru
        _
      // Predicated region
      $region33: #{vae_forward.1} parent=11 // pred_check
        %p408 = pneg %p200
      $region34: #{vae_forward.1} parent=11 // pred_check_branch
        %410 = sbr.rel (%p408) target = $region36
      $region35: #{vae_forward.1} parent=11 // pred_region
        _
      $region36: #{vae_forward.1} parent=11 // pred_fallthru
        _
      // Predicated region
      $region37: #{vae_forward.1} parent=11 // pred_check
        %p411 = pneg %p221
      $region38: #{vae_forward.1} parent=11 // pred_check_branch
        %413 = sbr.rel (%p411) target = $region40
      $region39: #{vae_forward.1} parent=11 // pred_region
        _
      $region40: #{vae_forward.1} parent=11 // pred_fallthru
        _
      // Predicated region
      $region41: #{vae_forward.1} parent=11 // pred_check
        %p414 = pneg %p242
      $region42: #{vae_forward.1} parent=11 // pred_check_branch
        %416 = sbr.rel (%p414) target = $region44
      $region43: #{vae_forward.1} parent=11 // pred_region
        _
      $region44: #{vae_forward.1} parent=11 // pred_fallthru
        _
      // Predicated region
      $region45: #{vae_forward.1} parent=11 // pred_check
        %p417 = pneg %p263
      $region46: #{vae_forward.1} parent=11 // pred_check_branch
        %419 = sbr.rel (%p417) target = $region48
      $region47: #{vae_forward.1} parent=11 // pred_region
        _
      $region48: #{vae_forward.1} parent=11 // pred_fallthru
        _
      // Predicated region
      $region49: #{vae_forward.1} parent=11 // pred_check
        %p420 = pneg %p284
      $region50: #{vae_forward.1} parent=11 // pred_check_branch
        %422 = sbr.rel (%p420) target = $region52
      $region51: #{vae_forward.1} parent=11 // pred_region
        _
      $region52: #{vae_forward.1} parent=11 // pred_fallthru
        _
      // Predicated region
      $region53: #{vae_forward.1} parent=11 // pred_check
        %p423 = pneg %p305
      $region54: #{vae_forward.1} parent=11 // pred_check_branch
        %425 = sbr.rel (%p423) target = $region56
      $region55: #{vae_forward.1} parent=11 // pred_region
        _
      $region56: #{vae_forward.1} parent=11 // pred_fallthru
        _
      // Predicated region
      $region57: #{vae_forward.1} parent=11 // pred_check
        %p426 = pneg %p326
      $region58: #{vae_forward.1} parent=11 // pred_check_branch
        %428 = sbr.rel (%p426) target = $region60
      $region59: #{vae_forward.1} parent=11 // pred_region
        _
      $region60: #{vae_forward.1} parent=11 // pred_fallthru
        _
    $region12: #{vae_forward.1} parent=5 // pred_fallthru
      _
    %p429 = scmp.lt.s32.totalorder %s22, 2
    // Predicated region
    $region61: #{vae_forward.1} parent=5 // pred_check
      %p430 = pneg %p429
    $region62: #{vae_forward.1} parent=5 // pred_check_branch
      %432 = sbr.rel (%p430) target = $region64
    $region63: #{vae_forward.1} parent=5 // pred_region
      // Predicated region
      $region65: #{vae_forward.1} parent=63 // pred_check
        %p433 = pneg %p42
      $region66: #{vae_forward.1} parent=63 // pred_check_branch
        %435 = sbr.rel (%p433) target = $region68
      $region67: #{vae_forward.1} parent=63 // pred_region
        %s436 = smul.u32 16, %s22
        %p437 = scmp.lt.s32.totalorder %s436, 31
        %s438 = scalar_select %p437, %s436, 31
        %s439 = smul.addr %s438, 7
        %s440 = smul.addr %s439, 8
        %s441 = scalar_lea.vmem %s0, %s440
        %s442 = smul.u32 16, %s22
      $region68: #{vae_forward.1} parent=63 // pred_fallthru
        _
      // Predicated region
      $region69: #{vae_forward.1} parent=63 // pred_check
        %p443 = pneg %p68
      $region70: #{vae_forward.1} parent=63 // pred_check_branch
        %445 = sbr.rel (%p443) target = $region72
      $region71: #{vae_forward.1} parent=63 // pred_region
        %s446 = smul.u32 16, %s22
        %p447 = scmp.lt.s32.totalorder %s446, 31
        %s448 = scalar_select %p447, %s446, 31
        %s449 = smul.addr %s448, 8
        %s450 = scalar_lea.vmem %s1, %s449
        %s451 = smul.u32 16, %s22
      $region72: #{vae_forward.1} parent=63 // pred_fallthru
        _
    $region64: #{vae_forward.1} parent=5 // pred_fallthru
      _
    %p452 = scmp.le.s32.totalorder 1, %s22
    %p453 = scmp.lt.s32.totalorder %s22, 3
    %p454 = pnand %p452, %p453
    %p455 = pneg %p454
    // Predicated region
    $region73: #{vae_forward.1} parent=5 // pred_check
      _
    $region74: #{vae_forward.1} parent=5 // pred_check_branch
      %457 = sbr.rel (%p454) target = $region76
    $region75: #{vae_forward.1} parent=5 // pred_region
      %s458 = ssub.s32 %s22, 1
      %s459 = smul.u32 16, %s27
      %p460 = scmp.lt.s32.totalorder %s459, 31
      %s461 = scalar_select %p460, %s459, 31
      %s462 = smul.addr %s461, 7
      %s463 = smul.addr %s462, 8
      %s464 = scalar_lea.vmem %s0, %s463
      %p465 = pneg %p48
      %p466 = pneg %p45
      %s467 = smul.u32 16, %s27
      %p468 = scmp.lt.s32.totalorder %s467, 31
      %s469 = scalar_select %p468, %s467, 31
      %s470 = smul.addr %s469, 8
      %s471 = scalar_lea.vmem %s1, %s470
      %p472 = pneg %p74
      %p473 = pneg %p71
      %p474 = pneg %p95
      %p475 = pneg %p92
      %p476 = pneg %p116
      %p477 = pneg %p113
      %p478 = pneg %p137
      %p479 = pneg %p134
      %p480 = pneg %p158
      %p481 = pneg %p155
      %p482 = pneg %p179
      %p483 = pneg %p176
      %p484 = pneg %p200
      %p485 = pneg %p197
      %p486 = pneg %p221
      %p487 = pneg %p218
      %p488 = pneg %p242
      %p489 = pneg %p239
      %p490 = pneg %p263
      %p491 = pneg %p260
      %p492 = pneg %p284
      %p493 = pneg %p281
      %p494 = pneg %p305
      %p495 = pneg %p302
      %p496 = pneg %p326
      %p497 = pneg %p323
      %p498 = pneg %p352
      %p499 = pneg %p349
      %s500 = smul.u32 16, %s27
      %p501 = scmp.lt.s32.totalorder %s500, 31
      %s502 = scalar_select %p501, %s500, 31
      %s503 = smul.addr %s502, 7
      %s504 = smul.addr %s503, 8
      %s505 = scalar_lea.vmem %s14, %s504
      %p506 = pneg %p378
      %p507 = pneg %p375
      %s508 = smul.u32 16, %s27
      %p509 = scmp.lt.s32.totalorder %s508, 31
      %s510 = scalar_select %p509, %s508, 31
      %s511 = smul.addr %s510, 8
      %s512 = scalar_lea.vmem %s15, %s511
      %s513 = smul.u32 16, %s27
      %p514 = scmp.lt.s32.totalorder %s513, 31
      %s515 = scalar_select %p514, %s513, 31
      %s516 = smul.addr %s515, 7
      %s517 = smul.addr %s516, 8
      %s518 = scalar_lea.vmem %s0, %s517
      %s519 = smul.u32 16, %s27
      %s520 = smul.u32 16, %s27
      %p521 = scmp.lt.s32.totalorder %s520, 31
      %s522 = scalar_select %p521, %s520, 31
      %s523 = smul.addr %s522, 8
      %s524 = scalar_lea.vmem %s1, %s523
      %s525 = smul.u32 16, %s27
      %s526 = smul.u32 16, %s27
      %p527 = scmp.lt.s32.totalorder %s526, 31
      %s528 = scalar_select %p527, %s526, 31
      %s529 = smul.addr %s528, 7
      %s530 = smul.addr %s529, 8
      %s531 = scalar_lea.vmem %s14, %s530
      %s532 = smul.u32 16, %s27
      %s533 = smul.u32 16, %s27
      %p534 = scmp.lt.s32.totalorder %s533, 31
      %s535 = scalar_select %p534, %s533, 31
      %s536 = smul.addr %s535, 8
      %s537 = scalar_lea.vmem %s15, %s536
      %s538 = smul.u32 16, %s27
      %v540 = vld [vmem:[%s518] sm:$0xff]
      %v541 = vld [vmem:[%s518 + $0x8] sm:$0xff]
      %v542 = vld [vmem:[%s518 + $0x10] sm:$0xff]
      %v543 = vld [vmem:[%s518 + $0x18] sm:$0xff]
      %v544 = vld [vmem:[%s518 + $0x20] sm:$0xff]
      %v545 = vld [vmem:[%s518 + $0x28] sm:$0xff]
      %v546 = vld [vmem:[%s518 + $0x30] sm:$0xff]
      %v547 = vld [vmem:[%s518 + $0x38] sm:$0xff]
      %v548 = vld [vmem:[%s518 + $0x40] sm:$0xff]
      %v549 = vld [vmem:[%s518 + $0x48] sm:$0xff]
      %v550 = vld [vmem:[%s518 + $0x50] sm:$0xff]
      %v551 = vld [vmem:[%s518 + $0x58] sm:$0xff]
      %v552 = vld [vmem:[%s518 + $0x60] sm:$0xff]
      %v553 = vld [vmem:[%s518 + $0x68] sm:$0xff]
      %v554 = vld [vmem:[%s518 + $0x70] sm:$0xff]
      %v555 = vld [vmem:[%s518 + $0x78] sm:$0xff]
      %v556 = vld [vmem:[%s518 + $0x80] sm:$0xff]
      %v557 = vld [vmem:[%s518 + $0x88] sm:$0xff]
      %v558 = vld [vmem:[%s518 + $0x90] sm:$0xff]
      %v559 = vld [vmem:[%s518 + $0x98] sm:$0xff]
      %v560 = vld [vmem:[%s518 + $0xa0] sm:$0xff]
      %v561 = vld [vmem:[%s518 + $0xa8] sm:$0xff]
      %v562 = vld [vmem:[%s518 + $0xb0] sm:$0xff]
      %v563 = vld [vmem:[%s518 + $0xb8] sm:$0xff]
      %v564 = vld [vmem:[%s518 + $0xc0] sm:$0xff]
      %v565 = vld [vmem:[%s518 + $0xc8] sm:$0xff]
      %v566 = vld [vmem:[%s518 + $0xd0] sm:$0xff]
      %v567 = vld [vmem:[%s518 + $0xd8] sm:$0xff]
      %v568 = vld [vmem:[%s518 + $0xe0] sm:$0xff]
      %v569 = vld [vmem:[%s518 + $0xe8] sm:$0xff]
      %v570 = vld [vmem:[%s518 + $0xf0] sm:$0xff]
      %v571 = vld [vmem:[%s518 + $0xf8] sm:$0xff]
      %v572 = vld [vmem:[%s518 + $0x100] sm:$0xff]
      %v573 = vld [vmem:[%s518 + $0x108] sm:$0xff]
      %v574 = vld [vmem:[%s518 + $0x110] sm:$0xff]
      %v575 = vld [vmem:[%s518 + $0x118] sm:$0xff]
      %v576 = vld [vmem:[%s518 + $0x120] sm:$0xff]
      %v577 = vld [vmem:[%s518 + $0x128] sm:$0xff]
      %v578 = vld [vmem:[%s518 + $0x130] sm:$0xff]
      %v579 = vld [vmem:[%s518 + $0x138] sm:$0xff]
      %v580 = vld [vmem:[%s518 + $0x140] sm:$0xff]
      %v581 = vld [vmem:[%s518 + $0x148] sm:$0xff]
      %v582 = vld [vmem:[%s518 + $0x150] sm:$0xff]
      %v583 = vld [vmem:[%s518 + $0x158] sm:$0xff]
      %v584 = vld [vmem:[%s518 + $0x160] sm:$0xff]
      %v585 = vld [vmem:[%s518 + $0x168] sm:$0xff]
      %v586 = vld [vmem:[%s518 + $0x170] sm:$0xff]
      %v587 = vld [vmem:[%s518 + $0x178] sm:$0xff]
      %v588 = vld [vmem:[%s518 + $0x180] sm:$0xff]
      %v589 = vld [vmem:[%s518 + $0x188] sm:$0xff]
      %v590 = vld [vmem:[%s518 + $0x190] sm:$0xff]
      %v591 = vld [vmem:[%s518 + $0x198] sm:$0xff]
      %v592 = vld [vmem:[%s518 + $0x1a0] sm:$0xff]
      %v593 = vld [vmem:[%s518 + $0x1a8] sm:$0xff]
      %v594 = vld [vmem:[%s518 + $0x1b0] sm:$0xff]
      %v595 = vld [vmem:[%s518 + $0x1b8] sm:$0xff]
      %v596 = vld [vmem:[%s518 + $0x1c0] sm:$0xff]
      %v597 = vld [vmem:[%s518 + $0x1c8] sm:$0xff]
      %v598 = vld [vmem:[%s518 + $0x1d0] sm:$0xff]
      %v599 = vld [vmem:[%s518 + $0x1d8] sm:$0xff]
      %v600 = vld [vmem:[%s518 + $0x1e0] sm:$0xff]
      %v601 = vld [vmem:[%s518 + $0x1e8] sm:$0xff]
      %v602 = vld [vmem:[%s518 + $0x1f0] sm:$0xff]
      %v603 = vld [vmem:[%s518 + $0x1f8] sm:$0xff]
      %v604 = vld [vmem:[%s518 + $0x200] sm:$0xff]
      %v605 = vld [vmem:[%s518 + $0x208] sm:$0xff]
      %v606 = vld [vmem:[%s518 + $0x210] sm:$0xff]
      %v607 = vld [vmem:[%s518 + $0x218] sm:$0xff]
      %v608 = vld [vmem:[%s518 + $0x220] sm:$0xff]
      %v609 = vld [vmem:[%s518 + $0x228] sm:$0xff]
      %v610 = vld [vmem:[%s518 + $0x230] sm:$0xff]
      %v611 = vld [vmem:[%s518 + $0x238] sm:$0xff]
      %v612 = vld [vmem:[%s518 + $0x240] sm:$0xff]
      %v613 = vld [vmem:[%s518 + $0x248] sm:$0xff]
      %v614 = vld [vmem:[%s518 + $0x250] sm:$0xff]
      %v615 = vld [vmem:[%s518 + $0x258] sm:$0xff]
      %v616 = vld [vmem:[%s518 + $0x260] sm:$0xff]
      %v617 = vld [vmem:[%s518 + $0x268] sm:$0xff]
      %v618 = vld [vmem:[%s518 + $0x270] sm:$0xff]
      %v619 = vld [vmem:[%s518 + $0x278] sm:$0xff]
      %v620 = vld [vmem:[%s518 + $0x280] sm:$0xff]
      %v621 = vld [vmem:[%s518 + $0x288] sm:$0xff]
      %v622 = vld [vmem:[%s518 + $0x290] sm:$0xff]
      %v623 = vld [vmem:[%s518 + $0x298] sm:$0xff]
      %v624 = vld [vmem:[%s518 + $0x2a0] sm:$0xff]
      %v625 = vld [vmem:[%s518 + $0x2a8] sm:$0xff]
      %v626 = vld [vmem:[%s518 + $0x2b0] sm:$0xff]
      %v627 = vld [vmem:[%s518 + $0x2b8] sm:$0xff]
      %v628 = vld [vmem:[%s518 + $0x2c0] sm:$0xff]
      %v629 = vld [vmem:[%s518 + $0x2c8] sm:$0xff]
      %v630 = vld [vmem:[%s518 + $0x2d0] sm:$0xff]
      %v631 = vld [vmem:[%s518 + $0x2d8] sm:$0xff]
      %v632 = vld [vmem:[%s518 + $0x2e0] sm:$0xff]
      %v633 = vld [vmem:[%s518 + $0x2e8] sm:$0xff]
      %v634 = vld [vmem:[%s518 + $0x2f0] sm:$0xff]
      %v635 = vld [vmem:[%s518 + $0x2f8] sm:$0xff]
      %v636 = vld [vmem:[%s518 + $0x300] sm:$0xff]
      %v637 = vld [vmem:[%s518 + $0x308] sm:$0xff]
      %v638 = vld [vmem:[%s518 + $0x310] sm:$0xff]
      %v639 = vld [vmem:[%s518 + $0x318] sm:$0xff]
      %v640 = vld [vmem:[%s518 + $0x320] sm:$0xff]
      %v641 = vld [vmem:[%s518 + $0x328] sm:$0xff]
      %v642 = vld [vmem:[%s518 + $0x330] sm:$0xff]
      %v643 = vld [vmem:[%s518 + $0x338] sm:$0xff]
      %v644 = vld [vmem:[%s518 + $0x340] sm:$0xff]
      %v645 = vld [vmem:[%s518 + $0x348] sm:$0xff]
      %v646 = vld [vmem:[%s518 + $0x350] sm:$0xff]
      %v647 = vld [vmem:[%s518 + $0x358] sm:$0xff]
      %v648 = vld [vmem:[%s518 + $0x360] sm:$0xff]
      %v649 = vld [vmem:[%s518 + $0x368] sm:$0xff]
      %v650 = vld [vmem:[%s518 + $0x370] sm:$0xff]
      %v651 = vld [vmem:[%s518 + $0x378] sm:$0xff]
      %v652 = vpack.c.bf16 %v547, %v540
      %v653 = vpack.c.bf16 %v548, %v541
      %v654 = vpack.c.bf16 %v549, %v542
      %v655 = vpack.c.bf16 %v550, %v543
      %v656 = vpack.c.bf16 %v551, %v544
      %v657 = vpack.c.bf16 %v552, %v545
      %v658 = vpack.c.bf16 %v553, %v546
      %v659 = vpack.c.bf16 %v561, %v554
      %v660 = vpack.c.bf16 %v562, %v555
      %v661 = vpack.c.bf16 %v563, %v556
      %v662 = vpack.c.bf16 %v564, %v557
      %v663 = vpack.c.bf16 %v565, %v558
      %v664 = vpack.c.bf16 %v566, %v559
      %v665 = vpack.c.bf16 %v567, %v560
      %v666 = vpack.c.bf16 %v575, %v568
      %v667 = vpack.c.bf16 %v576, %v569
      %v668 = vpack.c.bf16 %v577, %v570
      %v669 = vpack.c.bf16 %v578, %v571
      %v670 = vpack.c.bf16 %v579, %v572
      %v671 = vpack.c.bf16 %v580, %v573
      %v672 = vpack.c.bf16 %v581, %v574
      %v673 = vpack.c.bf16 %v589, %v582
      %v674 = vpack.c.bf16 %v590, %v583
      %v675 = vpack.c.bf16 %v591, %v584
      %v676 = vpack.c.bf16 %v592, %v585
      %v677 = vpack.c.bf16 %v593, %v586
      %v678 = vpack.c.bf16 %v594, %v587
      %v679 = vpack.c.bf16 %v595, %v588
      %v680 = vpack.c.bf16 %v603, %v596
      %v681 = vpack.c.bf16 %v604, %v597
      %v682 = vpack.c.bf16 %v605, %v598
      %v683 = vpack.c.bf16 %v606, %v599
      %v684 = vpack.c.bf16 %v607, %v600
      %v685 = vpack.c.bf16 %v608, %v601
      %v686 = vpack.c.bf16 %v609, %v602
      %v687 = vpack.c.bf16 %v617, %v610
      %v688 = vpack.c.bf16 %v618, %v611
      %v689 = vpack.c.bf16 %v619, %v612
      %v690 = vpack.c.bf16 %v620, %v613
      %v691 = vpack.c.bf16 %v621, %v614
      %v692 = vpack.c.bf16 %v622, %v615
      %v693 = vpack.c.bf16 %v623, %v616
      %v694 = vpack.c.bf16 %v631, %v624
      %v695 = vpack.c.bf16 %v632, %v625
      %v696 = vpack.c.bf16 %v633, %v626
      %v697 = vpack.c.bf16 %v634, %v627
      %v698 = vpack.c.bf16 %v635, %v628
      %v699 = vpack.c.bf16 %v636, %v629
      %v700 = vpack.c.bf16 %v637, %v630
      %v701 = vpack.c.bf16 %v645, %v638
      %v702 = vpack.c.bf16 %v646, %v639
      %v703 = vpack.c.bf16 %v647, %v640
      %v704 = vpack.c.bf16 %v648, %v641
      %v705 = vpack.c.bf16 %v649, %v642
      %v706 = vpack.c.bf16 %v650, %v643
      %v707 = vpack.c.bf16 %v651, %v644
      %v708 = vld [vmem:[%s2] sm:$0xff]
      %v709 = vld [vmem:[%s2 + $0x8] sm:$0xff]
      %v710 = vld [vmem:[%s2 + $0x10] sm:$0xff]
      %v711 = vld [vmem:[%s2 + $0x18] sm:$0xff]
      %v712 = vld [vmem:[%s2 + $0x20] sm:$0xff]
      %v713 = vld [vmem:[%s2 + $0x28] sm:$0xff]
      %v714 = vld [vmem:[%s2 + $0x30] sm:$0xff]
      %v715 = vld [vmem:[%s2 + $0x38] sm:$0xff]
      %v716 = vld [vmem:[%s2 + $0x40] sm:$0xff]
      %v717 = vld [vmem:[%s2 + $0x48] sm:$0xff]
      %v718 = vld [vmem:[%s2 + $0x50] sm:$0xff]
      %v719 = vld [vmem:[%s2 + $0x58] sm:$0xff]
      %v720 = vld [vmem:[%s2 + $0x60] sm:$0xff]
      %v721 = vld [vmem:[%s2 + $0x68] sm:$0xff]
      %v722 = vld [vmem:[%s2 + $0x70] sm:$0xff]
      %v723 = vld [vmem:[%s2 + $0x78] sm:$0xff]
      %v724 = vld [vmem:[%s2 + $0x80] sm:$0xff]
      %v725 = vld [vmem:[%s2 + $0x88] sm:$0xff]
      %v726 = vld [vmem:[%s2 + $0x90] sm:$0xff]
      %v727 = vld [vmem:[%s2 + $0x98] sm:$0xff]
      %v728 = vld [vmem:[%s2 + $0xa0] sm:$0xff]
      %v729 = vld [vmem:[%s2 + $0xa8] sm:$0xff]
      %v730 = vld [vmem:[%s2 + $0xb0] sm:$0xff]
      %v731 = vld [vmem:[%s2 + $0xb8] sm:$0xff]
      %v732 = vld [vmem:[%s2 + $0xc0] sm:$0xff]
      %v733 = vld [vmem:[%s2 + $0xc8] sm:$0xff]
      %v734 = vld [vmem:[%s2 + $0xd0] sm:$0xff]
      %v735 = vld [vmem:[%s2 + $0xd8] sm:$0xff]
      %v736 = vld [vmem:[%s2 + $0xe0] sm:$0xff]
      %v737 = vld [vmem:[%s2 + $0xe8] sm:$0xff]
      %v738 = vld [vmem:[%s2 + $0xf0] sm:$0xff]
      %v739 = vld [vmem:[%s2 + $0xf8] sm:$0xff]
      %v740 = vld [vmem:[%s2 + $0x100] sm:$0xff]
      %v741 = vld [vmem:[%s2 + $0x108] sm:$0xff]
      %v742 = vld [vmem:[%s2 + $0x110] sm:$0xff]
      %v743 = vld [vmem:[%s2 + $0x118] sm:$0xff]
      %v744 = vld [vmem:[%s2 + $0x120] sm:$0xff]
      %v745 = vld [vmem:[%s2 + $0x128] sm:$0xff]
      %v746 = vld [vmem:[%s2 + $0x130] sm:$0xff]
      %v747 = vld [vmem:[%s2 + $0x138] sm:$0xff]
      %v748 = vld [vmem:[%s2 + $0x140] sm:$0xff]
      %v749 = vld [vmem:[%s2 + $0x148] sm:$0xff]
      %v750 = vld [vmem:[%s2 + $0x150] sm:$0xff]
      %v751 = vld [vmem:[%s2 + $0x158] sm:$0xff]
      %v752 = vld [vmem:[%s2 + $0x160] sm:$0xff]
      %v753 = vld [vmem:[%s2 + $0x168] sm:$0xff]
      %v754 = vld [vmem:[%s2 + $0x170] sm:$0xff]
      %v755 = vld [vmem:[%s2 + $0x178] sm:$0xff]
      %v756 = vld [vmem:[%s2 + $0x180] sm:$0xff]
      %v757 = vld [vmem:[%s2 + $0x188] sm:$0xff]
      %v758 = vld [vmem:[%s2 + $0x190] sm:$0xff]
      %v759 = vld [vmem:[%s2 + $0x198] sm:$0xff]
      %v760 = vld [vmem:[%s2 + $0x1a0] sm:$0xff]
      %v761 = vld [vmem:[%s2 + $0x1a8] sm:$0xff]
      %v762 = vld [vmem:[%s2 + $0x1b0] sm:$0xff]
      %v763 = vld [vmem:[%s2 + $0x1b8] sm:$0xff]
      %v764 = vld [vmem:[%s2 + $0x1c0] sm:$0xff]
      %v765 = vld [vmem:[%s2 + $0x1c8] sm:$0xff]
      %v766 = vld [vmem:[%s2 + $0x1d0] sm:$0xff]
      %v767 = vld [vmem:[%s2 + $0x1d8] sm:$0xff]
      %v768 = vld [vmem:[%s2 + $0x1e0] sm:$0xff]
      %v769 = vld [vmem:[%s2 + $0x1e8] sm:$0xff]
      %v770 = vld [vmem:[%s2 + $0x1f0] sm:$0xff]
      %v771 = vld [vmem:[%s2 + $0x1f8] sm:$0xff]
      %v772 = vld [vmem:[%s2 + $0x200] sm:$0xff]
      %v773 = vld [vmem:[%s2 + $0x208] sm:$0xff]
      %v774 = vld [vmem:[%s2 + $0x210] sm:$0xff]
      %v775 = vld [vmem:[%s2 + $0x218] sm:$0xff]
      %v776 = vld [vmem:[%s2 + $0x220] sm:$0xff]
      %v777 = vld [vmem:[%s2 + $0x228] sm:$0xff]
      %v778 = vld [vmem:[%s2 + $0x230] sm:$0xff]
      %v779 = vld [vmem:[%s2 + $0x238] sm:$0xff]
      %v780 = vld [vmem:[%s2 + $0x240] sm:$0xff]
      %v781 = vld [vmem:[%s2 + $0x248] sm:$0xff]
      %v782 = vld [vmem:[%s2 + $0x250] sm:$0xff]
      %v783 = vld [vmem:[%s2 + $0x258] sm:$0xff]
      %v784 = vld [vmem:[%s2 + $0x260] sm:$0xff]
      %v785 = vld [vmem:[%s2 + $0x268] sm:$0xff]
      %v786 = vld [vmem:[%s2 + $0x270] sm:$0xff]
      %v787 = vld [vmem:[%s2 + $0x278] sm:$0xff]
      %v788 = vld [vmem:[%s2 + $0x280] sm:$0xff]
      %v789 = vld [vmem:[%s2 + $0x288] sm:$0xff]
      %v790 = vld [vmem:[%s2 + $0x290] sm:$0xff]
      %v791 = vld [vmem:[%s2 + $0x298] sm:$0xff]
      %v792 = vld [vmem:[%s2 + $0x2a0] sm:$0xff]
      %v793 = vld [vmem:[%s2 + $0x2a8] sm:$0xff]
      %v794 = vld [vmem:[%s2 + $0x2b0] sm:$0xff]
      %v795 = vld [vmem:[%s2 + $0x2b8] sm:$0xff]
      %v796 = vld [vmem:[%s2 + $0x2c0] sm:$0xff]
      %v797 = vld [vmem:[%s2 + $0x2c8] sm:$0xff]
      %v798 = vld [vmem:[%s2 + $0x2d0] sm:$0xff]
      %v799 = vld [vmem:[%s2 + $0x2d8] sm:$0xff]
      %v800 = vld [vmem:[%s2 + $0x2e0] sm:$0xff]
      %v801 = vld [vmem:[%s2 + $0x2e8] sm:$0xff]
      %v802 = vld [vmem:[%s2 + $0x2f0] sm:$0xff]
      %v803 = vld [vmem:[%s2 + $0x2f8] sm:$0xff]
      %v804 = vld [vmem:[%s2 + $0x300] sm:$0xff]
      %v805 = vld [vmem:[%s2 + $0x308] sm:$0xff]
      %v806 = vld [vmem:[%s3] sm:$0x3]
      %v808 = vlaneseq
      %v809 = vshrl.u32 %v808, 7
      %v810 = vsub.s32 0, %v809
      %v811 = vrot.slane %v806, %v810
      %v812 = vlaneseq
      %v813 = vshrl.u32 %v812, 7
      %v814 = vsub.s32 1, %v813
      %v815 = vrot.slane %v806, %v814
      %v916 = vunpack.c.l.b16 %v708
      %v917 = vunpack.c.h.b16 %v708
      %v918 = vunpack.c.l.b16 %v709
      %v919 = vunpack.c.h.b16 %v709
      %v920 = vunpack.c.l.b16 %v710
      %v921 = vunpack.c.h.b16 %v710
      %v922 = vunpack.c.l.b16 %v711
      %v923 = vunpack.c.h.b16 %v711
      %v924 = vunpack.c.l.b16 %v712
      %v925 = vunpack.c.h.b16 %v712
      %v926 = vunpack.c.l.b16 %v713
      %v927 = vunpack.c.h.b16 %v713
      %v928 = vunpack.c.l.b16 %v714
      %v929 = vunpack.c.h.b16 %v714
      %v930 = vunpack.c.l.b16 %v715
      %v931 = vunpack.c.h.b16 %v715
      %v932 = vunpack.c.l.b16 %v716
      %v933 = vunpack.c.h.b16 %v716
      %v934 = vunpack.c.l.b16 %v717
      %v935 = vunpack.c.h.b16 %v717
      %v936 = vunpack.c.l.b16 %v718
      %v937 = vunpack.c.h.b16 %v718
      %v938 = vunpack.c.l.b16 %v719
      %v939 = vunpack.c.h.b16 %v719
      %v940 = vunpack.c.l.b16 %v720
      %v941 = vunpack.c.h.b16 %v720
      %v942 = vunpack.c.l.b16 %v721
      %v943 = vunpack.c.h.b16 %v721
      %v944 = vunpack.c.l.b16 %v722
      %v945 = vunpack.c.h.b16 %v722
      %v946 = vunpack.c.l.b16 %v723
      %v947 = vunpack.c.h.b16 %v723
      %v948 = vunpack.c.l.b16 %v724
      %v949 = vunpack.c.h.b16 %v724
      %v950 = vunpack.c.l.b16 %v725
      %v951 = vunpack.c.h.b16 %v725
      %v952 = vunpack.c.l.b16 %v726
      %v953 = vunpack.c.h.b16 %v726
      %v954 = vunpack.c.l.b16 %v727
      %v955 = vunpack.c.h.b16 %v727
      %v956 = vunpack.c.l.b16 %v728
      %v957 = vunpack.c.h.b16 %v728
      %v958 = vunpack.c.l.b16 %v729
      %v959 = vunpack.c.h.b16 %v729
      %v960 = vunpack.c.l.b16 %v730
      %v961 = vunpack.c.h.b16 %v730
      %v962 = vunpack.c.l.b16 %v731
      %v963 = vunpack.c.h.b16 %v731
      %v964 = vunpack.c.l.b16 %v732
      %v965 = vunpack.c.h.b16 %v732
      %v966 = vunpack.c.l.b16 %v733
      %v967 = vunpack.c.h.b16 %v733
      %v968 = vunpack.c.l.b16 %v734
      %v969 = vunpack.c.h.b16 %v734
      %v970 = vunpack.c.l.b16 %v735
      %v971 = vunpack.c.h.b16 %v735
      %v972 = vunpack.c.l.b16 %v736
      %v973 = vunpack.c.h.b16 %v736
      %v974 = vunpack.c.l.b16 %v737
      %v975 = vunpack.c.h.b16 %v737
      %v976 = vunpack.c.l.b16 %v738
      %v977 = vunpack.c.h.b16 %v738
      %v978 = vunpack.c.l.b16 %v739
      %v979 = vunpack.c.h.b16 %v739
      %v980 = vunpack.c.l.b16 %v740
      %v981 = vunpack.c.h.b16 %v740
      %v982 = vunpack.c.l.b16 %v741
      %v983 = vunpack.c.h.b16 %v741
      %v984 = vunpack.c.l.b16 %v742
      %v985 = vunpack.c.h.b16 %v742
      %v986 = vunpack.c.l.b16 %v743
      %v987 = vunpack.c.h.b16 %v743
      %v988 = vunpack.c.l.b16 %v744
      %v989 = vunpack.c.h.b16 %v744
      %v990 = vunpack.c.l.b16 %v745
      %v991 = vunpack.c.h.b16 %v745
      %v992 = vunpack.c.l.b16 %v746
      %v993 = vunpack.c.h.b16 %v746
      %v994 = vunpack.c.l.b16 %v747
      %v995 = vunpack.c.h.b16 %v747
      %v996 = vunpack.c.l.b16 %v748
      %v997 = vunpack.c.h.b16 %v748
      %v998 = vunpack.c.l.b16 %v749
      %v999 = vunpack.c.h.b16 %v749
      %v1000 = vunpack.c.l.b16 %v750
      %v1001 = vunpack.c.h.b16 %v750
      %v1002 = vunpack.c.l.b16 %v751
      %v1003 = vunpack.c.h.b16 %v751
      %v1004 = vunpack.c.l.b16 %v752
      %v1005 = vunpack.c.h.b16 %v752
      %v1006 = vunpack.c.l.b16 %v753
      %v1007 = vunpack.c.h.b16 %v753
      %v1008 = vunpack.c.l.b16 %v754
      %v1009 = vunpack.c.h.b16 %v754
      %v1010 = vunpack.c.l.b16 %v755
      %v1011 = vunpack.c.h.b16 %v755
      %v1012 = vunpack.c.l.b16 %v756
      %v1013 = vunpack.c.h.b16 %v756
      %v1014 = vunpack.c.l.b16 %v757
      %v1015 = vunpack.c.h.b16 %v757
      %v1016 = vunpack.c.l.b16 %v758
      %v1017 = vunpack.c.h.b16 %v758
      %v1018 = vunpack.c.l.b16 %v759
      %v1019 = vunpack.c.h.b16 %v759
      %v1020 = vunpack.c.l.b16 %v760
      %v1021 = vunpack.c.h.b16 %v760
      %v1022 = vunpack.c.l.b16 %v761
      %v1023 = vunpack.c.h.b16 %v761
      %v1024 = vunpack.c.l.b16 %v762
      %v1025 = vunpack.c.h.b16 %v762
      %v1026 = vunpack.c.l.b16 %v763
      %v1027 = vunpack.c.h.b16 %v763
      %v1028 = vunpack.c.l.b16 %v764
      %v1029 = vunpack.c.h.b16 %v764
      %v1030 = vunpack.c.l.b16 %v765
      %v1031 = vunpack.c.h.b16 %v765
      %v1032 = vunpack.c.l.b16 %v766
      %v1033 = vunpack.c.h.b16 %v766
      %v1034 = vunpack.c.l.b16 %v767
      %v1035 = vunpack.c.h.b16 %v767
      %v1036 = vunpack.c.l.b16 %v768
      %v1037 = vunpack.c.h.b16 %v768
      %v1038 = vunpack.c.l.b16 %v769
      %v1039 = vunpack.c.h.b16 %v769
      %v1040 = vunpack.c.l.b16 %v770
      %v1041 = vunpack.c.h.b16 %v770
      %v1042 = vunpack.c.l.b16 %v771
      %v1043 = vunpack.c.h.b16 %v771
      %v1044 = vunpack.c.l.b16 %v772
      %v1045 = vunpack.c.h.b16 %v772
      %v1046 = vunpack.c.l.b16 %v773
      %v1047 = vunpack.c.h.b16 %v773
      %v1048 = vunpack.c.l.b16 %v774
      %v1049 = vunpack.c.h.b16 %v774
      %v1050 = vunpack.c.l.b16 %v775
      %v1051 = vunpack.c.h.b16 %v775
      %v1052 = vunpack.c.l.b16 %v776
      %v1053 = vunpack.c.h.b16 %v776
      %v1054 = vunpack.c.l.b16 %v777
      %v1055 = vunpack.c.h.b16 %v777
      %v1056 = vunpack.c.l.b16 %v778
      %v1057 = vunpack.c.h.b16 %v778
      %v1058 = vunpack.c.l.b16 %v779
      %v1059 = vunpack.c.h.b16 %v779
      %v1060 = vunpack.c.l.b16 %v780
      %v1061 = vunpack.c.h.b16 %v780
      %v1062 = vunpack.c.l.b16 %v781
      %v1063 = vunpack.c.h.b16 %v781
      %v1064 = vunpack.c.l.b16 %v782
      %v1065 = vunpack.c.h.b16 %v782
      %v1066 = vunpack.c.l.b16 %v783
      %v1067 = vunpack.c.h.b16 %v783
      %v1068 = vunpack.c.l.b16 %v784
      %v1069 = vunpack.c.h.b16 %v784
      %v1070 = vunpack.c.l.b16 %v785
      %v1071 = vunpack.c.h.b16 %v785
      %v1072 = vunpack.c.l.b16 %v786
      %v1073 = vunpack.c.h.b16 %v786
      %v1074 = vunpack.c.l.b16 %v787
      %v1075 = vunpack.c.h.b16 %v787
      %v1076 = vunpack.c.l.b16 %v788
      %v1077 = vunpack.c.h.b16 %v788
      %v1078 = vunpack.c.l.b16 %v789
      %v1079 = vunpack.c.h.b16 %v789
      %v1080 = vunpack.c.l.b16 %v790
      %v1081 = vunpack.c.h.b16 %v790
      %v1082 = vunpack.c.l.b16 %v791
      %v1083 = vunpack.c.h.b16 %v791
      %v1084 = vunpack.c.l.b16 %v792
      %v1085 = vunpack.c.h.b16 %v792
      %v1086 = vunpack.c.l.b16 %v793
      %v1087 = vunpack.c.h.b16 %v793
      %v1088 = vunpack.c.l.b16 %v794
      %v1089 = vunpack.c.h.b16 %v794
      %v1090 = vunpack.c.l.b16 %v795
      %v1091 = vunpack.c.h.b16 %v795
      %v1092 = vunpack.c.l.b16 %v796
      %v1093 = vunpack.c.h.b16 %v796
      %v1094 = vunpack.c.l.b16 %v797
      %v1095 = vunpack.c.h.b16 %v797
      %v1096 = vunpack.c.l.b16 %v798
      %v1097 = vunpack.c.h.b16 %v798
      %v1098 = vunpack.c.l.b16 %v799
      %v1099 = vunpack.c.h.b16 %v799
      %v1100 = vunpack.c.l.b16 %v800
      %v1101 = vunpack.c.h.b16 %v800
      %v1102 = vunpack.c.l.b16 %v801
      %v1103 = vunpack.c.h.b16 %v801
      %v1104 = vunpack.c.l.b16 %v802
      %v1105 = vunpack.c.h.b16 %v802
      %v1106 = vunpack.c.l.b16 %v803
      %v1107 = vunpack.c.h.b16 %v803
      %v1108 = vunpack.c.l.b16 %v804
      %v1109 = vunpack.c.h.b16 %v804
      %v1110 = vunpack.c.l.b16 %v805
      %v1111 = vunpack.c.h.b16 %v805
      %v1112 = vpack.c.b16 %v918, %v916
      %v1113 = vpack.c.b16 %v919, %v917
      %v1114 = vpack.c.b16 %v922, %v920
      %v1115 = vpack.c.b16 %v923, %v921
      %v1116 = vpack.c.b16 %v926, %v924
      %v1117 = vpack.c.b16 %v927, %v925
      %v1118 = vpack.c.b16 %v930, %v928
      %v1119 = vpack.c.b16 %v931, %v929
      %v1120 = vpack.c.b16 %v934, %v932
      %v1121 = vpack.c.b16 %v935, %v933
      %v1122 = vpack.c.b16 %v938, %v936
      %v1123 = vpack.c.b16 %v939, %v937
      %v1124 = vpack.c.b16 %v942, %v940
      %v1125 = vpack.c.b16 %v943, %v941
      %v1126 = vpack.c.b16 %v946, %v944
      %v1127 = vpack.c.b16 %v947, %v945
      %v1128 = vpack.c.b16 %v950, %v948
      %v1129 = vpack.c.b16 %v951, %v949
      %v1130 = vpack.c.b16 %v954, %v952
      %v1131 = vpack.c.b16 %v955, %v953
      %v1132 = vpack.c.b16 %v958, %v956
      %v1133 = vpack.c.b16 %v959, %v957
      %v1134 = vpack.c.b16 %v962, %v960
      %v1135 = vpack.c.b16 %v963, %v961
      %v1136 = vpack.c.b16 %v966, %v964
      %v1137 = vpack.c.b16 %v967, %v965
      %v1138 = vpack.c.b16 %v970, %v968
      %v1139 = vpack.c.b16 %v971, %v969
      %v1140 = vpack.c.b16 %v974, %v972
      %v1141 = vpack.c.b16 %v975, %v973
      %v1142 = vpack.c.b16 %v978, %v976
      %v1143 = vpack.c.b16 %v979, %v977
      %v1144 = vpack.c.b16 %v982, %v980
      %v1145 = vpack.c.b16 %v983, %v981
      %v1146 = vpack.c.b16 %v986, %v984
      %v1147 = vpack.c.b16 %v987, %v985
      %v1148 = vpack.c.b16 %v990, %v988
      %v1149 = vpack.c.b16 %v991, %v989
      %v1150 = vpack.c.b16 %v994, %v992
      %v1151 = vpack.c.b16 %v995, %v993
      %v1152 = vpack.c.b16 %v998, %v996
      %v1153 = vpack.c.b16 %v999, %v997
      %v1154 = vpack.c.b16 %v1002, %v1000
      %v1155 = vpack.c.b16 %v1003, %v1001
      %v1156 = vpack.c.b16 %v1006, %v1004
      %v1157 = vpack.c.b16 %v1007, %v1005
      %v1158 = vpack.c.b16 %v1010, %v1008
      %v1159 = vpack.c.b16 %v1011, %v1009
      %v1160 = vpack.c.b16 %v1014, %v1012
      %v1161 = vpack.c.b16 %v1015, %v1013
      %v1162 = vpack.c.b16 %v1018, %v1016
      %v1163 = vpack.c.b16 %v1019, %v1017
      %v1164 = vpack.c.b16 %v1022, %v1020
      %v1165 = vpack.c.b16 %v1023, %v1021
      %v1166 = vpack.c.b16 %v1026, %v1024
      %v1167 = vpack.c.b16 %v1027, %v1025
      %v1168 = vpack.c.b16 %v1030, %v1028
      %v1169 = vpack.c.b16 %v1031, %v1029
      %v1170 = vpack.c.b16 %v1034, %v1032
      %v1171 = vpack.c.b16 %v1035, %v1033
      %v1172 = vpack.c.b16 %v1038, %v1036
      %v1173 = vpack.c.b16 %v1039, %v1037
      %v1174 = vpack.c.b16 %v1042, %v1040
      %v1175 = vpack.c.b16 %v1043, %v1041
      %v1176 = vpack.c.b16 %v1046, %v1044
      %v1177 = vpack.c.b16 %v1047, %v1045
      %v1178 = vpack.c.b16 %v1050, %v1048
      %v1179 = vpack.c.b16 %v1051, %v1049
      %v1180 = vpack.c.b16 %v1054, %v1052
      %v1181 = vpack.c.b16 %v1055, %v1053
      %v1182 = vpack.c.b16 %v1058, %v1056
      %v1183 = vpack.c.b16 %v1059, %v1057
      %v1184 = vpack.c.b16 %v1062, %v1060
      %v1185 = vpack.c.b16 %v1063, %v1061
      %v1186 = vpack.c.b16 %v1066, %v1064
      %v1187 = vpack.c.b16 %v1067, %v1065
      %v1188 = vpack.c.b16 %v1070, %v1068
      %v1189 = vpack.c.b16 %v1071, %v1069
      %v1190 = vpack.c.b16 %v1074, %v1072
      %v1191 = vpack.c.b16 %v1075, %v1073
      %v1192 = vpack.c.b16 %v1078, %v1076
      %v1193 = vpack.c.b16 %v1079, %v1077
      %v1194 = vpack.c.b16 %v1082, %v1080
      %v1195 = vpack.c.b16 %v1083, %v1081
      %v1196 = vpack.c.b16 %v1086, %v1084
      %v1197 = vpack.c.b16 %v1087, %v1085
      %v1198 = vpack.c.b16 %v1090, %v1088
      %v1199 = vpack.c.b16 %v1091, %v1089
      %v1200 = vpack.c.b16 %v1094, %v1092
      %v1201 = vpack.c.b16 %v1095, %v1093
      %v1202 = vpack.c.b16 %v1098, %v1096
      %v1203 = vpack.c.b16 %v1099, %v1097
      %v1204 = vpack.c.b16 %v1102, %v1100
      %v1205 = vpack.c.b16 %v1103, %v1101
      %v1206 = vpack.c.b16 %v1106, %v1104
      %v1207 = vpack.c.b16 %v1107, %v1105
      %v1208 = vpack.c.b16 %v1110, %v1108
      %v1209 = vpack.c.b16 %v1111, %v1109
      %vm1308 = vcmask 130048
      %v1310 = vsel %vm1308, %v658, 0
      %v1313 = vsel %vm1308, %v665, 0
      %v1316 = vsel %vm1308, %v672, 0
      %v1319 = vsel %vm1308, %v679, 0
      %v1322 = vsel %vm1308, %v686, 0
      %v1325 = vsel %vm1308, %v693, 0
      %v1328 = vsel %vm1308, %v700, 0
      %v1331 = vsel %vm1308, %v707, 0
      %1333 = vmatprep.subr.bf16.mxu0 %v1113
      %1334 = vmatpush1.bf16.msra.mxu0 %v1112
      %1335 = vmatprep.subr.bf16.mxu0 %v1115
      %1336 = vmatpush1.bf16.msra.mxu0 %v1114
      %1337 = vmatprep.subr.bf16.mxu0 %v1117
      %1338 = vmatpush1.bf16.msra.mxu0 %v1116
      %1339 = vmatprep.subr.bf16.mxu0 %v1119
      %1340 = vmatpush1.bf16.msra.mxu0 %v1118
      %1341 = vmatprep.subr.bf16.mxu0 %v1121
      %1342 = vmatpush1.bf16.msra.mxu0 %v1120
      %1343 = vmatprep.subr.bf16.mxu0 %v1123
      %1344 = vmatpush1.bf16.msra.mxu0 %v1122
      %1345 = vmatprep.subr.bf16.mxu0 %v1125
      %1346 = vmatpush1.bf16.msra.mxu0 %v1124
      %1347 = vmatprep.subr.bf16.mxu0 %v1127
      %1348 = vmatpush1.bf16.msra.mxu0 %v1126
      %1349 = vmatprep.subr.bf16.mxu0 %v1129
      %1350 = vmatpush1.bf16.msra.mxu0 %v1128
      %1351 = vmatprep.subr.bf16.mxu0 %v1131
      %1352 = vmatpush1.bf16.msra.mxu0 %v1130
      %1353 = vmatprep.subr.bf16.mxu0 %v1133
      %1354 = vmatpush1.bf16.msra.mxu0 %v1132
      %1355 = vmatprep.subr.bf16.mxu0 %v1135
      %1356 = vmatpush1.bf16.msra.mxu0 %v1134
      %1357 = vmatprep.subr.bf16.mxu0 %v1137
      %1358 = vmatpush1.bf16.msra.mxu0 %v1136
      %1359 = vmatprep.subr.bf16.mxu0 %v1139
      %1360 = vmatpush1.bf16.msra.mxu0 %v1138
      %1361 = vmatprep.subr.bf16.mxu0 %v1141
      %1362 = vmatpush1.bf16.msra.mxu0 %v1140
      %1363 = vmatprep.subr.bf16.mxu0 %v1143
      %1364 = vmatpush1.bf16.msra.mxu0 %v1142
      %1365 = vmatprep.mubr.bf16.mxu0 %v653
      %1366 = vmatmul.mubr.bf16.gmra.mrb[0].mxu0 %v652
      %v1367 = vpop.f32.mrb[0].mxu0
      %v1368 = vadd.f32 %v811, %v1367
      %v1369 = vpop.f32.mrb[0].mxu0
      %v1370 = vadd.f32 %v815, %v1369
      %v1371 = vpop.f32.mrb[0].mxu0
      %v1372 = vadd.f32 %v811, %v1371
      %v1373 = vpop.f32.mrb[0].mxu0
      %v1374 = vadd.f32 %v815, %v1373
      %1375 = vmatprep.mubr.bf16.mxu0 %v660
      %1376 = vmatmul.mubr.bf16.gmra.mrb[0].mxu0 %v659
      %v1377 = vpop.f32.mrb[0].mxu0
      %v1378 = vadd.f32 %v811, %v1377
      %v1379 = vpop.f32.mrb[0].mxu0
      %v1380 = vadd.f32 %v815, %v1379
      %v1381 = vpop.f32.mrb[0].mxu0
      %v1382 = vadd.f32 %v811, %v1381
      %v1383 = vpop.f32.mrb[0].mxu0
      %v1384 = vadd.f32 %v815, %v1383
      %1385 = vmatprep.mubr.bf16.mxu0 %v667
      %1386 = vmatmul.mubr.bf16.gmra.mrb[0].mxu0 %v666
      %v1387 = vpop.f32.mrb[0].mxu0
      %v1388 = vadd.f32 %v811, %v1387
      %v1389 = vpop.f32.mrb[0].mxu0
      %v1390 = vadd.f32 %v815, %v1389
      %v1391 = vpop.f32.mrb[0].mxu0
      %v1392 = vadd.f32 %v811, %v1391
      %v1393 = vpop.f32.mrb[0].mxu0
      %v1394 = vadd.f32 %v815, %v1393
      %1395 = vmatprep.mubr.bf16.mxu0 %v674
      %1396 = vmatmul.mubr.bf16.gmra.mrb[0].mxu0 %v673
      %v1397 = vpop.f32.mrb[0].mxu0
      %v1398 = vadd.f32 %v811, %v1397
      %v1399 = vpop.f32.mrb[0].mxu0
      %v1400 = vadd.f32 %v815, %v1399
      %v1401 = vpop.f32.mrb[0].mxu0
      %v1402 = vadd.f32 %v811, %v1401
      %v1403 = vpop.f32.mrb[0].mxu0
      %v1404 = vadd.f32 %v815, %v1403
      %1405 = vmatprep.mubr.bf16.mxu0 %v681
      %1406 = vmatmul.mubr.bf16.gmra.mrb[0].mxu0 %v680
      %v1407 = vpop.f32.mrb[0].mxu0
      %v1408 = vadd.f32 %v811, %v1407
      %v1409 = vpop.f32.mrb[0].mxu0
      %v1410 = vadd.f32 %v815, %v1409
      %v1411 = vpop.f32.mrb[0].mxu0
      %v1412 = vadd.f32 %v811, %v1411
      %v1413 = vpop.f32.mrb[0].mxu0
      %v1414 = vadd.f32 %v815, %v1413
      %1415 = vmatprep.mubr.bf16.mxu0 %v688
      %1416 = vmatmul.mubr.bf16.gmra.mrb[0].mxu0 %v687
      %v1417 = vpop.f32.mrb[0].mxu0
      %v1418 = vadd.f32 %v811, %v1417
      %v1419 = vpop.f32.mrb[0].mxu0
      %v1420 = vadd.f32 %v815, %v1419
      %v1421 = vpop.f32.mrb[0].mxu0
      %v1422 = vadd.f32 %v811, %v1421
      %v1423 = vpop.f32.mrb[0].mxu0
      %v1424 = vadd.f32 %v815, %v1423
      %1425 = vmatprep.mubr.bf16.mxu0 %v695
      %1426 = vmatmul.mubr.bf16.gmra.mrb[0].mxu0 %v694
      %v1427 = vpop.f32.mrb[0].mxu0
      %v1428 = vadd.f32 %v811, %v1427
      %v1429 = vpop.f32.mrb[0].mxu0
      %v1430 = vadd.f32 %v815, %v1429
      %v1431 = vpop.f32.mrb[0].mxu0
      %v1432 = vadd.f32 %v811, %v1431
      %v1433 = vpop.f32.mrb[0].mxu0
      %v1434 = vadd.f32 %v815, %v1433
      %1435 = vmatprep.mubr.bf16.mxu0 %v702
      %1436 = vmatmul.mubr.bf16.gmra.mrb[0].mxu0 %v701
      %v1437 = vpop.f32.mrb[0].mxu0
      %v1438 = vadd.f32 %v811, %v1437
      %v1439 = vpop.f32.mrb[0].mxu0
      %v1440 = vadd.f32 %v815, %v1439
      %v1441 = vpop.f32.mrb[0].mxu0
      %v1442 = vadd.f32 %v811, %v1441
      %v1443 = vpop.f32.mrb[0].mxu0
      %v1444 = vadd.f32 %v815, %v1443
      %1445 = vdwg.mxu0
      %1446 = vmatprep.subr.bf16.mxu0 %v1145
      %1447 = vmatpush1.bf16.msra.mxu0 %v1144
      %1448 = vmatprep.subr.bf16.mxu0 %v1147
      %1449 = vmatpush1.bf16.msra.mxu0 %v1146
      %1450 = vmatprep.subr.bf16.mxu0 %v1149
      %1451 = vmatpush1.bf16.msra.mxu0 %v1148
      %1452 = vmatprep.subr.bf16.mxu0 %v1151
      %1453 = vmatpush1.bf16.msra.mxu0 %v1150
      %1454 = vmatprep.subr.bf16.mxu0 %v1153
      %1455 = vmatpush1.bf16.msra.mxu0 %v1152
      %1456 = vmatprep.subr.bf16.mxu0 %v1155
      %1457 = vmatpush1.bf16.msra.mxu0 %v1154
      %1458 = vmatprep.subr.bf16.mxu0 %v1157
      %1459 = vmatpush1.bf16.msra.mxu0 %v1156
      %1460 = vmatprep.subr.bf16.mxu0 %v1159
      %1461 = vmatpush1.bf16.msra.mxu0 %v1158
      %1462 = vmatprep.subr.bf16.mxu0 %v1161
      %1463 = vmatpush1.bf16.msra.mxu0 %v1160
      %1464 = vmatprep.subr.bf16.mxu0 %v1163
      %1465 = vmatpush1.bf16.msra.mxu0 %v1162
      %1466 = vmatprep.subr.bf16.mxu0 %v1165
      %1467 = vmatpush1.bf16.msra.mxu0 %v1164
      %1468 = vmatprep.subr.bf16.mxu0 %v1167
      %1469 = vmatpush1.bf16.msra.mxu0 %v1166
      %1470 = vmatprep.subr.bf16.mxu0 %v1169
      %1471 = vmatpush1.bf16.msra.mxu0 %v1168
      %1472 = vmatprep.subr.bf16.mxu0 %v1171
      %1473 = vmatpush1.bf16.msra.mxu0 %v1170
      %1474 = vmatprep.subr.bf16.mxu0 %v1173
      %1475 = vmatpush1.bf16.msra.mxu0 %v1172
      %1476 = vmatprep.subr.bf16.mxu0 %v1175
      %1477 = vmatpush1.bf16.msra.mxu0 %v1174
      %1478 = vmatprep.mubr.bf16.mxu0 %v655
      %1479 = vmatmul.mubr.bf16.gmra.mrb[0].mxu0 %v654
      %v1480 = vpop.f32.mrb[0].mxu0
      %v1481 = vadd.f32 %v1368, %v1480
      %v1482 = vpop.f32.mrb[0].mxu0
      %v1483 = vadd.f32 %v1370, %v1482
      %v1484 = vpop.f32.mrb[0].mxu0
      %v1485 = vadd.f32 %v1372, %v1484
      %v1486 = vpop.f32.mrb[0].mxu0
      %v1487 = vadd.f32 %v1374, %v1486
      %1488 = vmatprep.mubr.bf16.mxu0 %v662
      %1489 = vmatmul.mubr.bf16.gmra.mrb[0].mxu0 %v661
      %v1490 = vpop.f32.mrb[0].mxu0
      %v1491 = vadd.f32 %v1378, %v1490
      %v1492 = vpop.f32.mrb[0].mxu0
      %v1493 = vadd.f32 %v1380, %v1492
      %v1494 = vpop.f32.mrb[0].mxu0
      %v1495 = vadd.f32 %v1382, %v1494
      %v1496 = vpop.f32.mrb[0].mxu0
      %v1497 = vadd.f32 %v1384, %v1496
      %1498 = vmatprep.mubr.bf16.mxu0 %v669
      %1499 = vmatmul.mubr.bf16.gmra.mrb[0].mxu0 %v668
      %v1500 = vpop.f32.mrb[0].mxu0
      %v1501 = vadd.f32 %v1388, %v1500
      %v1502 = vpop.f32.mrb[0].mxu0
      %v1503 = vadd.f32 %v1390, %v1502
      %v1504 = vpop.f32.mrb[0].mxu0
      %v1505 = vadd.f32 %v1392, %v1504
      %v1506 = vpop.f32.mrb[0].mxu0
      %v1507 = vadd.f32 %v1394, %v1506
      %1508 = vmatprep.mubr.bf16.mxu0 %v676
      %1509 = vmatmul.mubr.bf16.gmra.mrb[0].mxu0 %v675
      %v1510 = vpop.f32.mrb[0].mxu0
      %v1511 = vadd.f32 %v1398, %v1510
      %v1512 = vpop.f32.mrb[0].mxu0
      %v1513 = vadd.f32 %v1400, %v1512
      %v1514 = vpop.f32.mrb[0].mxu0
      %v1515 = vadd.f32 %v1402, %v1514
      %v1516 = vpop.f32.mrb[0].mxu0
      %v1517 = vadd.f32 %v1404, %v1516
      %1518 = vmatprep.mubr.bf16.mxu0 %v683
      %1519 = vmatmul.mubr.bf16.gmra.mrb[0].mxu0 %v682
      %v1520 = vpop.f32.mrb[0].mxu0
      %v1521 = vadd.f32 %v1408, %v1520
      %v1522 = vpop.f32.mrb[0].mxu0
      %v1523 = vadd.f32 %v1410, %v1522
      %v1524 = vpop.f32.mrb[0].mxu0
      %v1525 = vadd.f32 %v1412, %v1524
      %v1526 = vpop.f32.mrb[0].mxu0
      %v1527 = vadd.f32 %v1414, %v1526
      %1528 = vmatprep.mubr.bf16.mxu0 %v690
      %1529 = vmatmul.mubr.bf16.gmra.mrb[0].mxu0 %v689
      %v1530 = vpop.f32.mrb[0].mxu0
      %v1531 = vadd.f32 %v1418, %v1530
      %v1532 = vpop.f32.mrb[0].mxu0
      %v1533 = vadd.f32 %v1420, %v1532
      %v1534 = vpop.f32.mrb[0].mxu0
      %v1535 = vadd.f32 %v1422, %v1534
      %v1536 = vpop.f32.mrb[0].mxu0
      %v1537 = vadd.f32 %v1424, %v1536
      %1538 = vmatprep.mubr.bf16.mxu0 %v697
      %1539 = vmatmul.mubr.bf16.gmra.mrb[0].mxu0 %v696
      %v1540 = vpop.f32.mrb[0].mxu0
      %v1541 = vadd.f32 %v1428, %v1540
      %v1542 = vpop.f32.mrb[0].mxu0
      %v1543 = vadd.f32 %v1430, %v1542
      %v1544 = vpop.f32.mrb[0].mxu0
      %v1545 = vadd.f32 %v1432, %v1544
      %v1546 = vpop.f32.mrb[0].mxu0
      %v1547 = vadd.f32 %v1434, %v1546
      %1548 = vmatprep.mubr.bf16.mxu0 %v704
      %1549 = vmatmul.mubr.bf16.gmra.mrb[0].mxu0 %v703
      %v1550 = vpop.f32.mrb[0].mxu0
      %v1551 = vadd.f32 %v1438, %v1550
      %v1552 = vpop.f32.mrb[0].mxu0
      %v1553 = vadd.f32 %v1440, %v1552
      %v1554 = vpop.f32.mrb[0].mxu0
      %v1555 = vadd.f32 %v1442, %v1554
      %v1556 = vpop.f32.mrb[0].mxu0
      %v1557 = vadd.f32 %v1444, %v1556
      %1558 = vdwg.mxu0
      %1559 = vmatprep.subr.bf16.mxu0 %v1177
      %1560 = vmatpush1.bf16.msra.mxu0 %v1176
      %1561 = vmatprep.subr.bf16.mxu0 %v1179
      %1562 = vmatpush1.bf16.msra.mxu0 %v1178
      %1563 = vmatprep.subr.bf16.mxu0 %v1181
      %1564 = vmatpush1.bf16.msra.mxu0 %v1180
      %1565 = vmatprep.subr.bf16.mxu0 %v1183
      %1566 = vmatpush1.bf16.msra.mxu0 %v1182
      %1567 = vmatprep.subr.bf16.mxu0 %v1185
      %1568 = vmatpush1.bf16.msra.mxu0 %v1184
      %1569 = vmatprep.subr.bf16.mxu0 %v1187
      %1570 = vmatpush1.bf16.msra.mxu0 %v1186
      %1571 = vmatprep.subr.bf16.mxu0 %v1189
      %1572 = vmatpush1.bf16.msra.mxu0 %v1188
      %1573 = vmatprep.subr.bf16.mxu0 %v1191
      %1574 = vmatpush1.bf16.msra.mxu0 %v1190
      %1575 = vmatprep.subr.bf16.mxu0 %v1193
      %1576 = vmatpush1.bf16.msra.mxu0 %v1192
      %1577 = vmatprep.subr.bf16.mxu0 %v1195
      %1578 = vmatpush1.bf16.msra.mxu0 %v1194
      %1579 = vmatprep.subr.bf16.mxu0 %v1197
      %1580 = vmatpush1.bf16.msra.mxu0 %v1196
      %1581 = vmatprep.subr.bf16.mxu0 %v1199
      %1582 = vmatpush1.bf16.msra.mxu0 %v1198
      %1583 = vmatprep.subr.bf16.mxu0 %v1201
      %1584 = vmatpush1.bf16.msra.mxu0 %v1200
      %1585 = vmatprep.subr.bf16.mxu0 %v1203
      %1586 = vmatpush1.bf16.msra.mxu0 %v1202
      %1587 = vmatprep.subr.bf16.mxu0 %v1205
      %1588 = vmatpush1.bf16.msra.mxu0 %v1204
      %1589 = vmatprep.subr.bf16.mxu0 %v1207
      %1590 = vmatpush1.bf16.msra.mxu0 %v1206
      %1591 = vmatprep.mubr.bf16.mxu0 %v657
      %1592 = vmatmul.mubr.bf16.gmra.mrb[0].mxu0 %v656
      %v1593 = vpop.f32.mrb[0].mxu0
      %v1594 = vadd.f32 %v1481, %v1593
      %v1595 = vpop.f32.mrb[0].mxu0
      %v1596 = vadd.f32 %v1483, %v1595
      %v1597 = vpop.f32.mrb[0].mxu0
      %v1598 = vadd.f32 %v1485, %v1597
      %v1599 = vpop.f32.mrb[0].mxu0
      %v1600 = vadd.f32 %v1487, %v1599
      %1601 = vmatprep.mubr.bf16.mxu0 %v664
      %1602 = vmatmul.mubr.bf16.gmra.mrb[0].mxu0 %v663
      %v1603 = vpop.f32.mrb[0].mxu0
      %v1604 = vadd.f32 %v1491, %v1603
      %v1605 = vpop.f32.mrb[0].mxu0
      %v1606 = vadd.f32 %v1493, %v1605
      %v1607 = vpop.f32.mrb[0].mxu0
      %v1608 = vadd.f32 %v1495, %v1607
      %v1609 = vpop.f32.mrb[0].mxu0
      %v1610 = vadd.f32 %v1497, %v1609
      %1611 = vmatprep.mubr.bf16.mxu0 %v671
      %1612 = vmatmul.mubr.bf16.gmra.mrb[0].mxu0 %v670
      %v1613 = vpop.f32.mrb[0].mxu0
      %v1614 = vadd.f32 %v1501, %v1613
      %v1615 = vpop.f32.mrb[0].mxu0
      %v1616 = vadd.f32 %v1503, %v1615
      %v1617 = vpop.f32.mrb[0].mxu0
      %v1618 = vadd.f32 %v1505, %v1617
      %v1619 = vpop.f32.mrb[0].mxu0
      %v1620 = vadd.f32 %v1507, %v1619
      %1621 = vmatprep.mubr.bf16.mxu0 %v678
      %1622 = vmatmul.mubr.bf16.gmra.mrb[0].mxu0 %v677
      %v1623 = vpop.f32.mrb[0].mxu0
      %v1624 = vadd.f32 %v1511, %v1623
      %v1625 = vpop.f32.mrb[0].mxu0
      %v1626 = vadd.f32 %v1513, %v1625
      %v1627 = vpop.f32.mrb[0].mxu0
      %v1628 = vadd.f32 %v1515, %v1627
      %v1629 = vpop.f32.mrb[0].mxu0
      %v1630 = vadd.f32 %v1517, %v1629
      %1631 = vmatprep.mubr.bf16.mxu0 %v685
      %1632 = vmatmul.mubr.bf16.gmra.mrb[0].mxu0 %v684
      %v1633 = vpop.f32.mrb[0].mxu0
      %v1634 = vadd.f32 %v1521, %v1633
      %v1635 = vpop.f32.mrb[0].mxu0
      %v1636 = vadd.f32 %v1523, %v1635
      %v1637 = vpop.f32.mrb[0].mxu0
      %v1638 = vadd.f32 %v1525, %v1637
      %v1639 = vpop.f32.mrb[0].mxu0
      %v1640 = vadd.f32 %v1527, %v1639
      %1641 = vmatprep.mubr.bf16.mxu0 %v692
      %1642 = vmatmul.mubr.bf16.gmra.mrb[0].mxu0 %v691
      %v1643 = vpop.f32.mrb[0].mxu0
      %v1644 = vadd.f32 %v1531, %v1643
      %v1645 = vpop.f32.mrb[0].mxu0
      %v1646 = vadd.f32 %v1533, %v1645
      %v1647 = vpop.f32.mrb[0].mxu0
      %v1648 = vadd.f32 %v1535, %v1647
      %v1649 = vpop.f32.mrb[0].mxu0
      %v1650 = vadd.f32 %v1537, %v1649
      %1651 = vmatprep.mubr.bf16.mxu0 %v699
      %1652 = vmatmul.mubr.bf16.gmra.mrb[0].mxu0 %v698
      %v1653 = vpop.f32.mrb[0].mxu0
      %v1654 = vadd.f32 %v1541, %v1653
      %v1655 = vpop.f32.mrb[0].mxu0
      %v1656 = vadd.f32 %v1543, %v1655
      %v1657 = vpop.f32.mrb[0].mxu0
      %v1658 = vadd.f32 %v1545, %v1657
      %v1659 = vpop.f32.mrb[0].mxu0
      %v1660 = vadd.f32 %v1547, %v1659
      %1661 = vmatprep.mubr.bf16.mxu0 %v706
      %1662 = vmatmul.mubr.bf16.gmra.mrb[0].mxu0 %v705
      %v1663 = vpop.f32.mrb[0].mxu0
      %v1664 = vadd.f32 %v1551, %v1663
      %v1665 = vpop.f32.mrb[0].mxu0
      %v1666 = vadd.f32 %v1553, %v1665
      %v1667 = vpop.f32.mrb[0].mxu0
      %v1668 = vadd.f32 %v1555, %v1667
      %v1669 = vpop.f32.mrb[0].mxu0
      %v1670 = vadd.f32 %v1557, %v1669
      %1671 = vdwg.mxu0
      %1672 = vmatprep.subr.bf16.mxu0 %v1209
      %1673 = vmatpush1.bf16.msra.mxu0 %v1208
      %1674 = vmatprep.subr.bf16.mxu0 0
      %1675 = vmatpush1.bf16.msra.mxu0 0
      %1676 = vmatprep.subr.bf16.mxu0 0
      %1677 = vmatpush1.bf16.msra.mxu0 0
      %1678 = vmatprep.subr.bf16.mxu0 0
      %1679 = vmatpush1.bf16.msra.mxu0 0
      %1680 = vmatprep.subr.bf16.mxu0 0
      %1681 = vmatpush1.bf16.msra.mxu0 0
      %1682 = vmatprep.subr.bf16.mxu0 0
      %1683 = vmatpush1.bf16.msra.mxu0 0
      %1684 = vmatprep.subr.bf16.mxu0 0
      %1685 = vmatpush1.bf16.msra.mxu0 0
      %1686 = vmatprep.subr.bf16.mxu0 0
      %1687 = vmatpush1.bf16.msra.mxu0 0
      %1688 = vmatprep.subr.bf16.mxu0 0
      %1689 = vmatpush1.bf16.msra.mxu0 0
      %1690 = vmatprep.subr.bf16.mxu0 0
      %1691 = vmatpush1.bf16.msra.mxu0 0
      %1692 = vmatprep.subr.bf16.mxu0 0
      %1693 = vmatpush1.bf16.msra.mxu0 0
      %1694 = vmatprep.subr.bf16.mxu0 0
      %1695 = vmatpush1.bf16.msra.mxu0 0
      %1696 = vmatprep.subr.bf16.mxu0 0
      %1697 = vmatpush1.bf16.msra.mxu0 0
      %1698 = vmatprep.subr.bf16.mxu0 0
      %1699 = vmatpush1.bf16.msra.mxu0 0
      %1700 = vmatprep.subr.bf16.mxu0 0
      %1701 = vmatpush1.bf16.msra.mxu0 0
      %1702 = vmatprep.subr.bf16.mxu0 0
      %1703 = vmatpush1.bf16.msra.mxu0 0
      %1704 = vmatprep.mubr.bf16.mxu0 0
      %1705 = vmatmul.mubr.bf16.gmra.mrb[0].mxu0 %v1310
      %v1706 = vpop.f32.mrb[0].mxu0
      %v1707 = vadd.f32 %v1594, %v1706
      %v1708 = vpop.f32.mrb[0].mxu0
      %v1709 = vadd.f32 %v1596, %v1708
      %v1710 = vpop.f32.mrb[0].mxu0
      %v1711 = vadd.f32 %v1598, %v1710
      %v1712 = vpop.f32.mrb[0].mxu0
      %v1713 = vadd.f32 %v1600, %v1712
      %1714 = vmatprep.mubr.bf16.mxu0 0
      %1715 = vmatmul.mubr.bf16.gmra.mrb[0].mxu0 %v1313
      %v1716 = vpop.f32.mrb[0].mxu0
      %v1717 = vadd.f32 %v1604, %v1716
      %v1718 = vpop.f32.mrb[0].mxu0
      %v1719 = vadd.f32 %v1606, %v1718
      %v1720 = vpop.f32.mrb[0].mxu0
      %v1721 = vadd.f32 %v1608, %v1720
      %v1722 = vpop.f32.mrb[0].mxu0
      %v1723 = vadd.f32 %v1610, %v1722
      %1724 = vmatprep.mubr.bf16.mxu0 0
      %1725 = vmatmul.mubr.bf16.gmra.mrb[0].mxu0 %v1316
      %v1726 = vpop.f32.mrb[0].mxu0
      %v1727 = vadd.f32 %v1614, %v1726
      %v1728 = vpop.f32.mrb[0].mxu0
      %v1729 = vadd.f32 %v1616, %v1728
      %v1730 = vpop.f32.mrb[0].mxu0
      %v1731 = vadd.f32 %v1618, %v1730
      %v1732 = vpop.f32.mrb[0].mxu0
      %v1733 = vadd.f32 %v1620, %v1732
      %1734 = vmatprep.mubr.bf16.mxu0 0
      %1735 = vmatmul.mubr.bf16.gmra.mrb[0].mxu0 %v1319
      %v1736 = vpop.f32.mrb[0].mxu0
      %v1737 = vadd.f32 %v1624, %v1736
      %v1738 = vpop.f32.mrb[0].mxu0
      %v1739 = vadd.f32 %v1626, %v1738
      %v1740 = vpop.f32.mrb[0].mxu0
      %v1741 = vadd.f32 %v1628, %v1740
      %v1742 = vpop.f32.mrb[0].mxu0
      %v1743 = vadd.f32 %v1630, %v1742
      %1744 = vmatprep.mubr.bf16.mxu0 0
      %1745 = vmatmul.mubr.bf16.gmra.mrb[0].mxu0 %v1322
      %v1746 = vpop.f32.mrb[0].mxu0
      %v1747 = vadd.f32 %v1634, %v1746
      %v1748 = vpop.f32.mrb[0].mxu0
      %v1749 = vadd.f32 %v1636, %v1748
      %v1750 = vpop.f32.mrb[0].mxu0
      %v1751 = vadd.f32 %v1638, %v1750
      %v1752 = vpop.f32.mrb[0].mxu0
      %v1753 = vadd.f32 %v1640, %v1752
      %1754 = vmatprep.mubr.bf16.mxu0 0
      %1755 = vmatmul.mubr.bf16.gmra.mrb[0].mxu0 %v1325
      %v1756 = vpop.f32.mrb[0].mxu0
      %v1757 = vadd.f32 %v1644, %v1756
      %v1758 = vpop.f32.mrb[0].mxu0
      %v1759 = vadd.f32 %v1646, %v1758
      %v1760 = vpop.f32.mrb[0].mxu0
      %v1761 = vadd.f32 %v1648, %v1760
      %v1762 = vpop.f32.mrb[0].mxu0
      %v1763 = vadd.f32 %v1650, %v1762
      %1764 = vmatprep.mubr.bf16.mxu0 0
      %1765 = vmatmul.mubr.bf16.gmra.mrb[0].mxu0 %v1328
      %v1766 = vpop.f32.mrb[0].mxu0
      %v1767 = vadd.f32 %v1654, %v1766
      %v1768 = vpop.f32.mrb[0].mxu0
      %v1769 = vadd.f32 %v1656, %v1768
      %v1770 = vpop.f32.mrb[0].mxu0
      %v1771 = vadd.f32 %v1658, %v1770
      %v1772 = vpop.f32.mrb[0].mxu0
      %v1773 = vadd.f32 %v1660, %v1772
      %1774 = vmatprep.mubr.bf16.mxu0 0
      %1775 = vmatmul.mubr.bf16.gmra.mrb[0].mxu0 %v1331
      %v1776 = vpop.f32.mrb[0].mxu0
      %v1777 = vadd.f32 %v1664, %v1776
      %v1778 = vpop.f32.mrb[0].mxu0
      %v1779 = vadd.f32 %v1666, %v1778
      %v1780 = vpop.f32.mrb[0].mxu0
      %v1781 = vadd.f32 %v1668, %v1780
      %v1782 = vpop.f32.mrb[0].mxu0
      %v1783 = vadd.f32 %v1670, %v1782
      %1784 = vdwg.mxu0
      %v1785 = vmax.f32 %v1707, 0.0
      %v1786 = vmax.f32 %v1709, 0.0
      %v1787 = vmax.f32 %v1711, 0.0
      %v1788 = vmax.f32 %v1713, 0.0
      %v1789 = vmax.f32 %v1717, 0.0
      %v1790 = vmax.f32 %v1719, 0.0
      %v1791 = vmax.f32 %v1721, 0.0
      %v1792 = vmax.f32 %v1723, 0.0
      %v1793 = vmax.f32 %v1727, 0.0
      %v1794 = vmax.f32 %v1729, 0.0
      %v1795 = vmax.f32 %v1731, 0.0
      %v1796 = vmax.f32 %v1733, 0.0
      %v1797 = vmax.f32 %v1737, 0.0
      %v1798 = vmax.f32 %v1739, 0.0
      %v1799 = vmax.f32 %v1741, 0.0
      %v1800 = vmax.f32 %v1743, 0.0
      %v1801 = vmax.f32 %v1747, 0.0
      %v1802 = vmax.f32 %v1749, 0.0
      %v1803 = vmax.f32 %v1751, 0.0
      %v1804 = vmax.f32 %v1753, 0.0
      %v1805 = vmax.f32 %v1757, 0.0
      %v1806 = vmax.f32 %v1759, 0.0
      %v1807 = vmax.f32 %v1761, 0.0
      %v1808 = vmax.f32 %v1763, 0.0
      %v1809 = vmax.f32 %v1767, 0.0
      %v1810 = vmax.f32 %v1769, 0.0
      %v1811 = vmax.f32 %v1771, 0.0
      %v1812 = vmax.f32 %v1773, 0.0
      %v1813 = vmax.f32 %v1777, 0.0
      %v1814 = vmax.f32 %v1779, 0.0
      %v1815 = vmax.f32 %v1781, 0.0
      %v1816 = vmax.f32 %v1783, 0.0
      %v1817 = vpack.c.bf16 %v1787, %v1785
      %v1818 = vpack.c.bf16 %v1788, %v1786
      %v1819 = vpack.c.bf16 %v1791, %v1789
      %v1820 = vpack.c.bf16 %v1792, %v1790
      %v1821 = vpack.c.bf16 %v1795, %v1793
      %v1822 = vpack.c.bf16 %v1796, %v1794
      %v1823 = vpack.c.bf16 %v1799, %v1797
      %v1824 = vpack.c.bf16 %v1800, %v1798
      %v1825 = vpack.c.bf16 %v1803, %v1801
      %v1826 = vpack.c.bf16 %v1804, %v1802
      %v1827 = vpack.c.bf16 %v1807, %v1805
      %v1828 = vpack.c.bf16 %v1808, %v1806
      %v1829 = vpack.c.bf16 %v1811, %v1809
      %v1830 = vpack.c.bf16 %v1812, %v1810
      %v1831 = vpack.c.bf16 %v1815, %v1813
      %v1832 = vpack.c.bf16 %v1816, %v1814
      %v1833 = vld [vmem:[%s4] sm:$0xf]
      %v1834 = vld [vmem:[%s4 + $0x4] sm:$0xf]
      %v1835 = vld [vmem:[%s4 + $0x8] sm:$0xf]
      %v1836 = vld [vmem:[%s4 + $0xc] sm:$0xf]
      %v1837 = vld [vmem:[%s4 + $0x10] sm:$0xf]
      %v1838 = vld [vmem:[%s4 + $0x14] sm:$0xf]
      %v1839 = vld [vmem:[%s4 + $0x18] sm:$0xf]
      %v1840 = vld [vmem:[%s4 + $0x1c] sm:$0xf]
      %v1841 = vld [vmem:[%s4 + $0x20] sm:$0xf]
      %v1842 = vld [vmem:[%s4 + $0x24] sm:$0xf]
      %v1843 = vld [vmem:[%s4 + $0x28] sm:$0xf]
      %v1844 = vld [vmem:[%s4 + $0x2c] sm:$0xf]
      %v1845 = vld [vmem:[%s4 + $0x30] sm:$0xf]
      %v1846 = vld [vmem:[%s4 + $0x34] sm:$0xf]
      %v1847 = vld [vmem:[%s4 + $0x38] sm:$0xf]
      %v1848 = vld [vmem:[%s4 + $0x3c] sm:$0xf]
      %v1849 = vld [vmem:[%s4 + $0x40] sm:$0xf]
      %v1850 = vld [vmem:[%s4 + $0x44] sm:$0xf]
      %v1851 = vld [vmem:[%s4 + $0x48] sm:$0xf]
      %v1852 = vld [vmem:[%s4 + $0x4c] sm:$0xf]
      %v1853 = vld [vmem:[%s4 + $0x50] sm:$0xf]
      %v1854 = vld [vmem:[%s4 + $0x54] sm:$0xf]
      %v1855 = vld [vmem:[%s4 + $0x58] sm:$0xf]
      %v1856 = vld [vmem:[%s4 + $0x5c] sm:$0xf]
      %v1857 = vld [vmem:[%s4 + $0x60] sm:$0xf]
      %v1858 = vld [vmem:[%s4 + $0x64] sm:$0xf]
      %v1859 = vld [vmem:[%s4 + $0x68] sm:$0xf]
      %v1860 = vld [vmem:[%s4 + $0x6c] sm:$0xf]
      %v1861 = vld [vmem:[%s4 + $0x70] sm:$0xf]
      %v1862 = vld [vmem:[%s4 + $0x74] sm:$0xf]
      %v1863 = vld [vmem:[%s4 + $0x78] sm:$0xf]
      %v1864 = vld [vmem:[%s4 + $0x7c] sm:$0xf]
      %v1865 = vld [vmem:[%s5] sm:$0x1]
      %v1867 = vlaneseq
      %v1868 = vshrl.u32 %v1867, 7
      %v1869 = vsub.s32 0, %v1868
      %v1870 = vrot.slane %v1865, %v1869
      %v1904 = vunpack.c.l.b16 %v1833
      %v1905 = vunpack.c.l.b16 %v1834
      %v1906 = vunpack.c.l.b16 %v1835
      %v1907 = vunpack.c.l.b16 %v1836
      %v1908 = vunpack.c.l.b16 %v1837
      %v1909 = vunpack.c.l.b16 %v1838
      %v1910 = vunpack.c.l.b16 %v1839
      %v1911 = vunpack.c.l.b16 %v1840
      %v1912 = vunpack.c.l.b16 %v1841
      %v1913 = vunpack.c.l.b16 %v1842
      %v1914 = vunpack.c.l.b16 %v1843
      %v1915 = vunpack.c.l.b16 %v1844
      %v1916 = vunpack.c.l.b16 %v1845
      %v1917 = vunpack.c.l.b16 %v1846
      %v1918 = vunpack.c.l.b16 %v1847
      %v1919 = vunpack.c.l.b16 %v1848
      %v1920 = vunpack.c.l.b16 %v1849
      %v1921 = vunpack.c.l.b16 %v1850
      %v1922 = vunpack.c.l.b16 %v1851
      %v1923 = vunpack.c.l.b16 %v1852
      %v1924 = vunpack.c.l.b16 %v1853
      %v1925 = vunpack.c.l.b16 %v1854
      %v1926 = vunpack.c.l.b16 %v1855
      %v1927 = vunpack.c.l.b16 %v1856
      %v1928 = vunpack.c.l.b16 %v1857
      %v1929 = vunpack.c.l.b16 %v1858
      %v1930 = vunpack.c.l.b16 %v1859
      %v1931 = vunpack.c.l.b16 %v1860
      %v1932 = vunpack.c.l.b16 %v1861
      %v1933 = vunpack.c.l.b16 %v1862
      %v1934 = vunpack.c.l.b16 %v1863
      %v1935 = vunpack.c.l.b16 %v1864
      %v1936 = vpack.c.b16 %v1905, %v1904
      %v1937 = vpack.c.b16 %v1907, %v1906
      %v1938 = vpack.c.b16 %v1909, %v1908
      %v1939 = vpack.c.b16 %v1911, %v1910
      %v1940 = vpack.c.b16 %v1913, %v1912
      %v1941 = vpack.c.b16 %v1915, %v1914
      %v1942 = vpack.c.b16 %v1917, %v1916
      %v1943 = vpack.c.b16 %v1919, %v1918
      %v1944 = vpack.c.b16 %v1921, %v1920
      %v1945 = vpack.c.b16 %v1923, %v1922
      %v1946 = vpack.c.b16 %v1925, %v1924
      %v1947 = vpack.c.b16 %v1927, %v1926
      %v1948 = vpack.c.b16 %v1929, %v1928
      %v1949 = vpack.c.b16 %v1931, %v1930
      %v1950 = vpack.c.b16 %v1933, %v1932
      %v1951 = vpack.c.b16 %v1935, %v1934
      %1968 = vmatprep.subr.bf16.mxu0 0
      %1969 = vmatpush1.bf16.msra.mxu0 %v1936
      %1970 = vmatprep.subr.bf16.mxu0 0
      %1971 = vmatpush1.bf16.msra.mxu0 %v1937
      %1972 = vmatprep.subr.bf16.mxu0 0
      %1973 = vmatpush1.bf16.msra.mxu0 %v1938
      %1974 = vmatprep.subr.bf16.mxu0 0
      %1975 = vmatpush1.bf16.msra.mxu0 %v1939
      %1976 = vmatprep.subr.bf16.mxu0 0
      %1977 = vmatpush1.bf16.msra.mxu0 %v1940
      %1978 = vmatprep.subr.bf16.mxu0 0
      %1979 = vmatpush1.bf16.msra.mxu0 %v1941
      %1980 = vmatprep.subr.bf16.mxu0 0
      %1981 = vmatpush1.bf16.msra.mxu0 %v1942
      %1982 = vmatprep.subr.bf16.mxu0 0
      %1983 = vmatpush1.bf16.msra.mxu0 %v1943
      %1984 = vmatprep.subr.bf16.mxu0 0
      %1985 = vmatpush1.bf16.msra.mxu0 %v1944
      %1986 = vmatprep.subr.bf16.mxu0 0
      %1987 = vmatpush1.bf16.msra.mxu0 %v1945
      %1988 = vmatprep.subr.bf16.mxu0 0
      %1989 = vmatpush1.bf16.msra.mxu0 %v1946
      %1990 = vmatprep.subr.bf16.mxu0 0
      %1991 = vmatpush1.bf16.msra.mxu0 %v1947
      %1992 = vmatprep.subr.bf16.mxu0 0
      %1993 = vmatpush1.bf16.msra.mxu0 %v1948
      %1994 = vmatprep.subr.bf16.mxu0 0
      %1995 = vmatpush1.bf16.msra.mxu0 %v1949
      %1996 = vmatprep.subr.bf16.mxu0 0
      %1997 = vmatpush1.bf16.msra.mxu0 %v1950
      %1998 = vmatprep.subr.bf16.mxu0 0
      %1999 = vmatpush1.bf16.msra.mxu0 %v1951
      %2000 = vmatprep.mubr.bf16.mxu0 %v1818
      %2001 = vmatmul.mubr.bf16.gmra.mrb[0].mxu0 %v1817
      %v2002 = vpop.f32.mrb[0].mxu0
      %v2003 = vadd.f32 %v1870, %v2002
      %v2004 = vpop.f32.mrb[0].mxu0
      %v2005 = vpop.f32.mrb[0].mxu0
      %v2006 = vadd.f32 %v1870, %v2005
      %v2007 = vpop.f32.mrb[0].mxu0
      %2008 = vmatprep.mubr.bf16.mxu0 %v1820
      %2009 = vmatmul.mubr.bf16.gmra.mrb[0].mxu0 %v1819
      %v2010 = vpop.f32.mrb[0].mxu0
      %v2011 = vadd.f32 %v1870, %v2010
      %v2012 = vpop.f32.mrb[0].mxu0
      %v2013 = vpop.f32.mrb[0].mxu0
      %v2014 = vadd.f32 %v1870, %v2013
      %v2015 = vpop.f32.mrb[0].mxu0
      %2016 = vmatprep.mubr.bf16.mxu0 %v1822
      %2017 = vmatmul.mubr.bf16.gmra.mrb[0].mxu0 %v1821
      %v2018 = vpop.f32.mrb[0].mxu0
      %v2019 = vadd.f32 %v1870, %v2018
      %v2020 = vpop.f32.mrb[0].mxu0
      %v2021 = vpop.f32.mrb[0].mxu0
      %v2022 = vadd.f32 %v1870, %v2021
      %v2023 = vpop.f32.mrb[0].mxu0
      %2024 = vmatprep.mubr.bf16.mxu0 %v1824
      %2025 = vmatmul.mubr.bf16.gmra.mrb[0].mxu0 %v1823
      %v2026 = vpop.f32.mrb[0].mxu0
      %v2027 = vadd.f32 %v1870, %v2026
      %v2028 = vpop.f32.mrb[0].mxu0
      %v2029 = vpop.f32.mrb[0].mxu0
      %v2030 = vadd.f32 %v1870, %v2029
      %v2031 = vpop.f32.mrb[0].mxu0
      %2032 = vmatprep.mubr.bf16.mxu0 %v1826
      %2033 = vmatmul.mubr.bf16.gmra.mrb[0].mxu0 %v1825
      %v2034 = vpop.f32.mrb[0].mxu0
      %v2035 = vadd.f32 %v1870, %v2034
      %v2036 = vpop.f32.mrb[0].mxu0
      %v2037 = vpop.f32.mrb[0].mxu0
      %v2038 = vadd.f32 %v1870, %v2037
      %v2039 = vpop.f32.mrb[0].mxu0
      %2040 = vmatprep.mubr.bf16.mxu0 %v1828
      %2041 = vmatmul.mubr.bf16.gmra.mrb[0].mxu0 %v1827
      %v2042 = vpop.f32.mrb[0].mxu0
      %v2043 = vadd.f32 %v1870, %v2042
      %v2044 = vpop.f32.mrb[0].mxu0
      %v2045 = vpop.f32.mrb[0].mxu0
      %v2046 = vadd.f32 %v1870, %v2045
      %v2047 = vpop.f32.mrb[0].mxu0
      %2048 = vmatprep.mubr.bf16.mxu0 %v1830
      %2049 = vmatmul.mubr.bf16.gmra.mrb[0].mxu0 %v1829
      %v2050 = vpop.f32.mrb[0].mxu0
      %v2051 = vadd.f32 %v1870, %v2050
      %v2052 = vpop.f32.mrb[0].mxu0
      %v2053 = vpop.f32.mrb[0].mxu0
      %v2054 = vadd.f32 %v1870, %v2053
      %v2055 = vpop.f32.mrb[0].mxu0
      %2056 = vmatprep.mubr.bf16.mxu0 %v1832
      %2057 = vmatmul.mubr.bf16.gmra.mrb[0].mxu0 %v1831
      %v2058 = vpop.f32.mrb[0].mxu0
      %v2059 = vadd.f32 %v1870, %v2058
      %v2060 = vpop.f32.mrb[0].mxu0
      %v2061 = vpop.f32.mrb[0].mxu0
      %v2062 = vadd.f32 %v1870, %v2061
      %v2063 = vpop.f32.mrb[0].mxu0
      %2064 = vdwg.mxu0
      %v2065 = vmax.f32 %v2003, 0.0
      %v2066 = vmax.f32 %v2006, 0.0
      %v2067 = vmax.f32 %v2011, 0.0
      %v2068 = vmax.f32 %v2014, 0.0
      %v2069 = vmax.f32 %v2019, 0.0
      %v2070 = vmax.f32 %v2022, 0.0
      %v2071 = vmax.f32 %v2027, 0.0
      %v2072 = vmax.f32 %v2030, 0.0
      %v2073 = vmax.f32 %v2035, 0.0
      %v2074 = vmax.f32 %v2038, 0.0
      %v2075 = vmax.f32 %v2043, 0.0
      %v2076 = vmax.f32 %v2046, 0.0
      %v2077 = vmax.f32 %v2051, 0.0
      %v2078 = vmax.f32 %v2054, 0.0
      %v2079 = vmax.f32 %v2059, 0.0
      %v2080 = vmax.f32 %v2062, 0.0
      %v2081 = vpack.c.bf16 %v2066, %v2065
      %v2082 = vpack.c.bf16 %v2068, %v2067
      %v2083 = vpack.c.bf16 %v2070, %v2069
      %v2084 = vpack.c.bf16 %v2072, %v2071
      %v2085 = vpack.c.bf16 %v2074, %v2073
      %v2086 = vpack.c.bf16 %v2076, %v2075
      %v2087 = vpack.c.bf16 %v2078, %v2077
      %v2088 = vpack.c.bf16 %v2080, %v2079
      %v2089 = vld [vmem:[%s6] sm:$0xf]
      %v2090 = vld [vmem:[%s6 + $0x4] sm:$0xf]
      %v2091 = vld [vmem:[%s6 + $0x8] sm:$0xf]
      %v2092 = vld [vmem:[%s6 + $0xc] sm:$0xf]
      %v2093 = vld [vmem:[%s6 + $0x10] sm:$0xf]
      %v2094 = vld [vmem:[%s6 + $0x14] sm:$0xf]
      %v2095 = vld [vmem:[%s6 + $0x18] sm:$0xf]
      %v2096 = vld [vmem:[%s6 + $0x1c] sm:$0xf]
      %v2097 = vld [vmem:[%s6 + $0x20] sm:$0xf]
      %v2098 = vld [vmem:[%s6 + $0x24] sm:$0xf]
      %v2099 = vld [vmem:[%s6 + $0x28] sm:$0xf]
      %v2100 = vld [vmem:[%s6 + $0x2c] sm:$0xf]
      %v2101 = vld [vmem:[%s6 + $0x30] sm:$0xf]
      %v2102 = vld [vmem:[%s6 + $0x34] sm:$0xf]
      %v2103 = vld [vmem:[%s6 + $0x38] sm:$0xf]
      %v2104 = vld [vmem:[%s6 + $0x3c] sm:$0xf]
      %v2105 = vld [vmem:[%s7] sm:$0x1]
      %v2107 = vlaneseq
      %v2108 = vshrl.u32 %v2107, 7
      %v2109 = vsub.s32 0, %v2108
      %v2110 = vrot.slane %v2105, %v2109
      %v2128 = vunpack.c.l.b16 %v2089
      %v2129 = vunpack.c.l.b16 %v2090
      %v2130 = vunpack.c.l.b16 %v2091
      %v2131 = vunpack.c.l.b16 %v2092
      %v2132 = vunpack.c.l.b16 %v2093
      %v2133 = vunpack.c.l.b16 %v2094
      %v2134 = vunpack.c.l.b16 %v2095
      %v2135 = vunpack.c.l.b16 %v2096
      %v2136 = vunpack.c.l.b16 %v2097
      %v2137 = vunpack.c.l.b16 %v2098
      %v2138 = vunpack.c.l.b16 %v2099
      %v2139 = vunpack.c.l.b16 %v2100
      %v2140 = vunpack.c.l.b16 %v2101
      %v2141 = vunpack.c.l.b16 %v2102
      %v2142 = vunpack.c.l.b16 %v2103
      %v2143 = vunpack.c.l.b16 %v2104
      %v2144 = vpack.c.b16 %v2129, %v2128
      %v2145 = vpack.c.b16 %v2131, %v2130
      %v2146 = vpack.c.b16 %v2133, %v2132
      %v2147 = vpack.c.b16 %v2135, %v2134
      %v2148 = vpack.c.b16 %v2137, %v2136
      %v2149 = vpack.c.b16 %v2139, %v2138
      %v2150 = vpack.c.b16 %v2141, %v2140
      %v2151 = vpack.c.b16 %v2143, %v2142
      %2160 = vmatprep.subr.bf16.mxu0 0
      %2161 = vmatpush1.bf16.msra.mxu0 %v2144
      %2162 = vmatprep.subr.bf16.mxu0 0
      %2163 = vmatpush1.bf16.msra.mxu0 %v2145
      %2164 = vmatprep.subr.bf16.mxu0 0
      %2165 = vmatpush1.bf16.msra.mxu0 %v2146
      %2166 = vmatprep.subr.bf16.mxu0 0
      %2167 = vmatpush1.bf16.msra.mxu0 %v2147
      %2168 = vmatprep.subr.bf16.mxu0 0
      %2169 = vmatpush1.bf16.msra.mxu0 %v2148
      %2170 = vmatprep.subr.bf16.mxu0 0
      %2171 = vmatpush1.bf16.msra.mxu0 %v2149
      %2172 = vmatprep.subr.bf16.mxu0 0
      %2173 = vmatpush1.bf16.msra.mxu0 %v2150
      %2174 = vmatprep.subr.bf16.mxu0 0
      %2175 = vmatpush1.bf16.msra.mxu0 %v2151
      %2176 = vmatprep.subr.bf16.mxu0 0
      %2177 = vmatpush1.bf16.msra.mxu0 0
      %2178 = vmatprep.subr.bf16.mxu0 0
      %2179 = vmatpush1.bf16.msra.mxu0 0
      %2180 = vmatprep.subr.bf16.mxu0 0
      %2181 = vmatpush1.bf16.msra.mxu0 0
      %2182 = vmatprep.subr.bf16.mxu0 0
      %2183 = vmatpush1.bf16.msra.mxu0 0
      %2184 = vmatprep.subr.bf16.mxu0 0
      %2185 = vmatpush1.bf16.msra.mxu0 0
      %2186 = vmatprep.subr.bf16.mxu0 0
      %2187 = vmatpush1.bf16.msra.mxu0 0
      %2188 = vmatprep.subr.bf16.mxu0 0
      %2189 = vmatpush1.bf16.msra.mxu0 0
      %2190 = vmatprep.subr.bf16.mxu0 0
      %2191 = vmatpush1.bf16.msra.mxu0 0
      %2192 = vmatprep.mubr.bf16.mxu0 0
      %2193 = vmatmul.mubr.bf16.gmra.mrb[0].mxu0 %v2081
      %v2194 = vpop.f32.mrb[0].mxu0
      %v2195 = vadd.f32 %v2110, %v2194
      %v2196 = vpop.f32.mrb[0].mxu0
      %v2197 = vpop.f32.mrb[0].mxu0
      %v2198 = vadd.f32 %v2110, %v2197
      %v2199 = vpop.f32.mrb[0].mxu0
      %2200 = vmatprep.mubr.bf16.mxu0 0
      %2201 = vmatmul.mubr.bf16.gmra.mrb[0].mxu0 %v2082
      %v2202 = vpop.f32.mrb[0].mxu0
      %v2203 = vadd.f32 %v2110, %v2202
      %v2204 = vpop.f32.mrb[0].mxu0
      %v2205 = vpop.f32.mrb[0].mxu0
      %v2206 = vadd.f32 %v2110, %v2205
      %v2207 = vpop.f32.mrb[0].mxu0
      %2208 = vmatprep.mubr.bf16.mxu0 0
      %2209 = vmatmul.mubr.bf16.gmra.mrb[0].mxu0 %v2083
      %v2210 = vpop.f32.mrb[0].mxu0
      %v2211 = vadd.f32 %v2110, %v2210
      %v2212 = vpop.f32.mrb[0].mxu0
      %v2213 = vpop.f32.mrb[0].mxu0
      %v2214 = vadd.f32 %v2110, %v2213
      %v2215 = vpop.f32.mrb[0].mxu0
      %2216 = vmatprep.mubr.bf16.mxu0 0
      %2217 = vmatmul.mubr.bf16.gmra.mrb[0].mxu0 %v2084
      %v2218 = vpop.f32.mrb[0].mxu0
      %v2219 = vadd.f32 %v2110, %v2218
      %v2220 = vpop.f32.mrb[0].mxu0
      %v2221 = vpop.f32.mrb[0].mxu0
      %v2222 = vadd.f32 %v2110, %v2221
      %v2223 = vpop.f32.mrb[0].mxu0
      %2224 = vmatprep.mubr.bf16.mxu0 0
      %2225 = vmatmul.mubr.bf16.gmra.mrb[0].mxu0 %v2085
      %v2226 = vpop.f32.mrb[0].mxu0
      %v2227 = vadd.f32 %v2110, %v2226
      %v2228 = vpop.f32.mrb[0].mxu0
      %v2229 = vpop.f32.mrb[0].mxu0
      %v2230 = vadd.f32 %v2110, %v2229
      %v2231 = vpop.f32.mrb[0].mxu0
      %2232 = vmatprep.mubr.bf16.mxu0 0
      %2233 = vmatmul.mubr.bf16.gmra.mrb[0].mxu0 %v2086
      %v2234 = vpop.f32.mrb[0].mxu0
      %v2235 = vadd.f32 %v2110, %v2234
      %v2236 = vpop.f32.mrb[0].mxu0
      %v2237 = vpop.f32.mrb[0].mxu0
      %v2238 = vadd.f32 %v2110, %v2237
      %v2239 = vpop.f32.mrb[0].mxu0
      %2240 = vmatprep.mubr.bf16.mxu0 0
      %2241 = vmatmul.mubr.bf16.gmra.mrb[0].mxu0 %v2087
      %v2242 = vpop.f32.mrb[0].mxu0
      %v2243 = vadd.f32 %v2110, %v2242
      %v2244 = vpop.f32.mrb[0].mxu0
      %v2245 = vpop.f32.mrb[0].mxu0
      %v2246 = vadd.f32 %v2110, %v2245
      %v2247 = vpop.f32.mrb[0].mxu0
      %2248 = vmatprep.mubr.bf16.mxu0 0
      %2249 = vmatmul.mubr.bf16.gmra.mrb[0].mxu0 %v2088
      %v2250 = vpop.f32.mrb[0].mxu0
      %v2251 = vadd.f32 %v2110, %v2250
      %v2252 = vpop.f32.mrb[0].mxu0
      %v2253 = vpop.f32.mrb[0].mxu0
      %v2254 = vadd.f32 %v2110, %v2253
      %v2255 = vpop.f32.mrb[0].mxu0
      %2256 = vdwg.mxu0
      %2257 = vst [vmem:[%s537] sm:$0xff] %v2195
      %2258 = vst [vmem:[%s537 + $0x8] sm:$0xff] %v2198
      %2259 = vst [vmem:[%s537 + $0x10] sm:$0xff] %v2203
      %2260 = vst [vmem:[%s537 + $0x18] sm:$0xff] %v2206
      %2261 = vst [vmem:[%s537 + $0x20] sm:$0xff] %v2211
      %2262 = vst [vmem:[%s537 + $0x28] sm:$0xff] %v2214
      %2263 = vst [vmem:[%s537 + $0x30] sm:$0xff] %v2219
      %2264 = vst [vmem:[%s537 + $0x38] sm:$0xff] %v2222
      %2265 = vst [vmem:[%s537 + $0x40] sm:$0xff] %v2227
      %2266 = vst [vmem:[%s537 + $0x48] sm:$0xff] %v2230
      %2267 = vst [vmem:[%s537 + $0x50] sm:$0xff] %v2235
      %2268 = vst [vmem:[%s537 + $0x58] sm:$0xff] %v2238
      %2269 = vst [vmem:[%s537 + $0x60] sm:$0xff] %v2243
      %2270 = vst [vmem:[%s537 + $0x68] sm:$0xff] %v2246
      %2271 = vst [vmem:[%s537 + $0x70] sm:$0xff] %v2251
      %2272 = vst [vmem:[%s537 + $0x78] sm:$0xff] %v2254
      %v2273 = vmul.f32 %v2195, 0.5
      %v2274 = vmul.f32 %v2198, 0.5
      %v2275 = vmul.f32 %v2203, 0.5
      %v2276 = vmul.f32 %v2206, 0.5
      %v2277 = vmul.f32 %v2211, 0.5
      %v2278 = vmul.f32 %v2214, 0.5
      %v2279 = vmul.f32 %v2219, 0.5
      %v2280 = vmul.f32 %v2222, 0.5
      %v2281 = vmul.f32 %v2227, 0.5
      %v2282 = vmul.f32 %v2230, 0.5
      %v2283 = vmul.f32 %v2235, 0.5
      %v2284 = vmul.f32 %v2238, 0.5
      %v2285 = vmul.f32 %v2243, 0.5
      %v2286 = vmul.f32 %v2246, 0.5
      %v2287 = vmul.f32 %v2251, 0.5
      %v2288 = vmul.f32 %v2254, 0.5
      %v2289 = vmul.f32 %v2273, 1.442695
      %v2290 = vpow.pop %v2289
      %v2291 = vmul.f32 %v2274, 1.442695
      %v2292 = vpow.pop %v2291
      %v2293 = vmul.f32 %v2275, 1.442695
      %v2294 = vpow.pop %v2293
      %v2295 = vmul.f32 %v2276, 1.442695
      %v2296 = vpow.pop %v2295
      %v2297 = vmul.f32 %v2277, 1.442695
      %v2298 = vpow.pop %v2297
      %v2299 = vmul.f32 %v2278, 1.442695
      %v2300 = vpow.pop %v2299
      %v2301 = vmul.f32 %v2279, 1.442695
      %v2302 = vpow.pop %v2301
      %v2303 = vmul.f32 %v2280, 1.442695
      %v2304 = vpow.pop %v2303
      %v2305 = vmul.f32 %v2281, 1.442695
      %v2306 = vpow.pop %v2305
      %v2307 = vmul.f32 %v2282, 1.442695
      %v2308 = vpow.pop %v2307
      %v2309 = vmul.f32 %v2283, 1.442695
      %v2310 = vpow.pop %v2309
      %v2311 = vmul.f32 %v2284, 1.442695
      %v2312 = vpow.pop %v2311
      %v2313 = vmul.f32 %v2285, 1.442695
      %v2314 = vpow.pop %v2313
      %v2315 = vmul.f32 %v2286, 1.442695
      %v2316 = vpow.pop %v2315
      %v2317 = vmul.f32 %v2287, 1.442695
      %v2318 = vpow.pop %v2317
      %v2319 = vmul.f32 %v2288, 1.442695
      %v2320 = vpow.pop %v2319
      %v2321 = vld [vmem:[%s524] sm:$0xff]
      %v2322 = vld [vmem:[%s524 + $0x8] sm:$0xff]
      %v2323 = vld [vmem:[%s524 + $0x10] sm:$0xff]
      %v2324 = vld [vmem:[%s524 + $0x18] sm:$0xff]
      %v2325 = vld [vmem:[%s524 + $0x20] sm:$0xff]
      %v2326 = vld [vmem:[%s524 + $0x28] sm:$0xff]
      %v2327 = vld [vmem:[%s524 + $0x30] sm:$0xff]
      %v2328 = vld [vmem:[%s524 + $0x38] sm:$0xff]
      %v2329 = vld [vmem:[%s524 + $0x40] sm:$0xff]
      %v2330 = vld [vmem:[%s524 + $0x48] sm:$0xff]
      %v2331 = vld [vmem:[%s524 + $0x50] sm:$0xff]
      %v2332 = vld [vmem:[%s524 + $0x58] sm:$0xff]
      %v2333 = vld [vmem:[%s524 + $0x60] sm:$0xff]
      %v2334 = vld [vmem:[%s524 + $0x68] sm:$0xff]
      %v2335 = vld [vmem:[%s524 + $0x70] sm:$0xff]
      %v2336 = vld [vmem:[%s524 + $0x78] sm:$0xff]
      %2353 = vrot.lane.b32.xlu0 %v2290, 96
      %v2354 = vpop.permute.xlu0 %2353
      %2355 = vrot.lane.b32.xlu0 %v2292, 96
      %v2356 = vpop.permute.xlu0 %2355
      %2357 = vrot.lane.b32.xlu0 %v2294, 96
      %v2358 = vpop.permute.xlu0 %2357
      %2359 = vrot.lane.b32.xlu0 %v2296, 96
      %v2360 = vpop.permute.xlu0 %2359
      %2361 = vrot.lane.b32.xlu0 %v2298, 96
      %v2362 = vpop.permute.xlu0 %2361
      %2363 = vrot.lane.b32.xlu0 %v2300, 96
      %v2364 = vpop.permute.xlu0 %2363
      %2365 = vrot.lane.b32.xlu0 %v2302, 96
      %v2366 = vpop.permute.xlu0 %2365
      %2367 = vrot.lane.b32.xlu0 %v2304, 96
      %v2368 = vpop.permute.xlu0 %2367
      %2369 = vrot.lane.b32.xlu0 %v2306, 96
      %v2370 = vpop.permute.xlu0 %2369
      %2371 = vrot.lane.b32.xlu0 %v2308, 96
      %v2372 = vpop.permute.xlu0 %2371
      %2373 = vrot.lane.b32.xlu0 %v2310, 96
      %v2374 = vpop.permute.xlu0 %2373
      %2375 = vrot.lane.b32.xlu0 %v2312, 96
      %v2376 = vpop.permute.xlu0 %2375
      %2377 = vrot.lane.b32.xlu0 %v2314, 96
      %v2378 = vpop.permute.xlu0 %2377
      %2379 = vrot.lane.b32.xlu0 %v2316, 96
      %v2380 = vpop.permute.xlu0 %2379
      %2381 = vrot.lane.b32.xlu0 %v2318, 96
      %v2382 = vpop.permute.xlu0 %2381
      %2383 = vrot.lane.b32.xlu0 %v2320, 96
      %v2384 = vpop.permute.xlu0 %2383
      %v2401 = vmul.f32 %v2321, %v2354
      %v2402 = vmul.f32 %v2322, %v2356
      %v2403 = vmul.f32 %v2323, %v2358
      %v2404 = vmul.f32 %v2324, %v2360
      %v2405 = vmul.f32 %v2325, %v2362
      %v2406 = vmul.f32 %v2326, %v2364
      %v2407 = vmul.f32 %v2327, %v2366
      %v2408 = vmul.f32 %v2328, %v2368
      %v2409 = vmul.f32 %v2329, %v2370
      %v2410 = vmul.f32 %v2330, %v2372
      %v2411 = vmul.f32 %v2331, %v2374
      %v2412 = vmul.f32 %v2332, %v2376
      %v2413 = vmul.f32 %v2333, %v2378
      %v2414 = vmul.f32 %v2334, %v2380
      %v2415 = vmul.f32 %v2335, %v2382
      %v2416 = vmul.f32 %v2336, %v2384
      %v2417 = vadd.f32 %v2401, %v2195
      %v2418 = vadd.f32 %v2402, %v2198
      %v2419 = vadd.f32 %v2403, %v2203
      %v2420 = vadd.f32 %v2404, %v2206
      %v2421 = vadd.f32 %v2405, %v2211
      %v2422 = vadd.f32 %v2406, %v2214
      %v2423 = vadd.f32 %v2407, %v2219
      %v2424 = vadd.f32 %v2408, %v2222
      %v2425 = vadd.f32 %v2409, %v2227
      %v2426 = vadd.f32 %v2410, %v2230
      %v2427 = vadd.f32 %v2411, %v2235
      %v2428 = vadd.f32 %v2412, %v2238
      %v2429 = vadd.f32 %v2413, %v2243
      %v2430 = vadd.f32 %v2414, %v2246
      %v2431 = vadd.f32 %v2415, %v2251
      %v2432 = vadd.f32 %v2416, %v2254
      %v2433 = vpack.c.bf16 %v2418, %v2417
      %v2434 = vpack.c.bf16 %v2420, %v2419
      %v2435 = vpack.c.bf16 %v2422, %v2421
      %v2436 = vpack.c.bf16 %v2424, %v2423
      %v2437 = vpack.c.bf16 %v2426, %v2425
      %v2438 = vpack.c.bf16 %v2428, %v2427
      %v2439 = vpack.c.bf16 %v2430, %v2429
      %v2440 = vpack.c.bf16 %v2432, %v2431
      %v2441 = vld [vmem:[%s8] sm:$0xf]
      %v2442 = vld [vmem:[%s8 + $0x4] sm:$0xf]
      %v2443 = vld [vmem:[%s8 + $0x8] sm:$0xf]
      %v2444 = vld [vmem:[%s8 + $0xc] sm:$0xf]
      %v2445 = vld [vmem:[%s9] sm:$0x1]
      %v2447 = vlaneseq
      %v2448 = vshrl.u32 %v2447, 7
      %v2449 = vsub.s32 0, %v2448
      %v2450 = vrot.slane %v2445, %v2449
      %v2456 = vunpack.c.l.b16 %v2441
      %v2457 = vunpack.c.l.b16 %v2442
      %v2458 = vunpack.c.l.b16 %v2443
      %v2459 = vunpack.c.l.b16 %v2444
      %v2460 = vpack.c.b16 %v2457, %v2456
      %v2461 = vpack.c.b16 %v2459, %v2458
      %vm2464 = vcmask 261120
      %v2466 = vsel %vm2464, %v2433, 0
      %v2469 = vsel %vm2464, %v2434, 0
      %v2472 = vsel %vm2464, %v2435, 0
      %v2475 = vsel %vm2464, %v2436, 0
      %v2478 = vsel %vm2464, %v2437, 0
      %v2481 = vsel %vm2464, %v2438, 0
      %v2484 = vsel %vm2464, %v2439, 0
      %v2487 = vsel %vm2464, %v2440, 0
      %2489 = vmatprep.subr.bf16.mxu0 0
      %2490 = vmatpush1.bf16.msra.mxu0 %v2460
      %2491 = vmatprep.subr.bf16.mxu0 0
      %2492 = vmatpush1.bf16.msra.mxu0 %v2461
      %2493 = vmatprep.subr.bf16.mxu0 0
      %2494 = vmatpush1.bf16.msra.mxu0 0
      %2495 = vmatprep.subr.bf16.mxu0 0
      %2496 = vmatpush1.bf16.msra.mxu0 0
      %2497 = vmatprep.subr.bf16.mxu0 0
      %2498 = vmatpush1.bf16.msra.mxu0 0
      %2499 = vmatprep.subr.bf16.mxu0 0
      %2500 = vmatpush1.bf16.msra.mxu0 0
      %2501 = vmatprep.subr.bf16.mxu0 0
      %2502 = vmatpush1.bf16.msra.mxu0 0
      %2503 = vmatprep.subr.bf16.mxu0 0
      %2504 = vmatpush1.bf16.msra.mxu0 0
      %2505 = vmatprep.subr.bf16.mxu0 0
      %2506 = vmatpush1.bf16.msra.mxu0 0
      %2507 = vmatprep.subr.bf16.mxu0 0
      %2508 = vmatpush1.bf16.msra.mxu0 0
      %2509 = vmatprep.subr.bf16.mxu0 0
      %2510 = vmatpush1.bf16.msra.mxu0 0
      %2511 = vmatprep.subr.bf16.mxu0 0
      %2512 = vmatpush1.bf16.msra.mxu0 0
      %2513 = vmatprep.subr.bf16.mxu0 0
      %2514 = vmatpush1.bf16.msra.mxu0 0
      %2515 = vmatprep.subr.bf16.mxu0 0
      %2516 = vmatpush1.bf16.msra.mxu0 0
      %2517 = vmatprep.subr.bf16.mxu0 0
      %2518 = vmatpush1.bf16.msra.mxu0 0
      %2519 = vmatprep.subr.bf16.mxu0 0
      %2520 = vmatpush1.bf16.msra.mxu0 0
      %2521 = vmatprep.mubr.bf16.mxu0 0
      %2522 = vmatmul.mubr.bf16.gmra.mrb[0].mxu0 %v2466
      %v2523 = vpop.f32.mrb[0].mxu0
      %v2524 = vadd.f32 %v2450, %v2523
      %v2525 = vpop.f32.mrb[0].mxu0
      %v2526 = vpop.f32.mrb[0].mxu0
      %v2527 = vadd.f32 %v2450, %v2526
      %v2528 = vpop.f32.mrb[0].mxu0
      %2529 = vmatprep.mubr.bf16.mxu0 0
      %2530 = vmatmul.mubr.bf16.gmra.mrb[0].mxu0 %v2469
      %v2531 = vpop.f32.mrb[0].mxu0
      %v2532 = vadd.f32 %v2450, %v2531
      %v2533 = vpop.f32.mrb[0].mxu0
      %v2534 = vpop.f32.mrb[0].mxu0
      %v2535 = vadd.f32 %v2450, %v2534
      %v2536 = vpop.f32.mrb[0].mxu0
      %2537 = vmatprep.mubr.bf16.mxu0 0
      %2538 = vmatmul.mubr.bf16.gmra.mrb[0].mxu0 %v2472
      %v2539 = vpop.f32.mrb[0].mxu0
      %v2540 = vadd.f32 %v2450, %v2539
      %v2541 = vpop.f32.mrb[0].mxu0
      %v2542 = vpop.f32.mrb[0].mxu0
      %v2543 = vadd.f32 %v2450, %v2542
      %v2544 = vpop.f32.mrb[0].mxu0
      %2545 = vmatprep.mubr.bf16.mxu0 0
      %2546 = vmatmul.mubr.bf16.gmra.mrb[0].mxu0 %v2475
      %v2547 = vpop.f32.mrb[0].mxu0
      %v2548 = vadd.f32 %v2450, %v2547
      %v2549 = vpop.f32.mrb[0].mxu0
      %v2550 = vpop.f32.mrb[0].mxu0
      %v2551 = vadd.f32 %v2450, %v2550
      %v2552 = vpop.f32.mrb[0].mxu0
      %2553 = vmatprep.mubr.bf16.mxu0 0
      %2554 = vmatmul.mubr.bf16.gmra.mrb[0].mxu0 %v2478
      %v2555 = vpop.f32.mrb[0].mxu0
      %v2556 = vadd.f32 %v2450, %v2555
      %v2557 = vpop.f32.mrb[0].mxu0
      %v2558 = vpop.f32.mrb[0].mxu0
      %v2559 = vadd.f32 %v2450, %v2558
      %v2560 = vpop.f32.mrb[0].mxu0
      %2561 = vmatprep.mubr.bf16.mxu0 0
      %2562 = vmatmul.mubr.bf16.gmra.mrb[0].mxu0 %v2481
      %v2563 = vpop.f32.mrb[0].mxu0
      %v2564 = vadd.f32 %v2450, %v2563
      %v2565 = vpop.f32.mrb[0].mxu0
      %v2566 = vpop.f32.mrb[0].mxu0
      %v2567 = vadd.f32 %v2450, %v2566
      %v2568 = vpop.f32.mrb[0].mxu0
      %2569 = vmatprep.mubr.bf16.mxu0 0
      %2570 = vmatmul.mubr.bf16.gmra.mrb[0].mxu0 %v2484
      %v2571 = vpop.f32.mrb[0].mxu0
      %v2572 = vadd.f32 %v2450, %v2571
      %v2573 = vpop.f32.mrb[0].mxu0
      %v2574 = vpop.f32.mrb[0].mxu0
      %v2575 = vadd.f32 %v2450, %v2574
      %v2576 = vpop.f32.mrb[0].mxu0
      %2577 = vmatprep.mubr.bf16.mxu0 0
      %2578 = vmatmul.mubr.bf16.gmra.mrb[0].mxu0 %v2487
      %v2579 = vpop.f32.mrb[0].mxu0
      %v2580 = vadd.f32 %v2450, %v2579
      %v2581 = vpop.f32.mrb[0].mxu0
      %v2582 = vpop.f32.mrb[0].mxu0
      %v2583 = vadd.f32 %v2450, %v2582
      %v2584 = vpop.f32.mrb[0].mxu0
      %2585 = vdwg.mxu0
      %v2586 = vmax.f32 %v2524, 0.0
      %v2587 = vmax.f32 %v2527, 0.0
      %v2588 = vmax.f32 %v2532, 0.0
      %v2589 = vmax.f32 %v2535, 0.0
      %v2590 = vmax.f32 %v2540, 0.0
      %v2591 = vmax.f32 %v2543, 0.0
      %v2592 = vmax.f32 %v2548, 0.0
      %v2593 = vmax.f32 %v2551, 0.0
      %v2594 = vmax.f32 %v2556, 0.0
      %v2595 = vmax.f32 %v2559, 0.0
      %v2596 = vmax.f32 %v2564, 0.0
      %v2597 = vmax.f32 %v2567, 0.0
      %v2598 = vmax.f32 %v2572, 0.0
      %v2599 = vmax.f32 %v2575, 0.0
      %v2600 = vmax.f32 %v2580, 0.0
      %v2601 = vmax.f32 %v2583, 0.0
      %v2602 = vpack.c.bf16 %v2587, %v2586
      %v2603 = vpack.c.bf16 %v2589, %v2588
      %v2604 = vpack.c.bf16 %v2591, %v2590
      %v2605 = vpack.c.bf16 %v2593, %v2592
      %v2606 = vpack.c.bf16 %v2595, %v2594
      %v2607 = vpack.c.bf16 %v2597, %v2596
      %v2608 = vpack.c.bf16 %v2599, %v2598
      %v2609 = vpack.c.bf16 %v2601, %v2600
      %v2610 = vld [vmem:[%s10] sm:$0xff]
      %v2611 = vld [vmem:[%s10 + $0x8] sm:$0xff]
      %v2612 = vld [vmem:[%s10 + $0x10] sm:$0xff]
      %v2613 = vld [vmem:[%s10 + $0x18] sm:$0xff]
      %v2614 = vld [vmem:[%s10 + $0x20] sm:$0xff]
      %v2615 = vld [vmem:[%s10 + $0x28] sm:$0xff]
      %v2616 = vld [vmem:[%s10 + $0x30] sm:$0xff]
      %v2617 = vld [vmem:[%s10 + $0x38] sm:$0xff]
      %v2618 = vld [vmem:[%s10 + $0x40] sm:$0xff]
      %v2619 = vld [vmem:[%s10 + $0x48] sm:$0xff]
      %v2620 = vld [vmem:[%s10 + $0x50] sm:$0xff]
      %v2621 = vld [vmem:[%s10 + $0x58] sm:$0xff]
      %v2622 = vld [vmem:[%s10 + $0x60] sm:$0xff]
      %v2623 = vld [vmem:[%s10 + $0x68] sm:$0xff]
      %v2624 = vld [vmem:[%s10 + $0x70] sm:$0xff]
      %v2625 = vld [vmem:[%s10 + $0x78] sm:$0xff]
      %v2626 = vld [vmem:[%s11] sm:$0x3]
      %v2628 = vlaneseq
      %v2629 = vshrl.u32 %v2628, 7
      %v2630 = vsub.s32 0, %v2629
      %v2631 = vrot.slane %v2626, %v2630
      %v2632 = vlaneseq
      %v2633 = vshrl.u32 %v2632, 7
      %v2634 = vsub.s32 1, %v2633
      %v2635 = vrot.slane %v2626, %v2634
      %v2654 = vunpack.c.l.b16 %v2610
      %v2655 = vunpack.c.h.b16 %v2610
      %v2656 = vunpack.c.l.b16 %v2611
      %v2657 = vunpack.c.h.b16 %v2611
      %v2658 = vunpack.c.l.b16 %v2612
      %v2659 = vunpack.c.h.b16 %v2612
      %v2660 = vunpack.c.l.b16 %v2613
      %v2661 = vunpack.c.h.b16 %v2613
      %v2662 = vunpack.c.l.b16 %v2614
      %v2663 = vunpack.c.h.b16 %v2614
      %v2664 = vunpack.c.l.b16 %v2615
      %v2665 = vunpack.c.h.b16 %v2615
      %v2666 = vunpack.c.l.b16 %v2616
      %v2667 = vunpack.c.h.b16 %v2616
      %v2668 = vunpack.c.l.b16 %v2617
      %v2669 = vunpack.c.h.b16 %v2617
      %v2670 = vunpack.c.l.b16 %v2618
      %v2671 = vunpack.c.h.b16 %v2618
      %v2672 = vunpack.c.l.b16 %v2619
      %v2673 = vunpack.c.h.b16 %v2619
      %v2674 = vunpack.c.l.b16 %v2620
      %v2675 = vunpack.c.h.b16 %v2620
      %v2676 = vunpack.c.l.b16 %v2621
      %v2677 = vunpack.c.h.b16 %v2621
      %v2678 = vunpack.c.l.b16 %v2622
      %v2679 = vunpack.c.h.b16 %v2622
      %v2680 = vunpack.c.l.b16 %v2623
      %v2681 = vunpack.c.h.b16 %v2623
      %v2682 = vunpack.c.l.b16 %v2624
      %v2683 = vunpack.c.h.b16 %v2624
      %v2684 = vunpack.c.l.b16 %v2625
      %v2685 = vunpack.c.h.b16 %v2625
      %v2686 = vpack.c.b16 %v2656, %v2654
      %v2687 = vpack.c.b16 %v2657, %v2655
      %v2688 = vpack.c.b16 %v2660, %v2658
      %v2689 = vpack.c.b16 %v2661, %v2659
      %v2690 = vpack.c.b16 %v2664, %v2662
      %v2691 = vpack.c.b16 %v2665, %v2663
      %v2692 = vpack.c.b16 %v2668, %v2666
      %v2693 = vpack.c.b16 %v2669, %v2667
      %v2694 = vpack.c.b16 %v2672, %v2670
      %v2695 = vpack.c.b16 %v2673, %v2671
      %v2696 = vpack.c.b16 %v2676, %v2674
      %v2697 = vpack.c.b16 %v2677, %v2675
      %v2698 = vpack.c.b16 %v2680, %v2678
      %v2699 = vpack.c.b16 %v2681, %v2679
      %v2700 = vpack.c.b16 %v2684, %v2682
      %v2701 = vpack.c.b16 %v2685, %v2683
      %2718 = vmatprep.subr.bf16.mxu0 %v2687
      %2719 = vmatpush1.bf16.msra.mxu0 %v2686
      %2720 = vmatprep.subr.bf16.mxu0 %v2689
      %2721 = vmatpush1.bf16.msra.mxu0 %v2688
      %2722 = vmatprep.subr.bf16.mxu0 %v2691
      %2723 = vmatpush1.bf16.msra.mxu0 %v2690
      %2724 = vmatprep.subr.bf16.mxu0 %v2693
      %2725 = vmatpush1.bf16.msra.mxu0 %v2692
      %2726 = vmatprep.subr.bf16.mxu0 %v2695
      %2727 = vmatpush1.bf16.msra.mxu0 %v2694
      %2728 = vmatprep.subr.bf16.mxu0 %v2697
      %2729 = vmatpush1.bf16.msra.mxu0 %v2696
      %2730 = vmatprep.subr.bf16.mxu0 %v2699
      %2731 = vmatpush1.bf16.msra.mxu0 %v2698
      %2732 = vmatprep.subr.bf16.mxu0 %v2701
      %2733 = vmatpush1.bf16.msra.mxu0 %v2700
      %2734 = vmatprep.subr.bf16.mxu0 0
      %2735 = vmatpush1.bf16.msra.mxu0 0
      %2736 = vmatprep.subr.bf16.mxu0 0
      %2737 = vmatpush1.bf16.msra.mxu0 0
      %2738 = vmatprep.subr.bf16.mxu0 0
      %2739 = vmatpush1.bf16.msra.mxu0 0
      %2740 = vmatprep.subr.bf16.mxu0 0
      %2741 = vmatpush1.bf16.msra.mxu0 0
      %2742 = vmatprep.subr.bf16.mxu0 0
      %2743 = vmatpush1.bf16.msra.mxu0 0
      %2744 = vmatprep.subr.bf16.mxu0 0
      %2745 = vmatpush1.bf16.msra.mxu0 0
      %2746 = vmatprep.subr.bf16.mxu0 0
      %2747 = vmatpush1.bf16.msra.mxu0 0
      %2748 = vmatprep.subr.bf16.mxu0 0
      %2749 = vmatpush1.bf16.msra.mxu0 0
      %2750 = vmatprep.mubr.bf16.mxu0 0
      %2751 = vmatmul.mubr.bf16.gmra.mrb[0].mxu0 %v2602
      %v2752 = vpop.f32.mrb[0].mxu0
      %v2753 = vadd.f32 %v2631, %v2752
      %v2754 = vpop.f32.mrb[0].mxu0
      %v2755 = vadd.f32 %v2635, %v2754
      %v2756 = vpop.f32.mrb[0].mxu0
      %v2757 = vadd.f32 %v2631, %v2756
      %v2758 = vpop.f32.mrb[0].mxu0
      %v2759 = vadd.f32 %v2635, %v2758
      %2760 = vmatprep.mubr.bf16.mxu0 0
      %2761 = vmatmul.mubr.bf16.gmra.mrb[0].mxu0 %v2603
      %v2762 = vpop.f32.mrb[0].mxu0
      %v2763 = vadd.f32 %v2631, %v2762
      %v2764 = vpop.f32.mrb[0].mxu0
      %v2765 = vadd.f32 %v2635, %v2764
      %v2766 = vpop.f32.mrb[0].mxu0
      %v2767 = vadd.f32 %v2631, %v2766
      %v2768 = vpop.f32.mrb[0].mxu0
      %v2769 = vadd.f32 %v2635, %v2768
      %2770 = vmatprep.mubr.bf16.mxu0 0
      %2771 = vmatmul.mubr.bf16.gmra.mrb[0].mxu0 %v2604
      %v2772 = vpop.f32.mrb[0].mxu0
      %v2773 = vadd.f32 %v2631, %v2772
      %v2774 = vpop.f32.mrb[0].mxu0
      %v2775 = vadd.f32 %v2635, %v2774
      %v2776 = vpop.f32.mrb[0].mxu0
      %v2777 = vadd.f32 %v2631, %v2776
      %v2778 = vpop.f32.mrb[0].mxu0
      %v2779 = vadd.f32 %v2635, %v2778
      %2780 = vmatprep.mubr.bf16.mxu0 0
      %2781 = vmatmul.mubr.bf16.gmra.mrb[0].mxu0 %v2605
      %v2782 = vpop.f32.mrb[0].mxu0
      %v2783 = vadd.f32 %v2631, %v2782
      %v2784 = vpop.f32.mrb[0].mxu0
      %v2785 = vadd.f32 %v2635, %v2784
      %v2786 = vpop.f32.mrb[0].mxu0
      %v2787 = vadd.f32 %v2631, %v2786
      %v2788 = vpop.f32.mrb[0].mxu0
      %v2789 = vadd.f32 %v2635, %v2788
      %2790 = vmatprep.mubr.bf16.mxu0 0
      %2791 = vmatmul.mubr.bf16.gmra.mrb[0].mxu0 %v2606
      %v2792 = vpop.f32.mrb[0].mxu0
      %v2793 = vadd.f32 %v2631, %v2792
      %v2794 = vpop.f32.mrb[0].mxu0
      %v2795 = vadd.f32 %v2635, %v2794
      %v2796 = vpop.f32.mrb[0].mxu0
      %v2797 = vadd.f32 %v2631, %v2796
      %v2798 = vpop.f32.mrb[0].mxu0
      %v2799 = vadd.f32 %v2635, %v2798
      %2800 = vmatprep.mubr.bf16.mxu0 0
      %2801 = vmatmul.mubr.bf16.gmra.mrb[0].mxu0 %v2607
      %v2802 = vpop.f32.mrb[0].mxu0
      %v2803 = vadd.f32 %v2631, %v2802
      %v2804 = vpop.f32.mrb[0].mxu0
      %v2805 = vadd.f32 %v2635, %v2804
      %v2806 = vpop.f32.mrb[0].mxu0
      %v2807 = vadd.f32 %v2631, %v2806
      %v2808 = vpop.f32.mrb[0].mxu0
      %v2809 = vadd.f32 %v2635, %v2808
      %2810 = vmatprep.mubr.bf16.mxu0 0
      %2811 = vmatmul.mubr.bf16.gmra.mrb[0].mxu0 %v2608
      %v2812 = vpop.f32.mrb[0].mxu0
      %v2813 = vadd.f32 %v2631, %v2812
      %v2814 = vpop.f32.mrb[0].mxu0
      %v2815 = vadd.f32 %v2635, %v2814
      %v2816 = vpop.f32.mrb[0].mxu0
      %v2817 = vadd.f32 %v2631, %v2816
      %v2818 = vpop.f32.mrb[0].mxu0
      %v2819 = vadd.f32 %v2635, %v2818
      %2820 = vmatprep.mubr.bf16.mxu0 0
      %2821 = vmatmul.mubr.bf16.gmra.mrb[0].mxu0 %v2609
      %v2822 = vpop.f32.mrb[0].mxu0
      %v2823 = vadd.f32 %v2631, %v2822
      %v2824 = vpop.f32.mrb[0].mxu0
      %v2825 = vadd.f32 %v2635, %v2824
      %v2826 = vpop.f32.mrb[0].mxu0
      %v2827 = vadd.f32 %v2631, %v2826
      %v2828 = vpop.f32.mrb[0].mxu0
      %v2829 = vadd.f32 %v2635, %v2828
      %2830 = vdwg.mxu0
      %v2831 = vmax.f32 %v2753, 0.0
      %v2832 = vmax.f32 %v2755, 0.0
      %v2833 = vmax.f32 %v2757, 0.0
      %v2834 = vmax.f32 %v2759, 0.0
      %v2835 = vmax.f32 %v2763, 0.0
      %v2836 = vmax.f32 %v2765, 0.0
      %v2837 = vmax.f32 %v2767, 0.0
      %v2838 = vmax.f32 %v2769, 0.0
      %v2839 = vmax.f32 %v2773, 0.0
      %v2840 = vmax.f32 %v2775, 0.0
      %v2841 = vmax.f32 %v2777, 0.0
      %v2842 = vmax.f32 %v2779, 0.0
      %v2843 = vmax.f32 %v2783, 0.0
      %v2844 = vmax.f32 %v2785, 0.0
      %v2845 = vmax.f32 %v2787, 0.0
      %v2846 = vmax.f32 %v2789, 0.0
      %v2847 = vmax.f32 %v2793, 0.0
      %v2848 = vmax.f32 %v2795, 0.0
      %v2849 = vmax.f32 %v2797, 0.0
      %v2850 = vmax.f32 %v2799, 0.0
      %v2851 = vmax.f32 %v2803, 0.0
      %v2852 = vmax.f32 %v2805, 0.0
      %v2853 = vmax.f32 %v2807, 0.0
      %v2854 = vmax.f32 %v2809, 0.0
      %v2855 = vmax.f32 %v2813, 0.0
      %v2856 = vmax.f32 %v2815, 0.0
      %v2857 = vmax.f32 %v2817, 0.0
      %v2858 = vmax.f32 %v2819, 0.0
      %v2859 = vmax.f32 %v2823, 0.0
      %v2860 = vmax.f32 %v2825, 0.0
      %v2861 = vmax.f32 %v2827, 0.0
      %v2862 = vmax.f32 %v2829, 0.0
      %v2863 = vpack.c.bf16 %v2833, %v2831
      %v2864 = vpack.c.bf16 %v2834, %v2832
      %v2865 = vpack.c.bf16 %v2837, %v2835
      %v2866 = vpack.c.bf16 %v2838, %v2836
      %v2867 = vpack.c.bf16 %v2841, %v2839
      %v2868 = vpack.c.bf16 %v2842, %v2840
      %v2869 = vpack.c.bf16 %v2845, %v2843
      %v2870 = vpack.c.bf16 %v2846, %v2844
      %v2871 = vpack.c.bf16 %v2849, %v2847
      %v2872 = vpack.c.bf16 %v2850, %v2848
      %v2873 = vpack.c.bf16 %v2853, %v2851
      %v2874 = vpack.c.bf16 %v2854, %v2852
      %v2875 = vpack.c.bf16 %v2857, %v2855
      %v2876 = vpack.c.bf16 %v2858, %v2856
      %v2877 = vpack.c.bf16 %v2861, %v2859
      %v2878 = vpack.c.bf16 %v2862, %v2860
      %v2879 = vld [vmem:[%s12] sm:$0xff]
      %v2880 = vld [vmem:[%s12 + $0x8] sm:$0xff]
      %v2881 = vld [vmem:[%s12 + $0x10] sm:$0xff]
      %v2882 = vld [vmem:[%s12 + $0x18] sm:$0xf]
      %v2883 = vld [vmem:[%s12 + $0x1c] sm:$0xff]
      %v2884 = vld [vmem:[%s12 + $0x24] sm:$0xff]
      %v2885 = vld [vmem:[%s12 + $0x2c] sm:$0xff]
      %v2886 = vld [vmem:[%s12 + $0x34] sm:$0xf]
      %v2887 = vld [vmem:[%s12 + $0x38] sm:$0xff]
      %v2888 = vld [vmem:[%s12 + $0x40] sm:$0xff]
      %v2889 = vld [vmem:[%s12 + $0x48] sm:$0xff]
      %v2890 = vld [vmem:[%s12 + $0x50] sm:$0xf]
      %v2891 = vld [vmem:[%s12 + $0x54] sm:$0xff]
      %v2892 = vld [vmem:[%s12 + $0x5c] sm:$0xff]
      %v2893 = vld [vmem:[%s12 + $0x64] sm:$0xff]
      %v2894 = vld [vmem:[%s12 + $0x6c] sm:$0xf]
      %v2895 = vld [vmem:[%s12 + $0x70] sm:$0xff]
      %v2896 = vld [vmem:[%s12 + $0x78] sm:$0xff]
      %v2897 = vld [vmem:[%s12 + $0x80] sm:$0xff]
      %v2898 = vld [vmem:[%s12 + $0x88] sm:$0xf]
      %v2899 = vld [vmem:[%s12 + $0x8c] sm:$0xff]
      %v2900 = vld [vmem:[%s12 + $0x94] sm:$0xff]
      %v2901 = vld [vmem:[%s12 + $0x9c] sm:$0xff]
      %v2902 = vld [vmem:[%s12 + $0xa4] sm:$0xf]
      %v2903 = vld [vmem:[%s12 + $0xa8] sm:$0xff]
      %v2904 = vld [vmem:[%s12 + $0xb0] sm:$0xff]
      %v2905 = vld [vmem:[%s12 + $0xb8] sm:$0xff]
      %v2906 = vld [vmem:[%s12 + $0xc0] sm:$0xf]
      %v2907 = vld [vmem:[%s12 + $0xc4] sm:$0xff]
      %v2908 = vld [vmem:[%s12 + $0xcc] sm:$0xff]
      %v2909 = vld [vmem:[%s12 + $0xd4] sm:$0xff]
      %v2910 = vld [vmem:[%s12 + $0xdc] sm:$0xf]
      %v2911 = vld [vmem:[%s12 + $0xe0] sm:$0xff]
      %v2912 = vld [vmem:[%s12 + $0xe8] sm:$0xff]
      %v2913 = vld [vmem:[%s12 + $0xf0] sm:$0xff]
      %v2914 = vld [vmem:[%s12 + $0xf8] sm:$0xf]
      %v2915 = vld [vmem:[%s12 + $0xfc] sm:$0xff]
      %v2916 = vld [vmem:[%s12 + $0x104] sm:$0xff]
      %v2917 = vld [vmem:[%s12 + $0x10c] sm:$0xff]
      %v2918 = vld [vmem:[%s12 + $0x114] sm:$0xf]
      %v2919 = vld [vmem:[%s12 + $0x118] sm:$0xff]
      %v2920 = vld [vmem:[%s12 + $0x120] sm:$0xff]
      %v2921 = vld [vmem:[%s12 + $0x128] sm:$0xff]
      %v2922 = vld [vmem:[%s12 + $0x130] sm:$0xf]
      %v2923 = vld [vmem:[%s12 + $0x134] sm:$0xff]
      %v2924 = vld [vmem:[%s12 + $0x13c] sm:$0xff]
      %v2925 = vld [vmem:[%s12 + $0x144] sm:$0xff]
      %v2926 = vld [vmem:[%s12 + $0x14c] sm:$0xf]
      %v2927 = vld [vmem:[%s12 + $0x150] sm:$0xff]
      %v2928 = vld [vmem:[%s12 + $0x158] sm:$0xff]
      %v2929 = vld [vmem:[%s12 + $0x160] sm:$0xff]
      %v2930 = vld [vmem:[%s12 + $0x168] sm:$0xf]
      %v2931 = vld [vmem:[%s12 + $0x16c] sm:$0xff]
      %v2932 = vld [vmem:[%s12 + $0x174] sm:$0xff]
      %v2933 = vld [vmem:[%s12 + $0x17c] sm:$0xff]
      %v2934 = vld [vmem:[%s12 + $0x184] sm:$0xf]
      %v2935 = vld [vmem:[%s12 + $0x188] sm:$0xff]
      %v2936 = vld [vmem:[%s12 + $0x190] sm:$0xff]
      %v2937 = vld [vmem:[%s12 + $0x198] sm:$0xff]
      %v2938 = vld [vmem:[%s12 + $0x1a0] sm:$0xf]
      %v2939 = vld [vmem:[%s12 + $0x1a4] sm:$0xff]
      %v2940 = vld [vmem:[%s12 + $0x1ac] sm:$0xff]
      %v2941 = vld [vmem:[%s12 + $0x1b4] sm:$0xff]
      %v2942 = vld [vmem:[%s12 + $0x1bc] sm:$0xf]
      %v2943 = vld [vmem:[%s12 + $0x1c0] sm:$0xff]
      %v2944 = vld [vmem:[%s12 + $0x1c8] sm:$0xff]
      %v2945 = vld [vmem:[%s12 + $0x1d0] sm:$0xff]
      %v2946 = vld [vmem:[%s12 + $0x1d8] sm:$0xf]
      %v2947 = vld [vmem:[%s12 + $0x1dc] sm:$0xff]
      %v2948 = vld [vmem:[%s12 + $0x1e4] sm:$0xff]
      %v2949 = vld [vmem:[%s12 + $0x1ec] sm:$0xff]
      %v2950 = vld [vmem:[%s12 + $0x1f4] sm:$0xf]
      %v2951 = vld [vmem:[%s12 + $0x1f8] sm:$0xff]
      %v2952 = vld [vmem:[%s12 + $0x200] sm:$0xff]
      %v2953 = vld [vmem:[%s12 + $0x208] sm:$0xff]
      %v2954 = vld [vmem:[%s12 + $0x210] sm:$0xf]
      %v2955 = vld [vmem:[%s12 + $0x214] sm:$0xff]
      %v2956 = vld [vmem:[%s12 + $0x21c] sm:$0xff]
      %v2957 = vld [vmem:[%s12 + $0x224] sm:$0xff]
      %v2958 = vld [vmem:[%s12 + $0x22c] sm:$0xf]
      %v2959 = vld [vmem:[%s12 + $0x230] sm:$0xff]
      %v2960 = vld [vmem:[%s12 + $0x238] sm:$0xff]
      %v2961 = vld [vmem:[%s12 + $0x240] sm:$0xff]
      %v2962 = vld [vmem:[%s12 + $0x248] sm:$0xf]
      %v2963 = vld [vmem:[%s12 + $0x24c] sm:$0xff]
      %v2964 = vld [vmem:[%s12 + $0x254] sm:$0xff]
      %v2965 = vld [vmem:[%s12 + $0x25c] sm:$0xff]
      %v2966 = vld [vmem:[%s12 + $0x264] sm:$0xf]
      %v2967 = vld [vmem:[%s12 + $0x268] sm:$0xff]
      %v2968 = vld [vmem:[%s12 + $0x270] sm:$0xff]
      %v2969 = vld [vmem:[%s12 + $0x278] sm:$0xff]
      %v2970 = vld [vmem:[%s12 + $0x280] sm:$0xf]
      %v2971 = vld [vmem:[%s12 + $0x284] sm:$0xff]
      %v2972 = vld [vmem:[%s12 + $0x28c] sm:$0xff]
      %v2973 = vld [vmem:[%s12 + $0x294] sm:$0xff]
      %v2974 = vld [vmem:[%s12 + $0x29c] sm:$0xf]
      %v2975 = vld [vmem:[%s12 + $0x2a0] sm:$0xff]
      %v2976 = vld [vmem:[%s12 + $0x2a8] sm:$0xff]
      %v2977 = vld [vmem:[%s12 + $0x2b0] sm:$0xff]
      %v2978 = vld [vmem:[%s12 + $0x2b8] sm:$0xf]
      %v2979 = vld [vmem:[%s12 + $0x2bc] sm:$0xff]
      %v2980 = vld [vmem:[%s12 + $0x2c4] sm:$0xff]
      %v2981 = vld [vmem:[%s12 + $0x2cc] sm:$0xff]
      %v2982 = vld [vmem:[%s12 + $0x2d4] sm:$0xf]
      %v2983 = vld [vmem:[%s12 + $0x2d8] sm:$0xff]
      %v2984 = vld [vmem:[%s12 + $0x2e0] sm:$0xff]
      %v2985 = vld [vmem:[%s12 + $0x2e8] sm:$0xff]
      %v2986 = vld [vmem:[%s12 + $0x2f0] sm:$0xf]
      %v2987 = vld [vmem:[%s12 + $0x2f4] sm:$0xff]
      %v2988 = vld [vmem:[%s12 + $0x2fc] sm:$0xff]
      %v2989 = vld [vmem:[%s12 + $0x304] sm:$0xff]
      %v2990 = vld [vmem:[%s12 + $0x30c] sm:$0xf]
      %v2991 = vld [vmem:[%s12 + $0x310] sm:$0xff]
      %v2992 = vld [vmem:[%s12 + $0x318] sm:$0xff]
      %v2993 = vld [vmem:[%s12 + $0x320] sm:$0xff]
      %v2994 = vld [vmem:[%s12 + $0x328] sm:$0xf]
      %v2995 = vld [vmem:[%s12 + $0x32c] sm:$0xff]
      %v2996 = vld [vmem:[%s12 + $0x334] sm:$0xff]
      %v2997 = vld [vmem:[%s12 + $0x33c] sm:$0xff]
      %v2998 = vld [vmem:[%s12 + $0x344] sm:$0xf]
      %v2999 = vld [vmem:[%s12 + $0x348] sm:$0xff]
      %v3000 = vld [vmem:[%s12 + $0x350] sm:$0xff]
      %v3001 = vld [vmem:[%s12 + $0x358] sm:$0xff]
      %v3002 = vld [vmem:[%s12 + $0x360] sm:$0xf]
      %v3003 = vld [vmem:[%s12 + $0x364] sm:$0xff]
      %v3004 = vld [vmem:[%s12 + $0x36c] sm:$0xff]
      %v3005 = vld [vmem:[%s12 + $0x374] sm:$0xff]
      %v3006 = vld [vmem:[%s12 + $0x37c] sm:$0xf]
      %v3007 = vld [vmem:[%s13] sm:$0x7f]
      %v3009 = vlaneseq
      %v3010 = vshrl.u32 %v3009, 7
      %v3011 = vsub.s32 0, %v3010
      %v3012 = vrot.slane %v3007, %v3011
      %v3013 = vlaneseq
      %v3014 = vshrl.u32 %v3013, 7
      %v3015 = vsub.s32 1, %v3014
      %v3016 = vrot.slane %v3007, %v3015
      %v3017 = vlaneseq
      %v3018 = vshrl.u32 %v3017, 7
      %v3019 = vsub.s32 2, %v3018
      %v3020 = vrot.slane %v3007, %v3019
      %v3021 = vlaneseq
      %v3022 = vshrl.u32 %v3021, 7
      %v3023 = vsub.s32 3, %v3022
      %v3024 = vrot.slane %v3007, %v3023
      %v3025 = vlaneseq
      %v3026 = vshrl.u32 %v3025, 7
      %v3027 = vsub.s32 4, %v3026
      %v3028 = vrot.slane %v3007, %v3027
      %v3029 = vlaneseq
      %v3030 = vshrl.u32 %v3029, 7
      %v3031 = vsub.s32 5, %v3030
      %v3032 = vrot.slane %v3007, %v3031
      %v3033 = vlaneseq
      %v3034 = vshrl.u32 %v3033, 7
      %v3035 = vsub.s32 6, %v3034
      %v3036 = vrot.slane %v3007, %v3035
      %v3172 = vunpack.c.l.b16 %v2879
      %v3173 = vunpack.c.h.b16 %v2879
      %v3174 = vunpack.c.l.b16 %v2880
      %v3175 = vunpack.c.h.b16 %v2880
      %v3176 = vunpack.c.l.b16 %v2881
      %v3177 = vunpack.c.h.b16 %v2881
      %v3178 = vunpack.c.l.b16 %v2882
      %v3179 = vunpack.c.l.b16 %v2883
      %v3180 = vunpack.c.h.b16 %v2883
      %v3181 = vunpack.c.l.b16 %v2884
      %v3182 = vunpack.c.h.b16 %v2884
      %v3183 = vunpack.c.l.b16 %v2885
      %v3184 = vunpack.c.h.b16 %v2885
      %v3185 = vunpack.c.l.b16 %v2886
      %v3186 = vunpack.c.l.b16 %v2887
      %v3187 = vunpack.c.h.b16 %v2887
      %v3188 = vunpack.c.l.b16 %v2888
      %v3189 = vunpack.c.h.b16 %v2888
      %v3190 = vunpack.c.l.b16 %v2889
      %v3191 = vunpack.c.h.b16 %v2889
      %v3192 = vunpack.c.l.b16 %v2890
      %v3193 = vunpack.c.l.b16 %v2891
      %v3194 = vunpack.c.h.b16 %v2891
      %v3195 = vunpack.c.l.b16 %v2892
      %v3196 = vunpack.c.h.b16 %v2892
      %v3197 = vunpack.c.l.b16 %v2893
      %v3198 = vunpack.c.h.b16 %v2893
      %v3199 = vunpack.c.l.b16 %v2894
      %v3200 = vunpack.c.l.b16 %v2895
      %v3201 = vunpack.c.h.b16 %v2895
      %v3202 = vunpack.c.l.b16 %v2896
      %v3203 = vunpack.c.h.b16 %v2896
      %v3204 = vunpack.c.l.b16 %v2897
      %v3205 = vunpack.c.h.b16 %v2897
      %v3206 = vunpack.c.l.b16 %v2898
      %v3207 = vunpack.c.l.b16 %v2899
      %v3208 = vunpack.c.h.b16 %v2899
      %v3209 = vunpack.c.l.b16 %v2900
      %v3210 = vunpack.c.h.b16 %v2900
      %v3211 = vunpack.c.l.b16 %v2901
      %v3212 = vunpack.c.h.b16 %v2901
      %v3213 = vunpack.c.l.b16 %v2902
      %v3214 = vunpack.c.l.b16 %v2903
      %v3215 = vunpack.c.h.b16 %v2903
      %v3216 = vunpack.c.l.b16 %v2904
      %v3217 = vunpack.c.h.b16 %v2904
      %v3218 = vunpack.c.l.b16 %v2905
      %v3219 = vunpack.c.h.b16 %v2905
      %v3220 = vunpack.c.l.b16 %v2906
      %v3221 = vunpack.c.l.b16 %v2907
      %v3222 = vunpack.c.h.b16 %v2907
      %v3223 = vunpack.c.l.b16 %v2908
      %v3224 = vunpack.c.h.b16 %v2908
      %v3225 = vunpack.c.l.b16 %v2909
      %v3226 = vunpack.c.h.b16 %v2909
      %v3227 = vunpack.c.l.b16 %v2910
      %v3228 = vunpack.c.l.b16 %v2911
      %v3229 = vunpack.c.h.b16 %v2911
      %v3230 = vunpack.c.l.b16 %v2912
      %v3231 = vunpack.c.h.b16 %v2912
      %v3232 = vunpack.c.l.b16 %v2913
      %v3233 = vunpack.c.h.b16 %v2913
      %v3234 = vunpack.c.l.b16 %v2914
      %v3235 = vunpack.c.l.b16 %v2915
      %v3236 = vunpack.c.h.b16 %v2915
      %v3237 = vunpack.c.l.b16 %v2916
      %v3238 = vunpack.c.h.b16 %v2916
      %v3239 = vunpack.c.l.b16 %v2917
      %v3240 = vunpack.c.h.b16 %v2917
      %v3241 = vunpack.c.l.b16 %v2918
      %v3242 = vunpack.c.l.b16 %v2919
      %v3243 = vunpack.c.h.b16 %v2919
      %v3244 = vunpack.c.l.b16 %v2920
      %v3245 = vunpack.c.h.b16 %v2920
      %v3246 = vunpack.c.l.b16 %v2921
      %v3247 = vunpack.c.h.b16 %v2921
      %v3248 = vunpack.c.l.b16 %v2922
      %v3249 = vunpack.c.l.b16 %v2923
      %v3250 = vunpack.c.h.b16 %v2923
      %v3251 = vunpack.c.l.b16 %v2924
      %v3252 = vunpack.c.h.b16 %v2924
      %v3253 = vunpack.c.l.b16 %v2925
      %v3254 = vunpack.c.h.b16 %v2925
      %v3255 = vunpack.c.l.b16 %v2926
      %v3256 = vunpack.c.l.b16 %v2927
      %v3257 = vunpack.c.h.b16 %v2927
      %v3258 = vunpack.c.l.b16 %v2928
      %v3259 = vunpack.c.h.b16 %v2928
      %v3260 = vunpack.c.l.b16 %v2929
      %v3261 = vunpack.c.h.b16 %v2929
      %v3262 = vunpack.c.l.b16 %v2930
      %v3263 = vunpack.c.l.b16 %v2931
      %v3264 = vunpack.c.h.b16 %v2931
      %v3265 = vunpack.c.l.b16 %v2932
      %v3266 = vunpack.c.h.b16 %v2932
      %v3267 = vunpack.c.l.b16 %v2933
      %v3268 = vunpack.c.h.b16 %v2933
      %v3269 = vunpack.c.l.b16 %v2934
      %v3270 = vunpack.c.l.b16 %v2935
      %v3271 = vunpack.c.h.b16 %v2935
      %v3272 = vunpack.c.l.b16 %v2936
      %v3273 = vunpack.c.h.b16 %v2936
      %v3274 = vunpack.c.l.b16 %v2937
      %v3275 = vunpack.c.h.b16 %v2937
      %v3276 = vunpack.c.l.b16 %v2938
      %v3277 = vunpack.c.l.b16 %v2939
      %v3278 = vunpack.c.h.b16 %v2939
      %v3279 = vunpack.c.l.b16 %v2940
      %v3280 = vunpack.c.h.b16 %v2940
      %v3281 = vunpack.c.l.b16 %v2941
      %v3282 = vunpack.c.h.b16 %v2941
      %v3283 = vunpack.c.l.b16 %v2942
      %v3284 = vunpack.c.l.b16 %v2943
      %v3285 = vunpack.c.h.b16 %v2943
      %v3286 = vunpack.c.l.b16 %v2944
      %v3287 = vunpack.c.h.b16 %v2944
      %v3288 = vunpack.c.l.b16 %v2945
      %v3289 = vunpack.c.h.b16 %v2945
      %v3290 = vunpack.c.l.b16 %v2946
      %v3291 = vunpack.c.l.b16 %v2947
      %v3292 = vunpack.c.h.b16 %v2947
      %v3293 = vunpack.c.l.b16 %v2948
      %v3294 = vunpack.c.h.b16 %v2948
      %v3295 = vunpack.c.l.b16 %v2949
      %v3296 = vunpack.c.h.b16 %v2949
      %v3297 = vunpack.c.l.b16 %v2950
      %v3298 = vunpack.c.l.b16 %v2951
      %v3299 = vunpack.c.h.b16 %v2951
      %v3300 = vunpack.c.l.b16 %v2952
      %v3301 = vunpack.c.h.b16 %v2952
      %v3302 = vunpack.c.l.b16 %v2953
      %v3303 = vunpack.c.h.b16 %v2953
      %v3304 = vunpack.c.l.b16 %v2954
      %v3305 = vunpack.c.l.b16 %v2955
      %v3306 = vunpack.c.h.b16 %v2955
      %v3307 = vunpack.c.l.b16 %v2956
      %v3308 = vunpack.c.h.b16 %v2956
      %v3309 = vunpack.c.l.b16 %v2957
      %v3310 = vunpack.c.h.b16 %v2957
      %v3311 = vunpack.c.l.b16 %v2958
      %v3312 = vunpack.c.l.b16 %v2959
      %v3313 = vunpack.c.h.b16 %v2959
      %v3314 = vunpack.c.l.b16 %v2960
      %v3315 = vunpack.c.h.b16 %v2960
      %v3316 = vunpack.c.l.b16 %v2961
      %v3317 = vunpack.c.h.b16 %v2961
      %v3318 = vunpack.c.l.b16 %v2962
      %v3319 = vunpack.c.l.b16 %v2963
      %v3320 = vunpack.c.h.b16 %v2963
      %v3321 = vunpack.c.l.b16 %v2964
      %v3322 = vunpack.c.h.b16 %v2964
      %v3323 = vunpack.c.l.b16 %v2965
      %v3324 = vunpack.c.h.b16 %v2965
      %v3325 = vunpack.c.l.b16 %v2966
      %v3326 = vunpack.c.l.b16 %v2967
      %v3327 = vunpack.c.h.b16 %v2967
      %v3328 = vunpack.c.l.b16 %v2968
      %v3329 = vunpack.c.h.b16 %v2968
      %v3330 = vunpack.c.l.b16 %v2969
      %v3331 = vunpack.c.h.b16 %v2969
      %v3332 = vunpack.c.l.b16 %v2970
      %v3333 = vunpack.c.l.b16 %v2971
      %v3334 = vunpack.c.h.b16 %v2971
      %v3335 = vunpack.c.l.b16 %v2972
      %v3336 = vunpack.c.h.b16 %v2972
      %v3337 = vunpack.c.l.b16 %v2973
      %v3338 = vunpack.c.h.b16 %v2973
      %v3339 = vunpack.c.l.b16 %v2974
      %v3340 = vunpack.c.l.b16 %v2975
      %v3341 = vunpack.c.h.b16 %v2975
      %v3342 = vunpack.c.l.b16 %v2976
      %v3343 = vunpack.c.h.b16 %v2976
      %v3344 = vunpack.c.l.b16 %v2977
      %v3345 = vunpack.c.h.b16 %v2977
      %v3346 = vunpack.c.l.b16 %v2978
      %v3347 = vunpack.c.l.b16 %v2979
      %v3348 = vunpack.c.h.b16 %v2979
      %v3349 = vunpack.c.l.b16 %v2980
      %v3350 = vunpack.c.h.b16 %v2980
      %v3351 = vunpack.c.l.b16 %v2981
      %v3352 = vunpack.c.h.b16 %v2981
      %v3353 = vunpack.c.l.b16 %v2982
      %v3354 = vunpack.c.l.b16 %v2983
      %v3355 = vunpack.c.h.b16 %v2983
      %v3356 = vunpack.c.l.b16 %v2984
      %v3357 = vunpack.c.h.b16 %v2984
      %v3358 = vunpack.c.l.b16 %v2985
      %v3359 = vunpack.c.h.b16 %v2985
      %v3360 = vunpack.c.l.b16 %v2986
      %v3361 = vunpack.c.l.b16 %v2987
      %v3362 = vunpack.c.h.b16 %v2987
      %v3363 = vunpack.c.l.b16 %v2988
      %v3364 = vunpack.c.h.b16 %v2988
      %v3365 = vunpack.c.l.b16 %v2989
      %v3366 = vunpack.c.h.b16 %v2989
      %v3367 = vunpack.c.l.b16 %v2990
      %v3368 = vunpack.c.l.b16 %v2991
      %v3369 = vunpack.c.h.b16 %v2991
      %v3370 = vunpack.c.l.b16 %v2992
      %v3371 = vunpack.c.h.b16 %v2992
      %v3372 = vunpack.c.l.b16 %v2993
      %v3373 = vunpack.c.h.b16 %v2993
      %v3374 = vunpack.c.l.b16 %v2994
      %v3375 = vunpack.c.l.b16 %v2995
      %v3376 = vunpack.c.h.b16 %v2995
      %v3377 = vunpack.c.l.b16 %v2996
      %v3378 = vunpack.c.h.b16 %v2996
      %v3379 = vunpack.c.l.b16 %v2997
      %v3380 = vunpack.c.h.b16 %v2997
      %v3381 = vunpack.c.l.b16 %v2998
      %v3382 = vunpack.c.l.b16 %v2999
      %v3383 = vunpack.c.h.b16 %v2999
      %v3384 = vunpack.c.l.b16 %v3000
      %v3385 = vunpack.c.h.b16 %v3000
      %v3386 = vunpack.c.l.b16 %v3001
      %v3387 = vunpack.c.h.b16 %v3001
      %v3388 = vunpack.c.l.b16 %v3002
      %v3389 = vunpack.c.l.b16 %v3003
      %v3390 = vunpack.c.h.b16 %v3003
      %v3391 = vunpack.c.l.b16 %v3004
      %v3392 = vunpack.c.h.b16 %v3004
      %v3393 = vunpack.c.l.b16 %v3005
      %v3394 = vunpack.c.h.b16 %v3005
      %v3395 = vunpack.c.l.b16 %v3006
      %v3396 = vpack.c.b16 %v3179, %v3172
      %v3397 = vpack.c.b16 %v3180, %v3173
      %v3398 = vpack.c.b16 %v3181, %v3174
      %v3399 = vpack.c.b16 %v3182, %v3175
      %v3400 = vpack.c.b16 %v3183, %v3176
      %v3401 = vpack.c.b16 %v3184, %v3177
      %v3402 = vpack.c.b16 %v3185, %v3178
      %v3403 = vpack.c.b16 %v3193, %v3186
      %v3404 = vpack.c.b16 %v3194, %v3187
      %v3405 = vpack.c.b16 %v3195, %v3188
      %v3406 = vpack.c.b16 %v3196, %v3189
      %v3407 = vpack.c.b16 %v3197, %v3190
      %v3408 = vpack.c.b16 %v3198, %v3191
      %v3409 = vpack.c.b16 %v3199, %v3192
      %v3410 = vpack.c.b16 %v3207, %v3200
      %v3411 = vpack.c.b16 %v3208, %v3201
      %v3412 = vpack.c.b16 %v3209, %v3202
      %v3413 = vpack.c.b16 %v3210, %v3203
      %v3414 = vpack.c.b16 %v3211, %v3204
      %v3415 = vpack.c.b16 %v3212, %v3205
      %v3416 = vpack.c.b16 %v3213, %v3206
      %v3417 = vpack.c.b16 %v3221, %v3214
      %v3418 = vpack.c.b16 %v3222, %v3215
      %v3419 = vpack.c.b16 %v3223, %v3216
      %v3420 = vpack.c.b16 %v3224, %v3217
      %v3421 = vpack.c.b16 %v3225, %v3218
      %v3422 = vpack.c.b16 %v3226, %v3219
      %v3423 = vpack.c.b16 %v3227, %v3220
      %v3424 = vpack.c.b16 %v3235, %v3228
      %v3425 = vpack.c.b16 %v3236, %v3229
      %v3426 = vpack.c.b16 %v3237, %v3230
      %v3427 = vpack.c.b16 %v3238, %v3231
      %v3428 = vpack.c.b16 %v3239, %v3232
      %v3429 = vpack.c.b16 %v3240, %v3233
      %v3430 = vpack.c.b16 %v3241, %v3234
      %v3431 = vpack.c.b16 %v3249, %v3242
      %v3432 = vpack.c.b16 %v3250, %v3243
      %v3433 = vpack.c.b16 %v3251, %v3244
      %v3434 = vpack.c.b16 %v3252, %v3245
      %v3435 = vpack.c.b16 %v3253, %v3246
      %v3436 = vpack.c.b16 %v3254, %v3247
      %v3437 = vpack.c.b16 %v3255, %v3248
      %v3438 = vpack.c.b16 %v3263, %v3256
      %v3439 = vpack.c.b16 %v3264, %v3257
      %v3440 = vpack.c.b16 %v3265, %v3258
      %v3441 = vpack.c.b16 %v3266, %v3259
      %v3442 = vpack.c.b16 %v3267, %v3260
      %v3443 = vpack.c.b16 %v3268, %v3261
      %v3444 = vpack.c.b16 %v3269, %v3262
      %v3445 = vpack.c.b16 %v3277, %v3270
      %v3446 = vpack.c.b16 %v3278, %v3271
      %v3447 = vpack.c.b16 %v3279, %v3272
      %v3448 = vpack.c.b16 %v3280, %v3273
      %v3449 = vpack.c.b16 %v3281, %v3274
      %v3450 = vpack.c.b16 %v3282, %v3275
      %v3451 = vpack.c.b16 %v3283, %v3276
      %v3452 = vpack.c.b16 %v3291, %v3284
      %v3453 = vpack.c.b16 %v3292, %v3285
      %v3454 = vpack.c.b16 %v3293, %v3286
      %v3455 = vpack.c.b16 %v3294, %v3287
      %v3456 = vpack.c.b16 %v3295, %v3288
      %v3457 = vpack.c.b16 %v3296, %v3289
      %v3458 = vpack.c.b16 %v3297, %v3290
      %v3459 = vpack.c.b16 %v3305, %v3298
      %v3460 = vpack.c.b16 %v3306, %v3299
      %v3461 = vpack.c.b16 %v3307, %v3300
      %v3462 = vpack.c.b16 %v3308, %v3301
      %v3463 = vpack.c.b16 %v3309, %v3302
      %v3464 = vpack.c.b16 %v3310, %v3303
      %v3465 = vpack.c.b16 %v3311, %v3304
      %v3466 = vpack.c.b16 %v3319, %v3312
      %v3467 = vpack.c.b16 %v3320, %v3313
      %v3468 = vpack.c.b16 %v3321, %v3314
      %v3469 = vpack.c.b16 %v3322, %v3315
      %v3470 = vpack.c.b16 %v3323, %v3316
      %v3471 = vpack.c.b16 %v3324, %v3317
      %v3472 = vpack.c.b16 %v3325, %v3318
      %v3473 = vpack.c.b16 %v3333, %v3326
      %v3474 = vpack.c.b16 %v3334, %v3327
      %v3475 = vpack.c.b16 %v3335, %v3328
      %v3476 = vpack.c.b16 %v3336, %v3329
      %v3477 = vpack.c.b16 %v3337, %v3330
      %v3478 = vpack.c.b16 %v3338, %v3331
      %v3479 = vpack.c.b16 %v3339, %v3332
      %v3480 = vpack.c.b16 %v3347, %v3340
      %v3481 = vpack.c.b16 %v3348, %v3341
      %v3482 = vpack.c.b16 %v3349, %v3342
      %v3483 = vpack.c.b16 %v3350, %v3343
      %v3484 = vpack.c.b16 %v3351, %v3344
      %v3485 = vpack.c.b16 %v3352, %v3345
      %v3486 = vpack.c.b16 %v3353, %v3346
      %v3487 = vpack.c.b16 %v3361, %v3354
      %v3488 = vpack.c.b16 %v3362, %v3355
      %v3489 = vpack.c.b16 %v3363, %v3356
      %v3490 = vpack.c.b16 %v3364, %v3357
      %v3491 = vpack.c.b16 %v3365, %v3358
      %v3492 = vpack.c.b16 %v3366, %v3359
      %v3493 = vpack.c.b16 %v3367, %v3360
      %v3494 = vpack.c.b16 %v3375, %v3368
      %v3495 = vpack.c.b16 %v3376, %v3369
      %v3496 = vpack.c.b16 %v3377, %v3370
      %v3497 = vpack.c.b16 %v3378, %v3371
      %v3498 = vpack.c.b16 %v3379, %v3372
      %v3499 = vpack.c.b16 %v3380, %v3373
      %v3500 = vpack.c.b16 %v3381, %v3374
      %v3501 = vpack.c.b16 %v3389, %v3382
      %v3502 = vpack.c.b16 %v3390, %v3383
      %v3503 = vpack.c.b16 %v3391, %v3384
      %v3504 = vpack.c.b16 %v3392, %v3385
      %v3505 = vpack.c.b16 %v3393, %v3386
      %v3506 = vpack.c.b16 %v3394, %v3387
      %v3507 = vpack.c.b16 %v3395, %v3388
      %3620 = vmatprep.subr.bf16.mxu0 %v3397
      %3621 = vmatpush1.bf16.msra.mxu0 %v3396
      %3622 = vmatprep.subr.bf16.mxu0 %v3404
      %3623 = vmatpush1.bf16.msra.mxu0 %v3403
      %3624 = vmatprep.subr.bf16.mxu0 %v3411
      %3625 = vmatpush1.bf16.msra.mxu0 %v3410
      %3626 = vmatprep.subr.bf16.mxu0 %v3418
      %3627 = vmatpush1.bf16.msra.mxu0 %v3417
      %3628 = vmatprep.subr.bf16.mxu0 %v3425
      %3629 = vmatpush1.bf16.msra.mxu0 %v3424
      %3630 = vmatprep.subr.bf16.mxu0 %v3432
      %3631 = vmatpush1.bf16.msra.mxu0 %v3431
      %3632 = vmatprep.subr.bf16.mxu0 %v3439
      %3633 = vmatpush1.bf16.msra.mxu0 %v3438
      %3634 = vmatprep.subr.bf16.mxu0 %v3446
      %3635 = vmatpush1.bf16.msra.mxu0 %v3445
      %3636 = vmatprep.subr.bf16.mxu0 %v3453
      %3637 = vmatpush1.bf16.msra.mxu0 %v3452
      %3638 = vmatprep.subr.bf16.mxu0 %v3460
      %3639 = vmatpush1.bf16.msra.mxu0 %v3459
      %3640 = vmatprep.subr.bf16.mxu0 %v3467
      %3641 = vmatpush1.bf16.msra.mxu0 %v3466
      %3642 = vmatprep.subr.bf16.mxu0 %v3474
      %3643 = vmatpush1.bf16.msra.mxu0 %v3473
      %3644 = vmatprep.subr.bf16.mxu0 %v3481
      %3645 = vmatpush1.bf16.msra.mxu0 %v3480
      %3646 = vmatprep.subr.bf16.mxu0 %v3488
      %3647 = vmatpush1.bf16.msra.mxu0 %v3487
      %3648 = vmatprep.subr.bf16.mxu0 %v3495
      %3649 = vmatpush1.bf16.msra.mxu0 %v3494
      %3650 = vmatprep.subr.bf16.mxu0 %v3502
      %3651 = vmatpush1.bf16.msra.mxu0 %v3501
      %3652 = vmatprep.mubr.bf16.mxu0 %v2864
      %3653 = vmatmul.mubr.bf16.gmra.mrb[0].mxu0 %v2863
      %v3654 = vpop.f32.mrb[0].mxu0
      %v3655 = vadd.f32 %v3012, %v3654
      %v3656 = vpop.f32.mrb[0].mxu0
      %v3657 = vadd.f32 %v3016, %v3656
      %v3658 = vpop.f32.mrb[0].mxu0
      %v3659 = vadd.f32 %v3012, %v3658
      %v3660 = vpop.f32.mrb[0].mxu0
      %v3661 = vadd.f32 %v3016, %v3660
      %3662 = vmatprep.mubr.bf16.mxu0 %v2866
      %3663 = vmatmul.mubr.bf16.gmra.mrb[0].mxu0 %v2865
      %v3664 = vpop.f32.mrb[0].mxu0
      %v3665 = vadd.f32 %v3012, %v3664
      %v3666 = vpop.f32.mrb[0].mxu0
      %v3667 = vadd.f32 %v3016, %v3666
      %v3668 = vpop.f32.mrb[0].mxu0
      %v3669 = vadd.f32 %v3012, %v3668
      %v3670 = vpop.f32.mrb[0].mxu0
      %v3671 = vadd.f32 %v3016, %v3670
      %3672 = vmatprep.mubr.bf16.mxu0 %v2868
      %3673 = vmatmul.mubr.bf16.gmra.mrb[0].mxu0 %v2867
      %v3674 = vpop.f32.mrb[0].mxu0
      %v3675 = vadd.f32 %v3012, %v3674
      %v3676 = vpop.f32.mrb[0].mxu0
      %v3677 = vadd.f32 %v3016, %v3676
      %v3678 = vpop.f32.mrb[0].mxu0
      %v3679 = vadd.f32 %v3012, %v3678
      %v3680 = vpop.f32.mrb[0].mxu0
      %v3681 = vadd.f32 %v3016, %v3680
      %3682 = vmatprep.mubr.bf16.mxu0 %v2870
      %3683 = vmatmul.mubr.bf16.gmra.mrb[0].mxu0 %v2869
      %v3684 = vpop.f32.mrb[0].mxu0
      %v3685 = vadd.f32 %v3012, %v3684
      %v3686 = vpop.f32.mrb[0].mxu0
      %v3687 = vadd.f32 %v3016, %v3686
      %v3688 = vpop.f32.mrb[0].mxu0
      %v3689 = vadd.f32 %v3012, %v3688
      %v3690 = vpop.f32.mrb[0].mxu0
      %v3691 = vadd.f32 %v3016, %v3690
      %3692 = vmatprep.mubr.bf16.mxu0 %v2872
      %3693 = vmatmul.mubr.bf16.gmra.mrb[0].mxu0 %v2871
      %v3694 = vpop.f32.mrb[0].mxu0
      %v3695 = vadd.f32 %v3012, %v3694
      %v3696 = vpop.f32.mrb[0].mxu0
      %v3697 = vadd.f32 %v3016, %v3696
      %v3698 = vpop.f32.mrb[0].mxu0
      %v3699 = vadd.f32 %v3012, %v3698
      %v3700 = vpop.f32.mrb[0].mxu0
      %v3701 = vadd.f32 %v3016, %v3700
      %3702 = vmatprep.mubr.bf16.mxu0 %v2874
      %3703 = vmatmul.mubr.bf16.gmra.mrb[0].mxu0 %v2873
      %v3704 = vpop.f32.mrb[0].mxu0
      %v3705 = vadd.f32 %v3012, %v3704
      %v3706 = vpop.f32.mrb[0].mxu0
      %v3707 = vadd.f32 %v3016, %v3706
      %v3708 = vpop.f32.mrb[0].mxu0
      %v3709 = vadd.f32 %v3012, %v3708
      %v3710 = vpop.f32.mrb[0].mxu0
      %v3711 = vadd.f32 %v3016, %v3710
      %3712 = vmatprep.mubr.bf16.mxu0 %v2876
      %3713 = vmatmul.mubr.bf16.gmra.mrb[0].mxu0 %v2875
      %v3714 = vpop.f32.mrb[0].mxu0
      %v3715 = vadd.f32 %v3012, %v3714
      %v3716 = vpop.f32.mrb[0].mxu0
      %v3717 = vadd.f32 %v3016, %v3716
      %v3718 = vpop.f32.mrb[0].mxu0
      %v3719 = vadd.f32 %v3012, %v3718
      %v3720 = vpop.f32.mrb[0].mxu0
      %v3721 = vadd.f32 %v3016, %v3720
      %3722 = vmatprep.mubr.bf16.mxu0 %v2878
      %3723 = vmatmul.mubr.bf16.gmra.mrb[0].mxu0 %v2877
      %v3724 = vpop.f32.mrb[0].mxu0
      %v3725 = vadd.f32 %v3012, %v3724
      %v3726 = vpop.f32.mrb[0].mxu0
      %v3727 = vadd.f32 %v3016, %v3726
      %v3728 = vpop.f32.mrb[0].mxu0
      %v3729 = vadd.f32 %v3012, %v3728
      %v3730 = vpop.f32.mrb[0].mxu0
      %v3731 = vadd.f32 %v3016, %v3730
      %3732 = vdwg.mxu0
      %3733 = vmatprep.subr.bf16.mxu0 %v3399
      %3734 = vmatpush1.bf16.msra.mxu0 %v3398
      %3735 = vmatprep.subr.bf16.mxu0 %v3406
      %3736 = vmatpush1.bf16.msra.mxu0 %v3405
      %3737 = vmatprep.subr.bf16.mxu0 %v3413
      %3738 = vmatpush1.bf16.msra.mxu0 %v3412
      %3739 = vmatprep.subr.bf16.mxu0 %v3420
      %3740 = vmatpush1.bf16.msra.mxu0 %v3419
      %3741 = vmatprep.subr.bf16.mxu0 %v3427
      %3742 = vmatpush1.bf16.msra.mxu0 %v3426
      %3743 = vmatprep.subr.bf16.mxu0 %v3434
      %3744 = vmatpush1.bf16.msra.mxu0 %v3433
      %3745 = vmatprep.subr.bf16.mxu0 %v3441
      %3746 = vmatpush1.bf16.msra.mxu0 %v3440
      %3747 = vmatprep.subr.bf16.mxu0 %v3448
      %3748 = vmatpush1.bf16.msra.mxu0 %v3447
      %3749 = vmatprep.subr.bf16.mxu0 %v3455
      %3750 = vmatpush1.bf16.msra.mxu0 %v3454
      %3751 = vmatprep.subr.bf16.mxu0 %v3462
      %3752 = vmatpush1.bf16.msra.mxu0 %v3461
      %3753 = vmatprep.subr.bf16.mxu0 %v3469
      %3754 = vmatpush1.bf16.msra.mxu0 %v3468
      %3755 = vmatprep.subr.bf16.mxu0 %v3476
      %3756 = vmatpush1.bf16.msra.mxu0 %v3475
      %3757 = vmatprep.subr.bf16.mxu0 %v3483
      %3758 = vmatpush1.bf16.msra.mxu0 %v3482
      %3759 = vmatprep.subr.bf16.mxu0 %v3490
      %3760 = vmatpush1.bf16.msra.mxu0 %v3489
      %3761 = vmatprep.subr.bf16.mxu0 %v3497
      %3762 = vmatpush1.bf16.msra.mxu0 %v3496
      %3763 = vmatprep.subr.bf16.mxu0 %v3504
      %3764 = vmatpush1.bf16.msra.mxu0 %v3503
      %3765 = vmatprep.mubr.bf16.mxu0 %v2864
      %3766 = vmatmul.mubr.bf16.gmra.mrb[0].mxu0 %v2863
      %v3767 = vpop.f32.mrb[0].mxu0
      %v3768 = vadd.f32 %v3020, %v3767
      %v3769 = vpop.f32.mrb[0].mxu0
      %v3770 = vadd.f32 %v3024, %v3769
      %v3771 = vpop.f32.mrb[0].mxu0
      %v3772 = vadd.f32 %v3020, %v3771
      %v3773 = vpop.f32.mrb[0].mxu0
      %v3774 = vadd.f32 %v3024, %v3773
      %3775 = vmatprep.mubr.bf16.mxu0 %v2866
      %3776 = vmatmul.mubr.bf16.gmra.mrb[0].mxu0 %v2865
      %v3777 = vpop.f32.mrb[0].mxu0
      %v3778 = vadd.f32 %v3020, %v3777
      %v3779 = vpop.f32.mrb[0].mxu0
      %v3780 = vadd.f32 %v3024, %v3779
      %v3781 = vpop.f32.mrb[0].mxu0
      %v3782 = vadd.f32 %v3020, %v3781
      %v3783 = vpop.f32.mrb[0].mxu0
      %v3784 = vadd.f32 %v3024, %v3783
      %3785 = vmatprep.mubr.bf16.mxu0 %v2868
      %3786 = vmatmul.mubr.bf16.gmra.mrb[0].mxu0 %v2867
      %v3787 = vpop.f32.mrb[0].mxu0
      %v3788 = vadd.f32 %v3020, %v3787
      %v3789 = vpop.f32.mrb[0].mxu0
      %v3790 = vadd.f32 %v3024, %v3789
      %v3791 = vpop.f32.mrb[0].mxu0
      %v3792 = vadd.f32 %v3020, %v3791
      %v3793 = vpop.f32.mrb[0].mxu0
      %v3794 = vadd.f32 %v3024, %v3793
      %3795 = vmatprep.mubr.bf16.mxu0 %v2870
      %3796 = vmatmul.mubr.bf16.gmra.mrb[0].mxu0 %v2869
      %v3797 = vpop.f32.mrb[0].mxu0
      %v3798 = vadd.f32 %v3020, %v3797
      %v3799 = vpop.f32.mrb[0].mxu0
      %v3800 = vadd.f32 %v3024, %v3799
      %v3801 = vpop.f32.mrb[0].mxu0
      %v3802 = vadd.f32 %v3020, %v3801
      %v3803 = vpop.f32.mrb[0].mxu0
      %v3804 = vadd.f32 %v3024, %v3803
      %3805 = vmatprep.mubr.bf16.mxu0 %v2872
      %3806 = vmatmul.mubr.bf16.gmra.mrb[0].mxu0 %v2871
      %v3807 = vpop.f32.mrb[0].mxu0
      %v3808 = vadd.f32 %v3020, %v3807
      %v3809 = vpop.f32.mrb[0].mxu0
      %v3810 = vadd.f32 %v3024, %v3809
      %v3811 = vpop.f32.mrb[0].mxu0
      %v3812 = vadd.f32 %v3020, %v3811
      %v3813 = vpop.f32.mrb[0].mxu0
      %v3814 = vadd.f32 %v3024, %v3813
      %3815 = vmatprep.mubr.bf16.mxu0 %v2874
      %3816 = vmatmul.mubr.bf16.gmra.mrb[0].mxu0 %v2873
      %v3817 = vpop.f32.mrb[0].mxu0
      %v3818 = vadd.f32 %v3020, %v3817
      %v3819 = vpop.f32.mrb[0].mxu0
      %v3820 = vadd.f32 %v3024, %v3819
      %v3821 = vpop.f32.mrb[0].mxu0
      %v3822 = vadd.f32 %v3020, %v3821
      %v3823 = vpop.f32.mrb[0].mxu0
      %v3824 = vadd.f32 %v3024, %v3823
      %3825 = vmatprep.mubr.bf16.mxu0 %v2876
      %3826 = vmatmul.mubr.bf16.gmra.mrb[0].mxu0 %v2875
      %v3827 = vpop.f32.mrb[0].mxu0
      %v3828 = vadd.f32 %v3020, %v3827
      %v3829 = vpop.f32.mrb[0].mxu0
      %v3830 = vadd.f32 %v3024, %v3829
      %v3831 = vpop.f32.mrb[0].mxu0
      %v3832 = vadd.f32 %v3020, %v3831
      %v3833 = vpop.f32.mrb[0].mxu0
      %v3834 = vadd.f32 %v3024, %v3833
      %3835 = vmatprep.mubr.bf16.mxu0 %v2878
      %3836 = vmatmul.mubr.bf16.gmra.mrb[0].mxu0 %v2877
      %v3837 = vpop.f32.mrb[0].mxu0
      %v3838 = vadd.f32 %v3020, %v3837
      %v3839 = vpop.f32.mrb[0].mxu0
      %v3840 = vadd.f32 %v3024, %v3839
      %v3841 = vpop.f32.mrb[0].mxu0
      %v3842 = vadd.f32 %v3020, %v3841
      %v3843 = vpop.f32.mrb[0].mxu0
      %v3844 = vadd.f32 %v3024, %v3843
      %3845 = vdwg.mxu0
      %3846 = vmatprep.subr.bf16.mxu0 %v3401
      %3847 = vmatpush1.bf16.msra.mxu0 %v3400
      %3848 = vmatprep.subr.bf16.mxu0 %v3408
      %3849 = vmatpush1.bf16.msra.mxu0 %v3407
      %3850 = vmatprep.subr.bf16.mxu0 %v3415
      %3851 = vmatpush1.bf16.msra.mxu0 %v3414
      %3852 = vmatprep.subr.bf16.mxu0 %v3422
      %3853 = vmatpush1.bf16.msra.mxu0 %v3421
      %3854 = vmatprep.subr.bf16.mxu0 %v3429
      %3855 = vmatpush1.bf16.msra.mxu0 %v3428
      %3856 = vmatprep.subr.bf16.mxu0 %v3436
      %3857 = vmatpush1.bf16.msra.mxu0 %v3435
      %3858 = vmatprep.subr.bf16.mxu0 %v3443
      %3859 = vmatpush1.bf16.msra.mxu0 %v3442
      %3860 = vmatprep.subr.bf16.mxu0 %v3450
      %3861 = vmatpush1.bf16.msra.mxu0 %v3449
      %3862 = vmatprep.subr.bf16.mxu0 %v3457
      %3863 = vmatpush1.bf16.msra.mxu0 %v3456
      %3864 = vmatprep.subr.bf16.mxu0 %v3464
      %3865 = vmatpush1.bf16.msra.mxu0 %v3463
      %3866 = vmatprep.subr.bf16.mxu0 %v3471
      %3867 = vmatpush1.bf16.msra.mxu0 %v3470
      %3868 = vmatprep.subr.bf16.mxu0 %v3478
      %3869 = vmatpush1.bf16.msra.mxu0 %v3477
      %3870 = vmatprep.subr.bf16.mxu0 %v3485
      %3871 = vmatpush1.bf16.msra.mxu0 %v3484
      %3872 = vmatprep.subr.bf16.mxu0 %v3492
      %3873 = vmatpush1.bf16.msra.mxu0 %v3491
      %3874 = vmatprep.subr.bf16.mxu0 %v3499
      %3875 = vmatpush1.bf16.msra.mxu0 %v3498
      %3876 = vmatprep.subr.bf16.mxu0 %v3506
      %3877 = vmatpush1.bf16.msra.mxu0 %v3505
      %3878 = vmatprep.mubr.bf16.mxu0 %v2864
      %3879 = vmatmul.mubr.bf16.gmra.mrb[0].mxu0 %v2863
      %v3880 = vpop.f32.mrb[0].mxu0
      %v3881 = vadd.f32 %v3028, %v3880
      %v3882 = vpop.f32.mrb[0].mxu0
      %v3883 = vadd.f32 %v3032, %v3882
      %v3884 = vpop.f32.mrb[0].mxu0
      %v3885 = vadd.f32 %v3028, %v3884
      %v3886 = vpop.f32.mrb[0].mxu0
      %v3887 = vadd.f32 %v3032, %v3886
      %3888 = vmatprep.mubr.bf16.mxu0 %v2866
      %3889 = vmatmul.mubr.bf16.gmra.mrb[0].mxu0 %v2865
      %v3890 = vpop.f32.mrb[0].mxu0
      %v3891 = vadd.f32 %v3028, %v3890
      %v3892 = vpop.f32.mrb[0].mxu0
      %v3893 = vadd.f32 %v3032, %v3892
      %v3894 = vpop.f32.mrb[0].mxu0
      %v3895 = vadd.f32 %v3028, %v3894
      %v3896 = vpop.f32.mrb[0].mxu0
      %v3897 = vadd.f32 %v3032, %v3896
      %3898 = vmatprep.mubr.bf16.mxu0 %v2868
      %3899 = vmatmul.mubr.bf16.gmra.mrb[0].mxu0 %v2867
      %v3900 = vpop.f32.mrb[0].mxu0
      %v3901 = vadd.f32 %v3028, %v3900
      %v3902 = vpop.f32.mrb[0].mxu0
      %v3903 = vadd.f32 %v3032, %v3902
      %v3904 = vpop.f32.mrb[0].mxu0
      %v3905 = vadd.f32 %v3028, %v3904
      %v3906 = vpop.f32.mrb[0].mxu0
      %v3907 = vadd.f32 %v3032, %v3906
      %3908 = vmatprep.mubr.bf16.mxu0 %v2870
      %3909 = vmatmul.mubr.bf16.gmra.mrb[0].mxu0 %v2869
      %v3910 = vpop.f32.mrb[0].mxu0
      %v3911 = vadd.f32 %v3028, %v3910
      %v3912 = vpop.f32.mrb[0].mxu0
      %v3913 = vadd.f32 %v3032, %v3912
      %v3914 = vpop.f32.mrb[0].mxu0
      %v3915 = vadd.f32 %v3028, %v3914
      %v3916 = vpop.f32.mrb[0].mxu0
      %v3917 = vadd.f32 %v3032, %v3916
      %3918 = vmatprep.mubr.bf16.mxu0 %v2872
      %3919 = vmatmul.mubr.bf16.gmra.mrb[0].mxu0 %v2871
      %v3920 = vpop.f32.mrb[0].mxu0
      %v3921 = vadd.f32 %v3028, %v3920
      %v3922 = vpop.f32.mrb[0].mxu0
      %v3923 = vadd.f32 %v3032, %v3922
      %v3924 = vpop.f32.mrb[0].mxu0
      %v3925 = vadd.f32 %v3028, %v3924
      %v3926 = vpop.f32.mrb[0].mxu0
      %v3927 = vadd.f32 %v3032, %v3926
      %3928 = vmatprep.mubr.bf16.mxu0 %v2874
      %3929 = vmatmul.mubr.bf16.gmra.mrb[0].mxu0 %v2873
      %v3930 = vpop.f32.mrb[0].mxu0
      %v3931 = vadd.f32 %v3028, %v3930
      %v3932 = vpop.f32.mrb[0].mxu0
      %v3933 = vadd.f32 %v3032, %v3932
      %v3934 = vpop.f32.mrb[0].mxu0
      %v3935 = vadd.f32 %v3028, %v3934
      %v3936 = vpop.f32.mrb[0].mxu0
      %v3937 = vadd.f32 %v3032, %v3936
      %3938 = vmatprep.mubr.bf16.mxu0 %v2876
      %3939 = vmatmul.mubr.bf16.gmra.mrb[0].mxu0 %v2875
      %v3940 = vpop.f32.mrb[0].mxu0
      %v3941 = vadd.f32 %v3028, %v3940
      %v3942 = vpop.f32.mrb[0].mxu0
      %v3943 = vadd.f32 %v3032, %v3942
      %v3944 = vpop.f32.mrb[0].mxu0
      %v3945 = vadd.f32 %v3028, %v3944
      %v3946 = vpop.f32.mrb[0].mxu0
      %v3947 = vadd.f32 %v3032, %v3946
      %3948 = vmatprep.mubr.bf16.mxu0 %v2878
      %3949 = vmatmul.mubr.bf16.gmra.mrb[0].mxu0 %v2877
      %v3950 = vpop.f32.mrb[0].mxu0
      %v3951 = vadd.f32 %v3028, %v3950
      %v3952 = vpop.f32.mrb[0].mxu0
      %v3953 = vadd.f32 %v3032, %v3952
      %v3954 = vpop.f32.mrb[0].mxu0
      %v3955 = vadd.f32 %v3028, %v3954
      %v3956 = vpop.f32.mrb[0].mxu0
      %v3957 = vadd.f32 %v3032, %v3956
      %3958 = vdwg.mxu0
      %3959 = vmatprep.subr.bf16.mxu0 0
      %3960 = vmatpush1.bf16.msra.mxu0 %v3402
      %3961 = vmatprep.subr.bf16.mxu0 0
      %3962 = vmatpush1.bf16.msra.mxu0 %v3409
      %3963 = vmatprep.subr.bf16.mxu0 0
      %3964 = vmatpush1.bf16.msra.mxu0 %v3416
      %3965 = vmatprep.subr.bf16.mxu0 0
      %3966 = vmatpush1.bf16.msra.mxu0 %v3423
      %3967 = vmatprep.subr.bf16.mxu0 0
      %3968 = vmatpush1.bf16.msra.mxu0 %v3430
      %3969 = vmatprep.subr.bf16.mxu0 0
      %3970 = vmatpush1.bf16.msra.mxu0 %v3437
      %3971 = vmatprep.subr.bf16.mxu0 0
      %3972 = vmatpush1.bf16.msra.mxu0 %v3444
      %3973 = vmatprep.subr.bf16.mxu0 0
      %3974 = vmatpush1.bf16.msra.mxu0 %v3451
      %3975 = vmatprep.subr.bf16.mxu0 0
      %3976 = vmatpush1.bf16.msra.mxu0 %v3458
      %3977 = vmatprep.subr.bf16.mxu0 0
      %3978 = vmatpush1.bf16.msra.mxu0 %v3465
      %3979 = vmatprep.subr.bf16.mxu0 0
      %3980 = vmatpush1.bf16.msra.mxu0 %v3472
      %3981 = vmatprep.subr.bf16.mxu0 0
      %3982 = vmatpush1.bf16.msra.mxu0 %v3479
      %3983 = vmatprep.subr.bf16.mxu0 0
      %3984 = vmatpush1.bf16.msra.mxu0 %v3486
      %3985 = vmatprep.subr.bf16.mxu0 0
      %3986 = vmatpush1.bf16.msra.mxu0 %v3493
      %3987 = vmatprep.subr.bf16.mxu0 0
      %3988 = vmatpush1.bf16.msra.mxu0 %v3500
      %3989 = vmatprep.subr.bf16.mxu0 0
      %3990 = vmatpush1.bf16.msra.mxu0 %v3507
      %3991 = vmatprep.mubr.bf16.mxu0 %v2864
      %3992 = vmatmul.mubr.bf16.gmra.mrb[0].mxu0 %v2863
      %v3993 = vpop.f32.mrb[0].mxu0
      %v3994 = vadd.f32 %v3036, %v3993
      %v3995 = vpop.f32.mrb[0].mxu0
      %v3996 = vpop.f32.mrb[0].mxu0
      %v3997 = vadd.f32 %v3036, %v3996
      %v3998 = vpop.f32.mrb[0].mxu0
      %3999 = vmatprep.mubr.bf16.mxu0 %v2866
      %4000 = vmatmul.mubr.bf16.gmra.mrb[0].mxu0 %v2865
      %v4001 = vpop.f32.mrb[0].mxu0
      %v4002 = vadd.f32 %v3036, %v4001
      %v4003 = vpop.f32.mrb[0].mxu0
      %v4004 = vpop.f32.mrb[0].mxu0
      %v4005 = vadd.f32 %v3036, %v4004
      %v4006 = vpop.f32.mrb[0].mxu0
      %4007 = vmatprep.mubr.bf16.mxu0 %v2868
      %4008 = vmatmul.mubr.bf16.gmra.mrb[0].mxu0 %v2867
      %v4009 = vpop.f32.mrb[0].mxu0
      %v4010 = vadd.f32 %v3036, %v4009
      %v4011 = vpop.f32.mrb[0].mxu0
      %v4012 = vpop.f32.mrb[0].mxu0
      %v4013 = vadd.f32 %v3036, %v4012
      %v4014 = vpop.f32.mrb[0].mxu0
      %4015 = vmatprep.mubr.bf16.mxu0 %v2870
      %4016 = vmatmul.mubr.bf16.gmra.mrb[0].mxu0 %v2869
      %v4017 = vpop.f32.mrb[0].mxu0
      %v4018 = vadd.f32 %v3036, %v4017
      %v4019 = vpop.f32.mrb[0].mxu0
      %v4020 = vpop.f32.mrb[0].mxu0
      %v4021 = vadd.f32 %v3036, %v4020
      %v4022 = vpop.f32.mrb[0].mxu0
      %4023 = vmatprep.mubr.bf16.mxu0 %v2872
      %4024 = vmatmul.mubr.bf16.gmra.mrb[0].mxu0 %v2871
      %v4025 = vpop.f32.mrb[0].mxu0
      %v4026 = vadd.f32 %v3036, %v4025
      %v4027 = vpop.f32.mrb[0].mxu0
      %v4028 = vpop.f32.mrb[0].mxu0
      %v4029 = vadd.f32 %v3036, %v4028
      %v4030 = vpop.f32.mrb[0].mxu0
      %4031 = vmatprep.mubr.bf16.mxu0 %v2874
      %4032 = vmatmul.mubr.bf16.gmra.mrb[0].mxu0 %v2873
      %v4033 = vpop.f32.mrb[0].mxu0
      %v4034 = vadd.f32 %v3036, %v4033
      %v4035 = vpop.f32.mrb[0].mxu0
      %v4036 = vpop.f32.mrb[0].mxu0
      %v4037 = vadd.f32 %v3036, %v4036
      %v4038 = vpop.f32.mrb[0].mxu0
      %4039 = vmatprep.mubr.bf16.mxu0 %v2876
      %4040 = vmatmul.mubr.bf16.gmra.mrb[0].mxu0 %v2875
      %v4041 = vpop.f32.mrb[0].mxu0
      %v4042 = vadd.f32 %v3036, %v4041
      %v4043 = vpop.f32.mrb[0].mxu0
      %v4044 = vpop.f32.mrb[0].mxu0
      %v4045 = vadd.f32 %v3036, %v4044
      %v4046 = vpop.f32.mrb[0].mxu0
      %4047 = vmatprep.mubr.bf16.mxu0 %v2878
      %4048 = vmatmul.mubr.bf16.gmra.mrb[0].mxu0 %v2877
      %v4049 = vpop.f32.mrb[0].mxu0
      %v4050 = vadd.f32 %v3036, %v4049
      %v4051 = vpop.f32.mrb[0].mxu0
      %v4052 = vpop.f32.mrb[0].mxu0
      %v4053 = vadd.f32 %v3036, %v4052
      %v4054 = vpop.f32.mrb[0].mxu0
      %4055 = vdwg.mxu0
      %v4056 = vtanh.pop %v3655
      %v4057 = vtanh.pop %v3657
      %v4058 = vtanh.pop %v3768
      %v4059 = vtanh.pop %v3770
      %v4060 = vtanh.pop %v3881
      %v4061 = vtanh.pop %v3883
      %v4062 = vtanh.pop %v3994
      %v4063 = vtanh.pop %v3659
      %v4064 = vtanh.pop %v3661
      %v4065 = vtanh.pop %v3772
      %v4066 = vtanh.pop %v3774
      %v4067 = vtanh.pop %v3885
      %v4068 = vtanh.pop %v3887
      %v4069 = vtanh.pop %v3997
      %v4070 = vtanh.pop %v3665
      %v4071 = vtanh.pop %v3667
      %v4072 = vtanh.pop %v3778
      %v4073 = vtanh.pop %v3780
      %v4074 = vtanh.pop %v3891
      %v4075 = vtanh.pop %v3893
      %v4076 = vtanh.pop %v4002
      %v4077 = vtanh.pop %v3669
      %v4078 = vtanh.pop %v3671
      %v4079 = vtanh.pop %v3782
      %v4080 = vtanh.pop %v3784
      %v4081 = vtanh.pop %v3895
      %v4082 = vtanh.pop %v3897
      %v4083 = vtanh.pop %v4005
      %v4084 = vtanh.pop %v3675
      %v4085 = vtanh.pop %v3677
      %v4086 = vtanh.pop %v3788
      %v4087 = vtanh.pop %v3790
      %v4088 = vtanh.pop %v3901
      %v4089 = vtanh.pop %v3903
      %v4090 = vtanh.pop %v4010
      %v4091 = vtanh.pop %v3679
      %v4092 = vtanh.pop %v3681
      %v4093 = vtanh.pop %v3792
      %v4094 = vtanh.pop %v3794
      %v4095 = vtanh.pop %v3905
      %v4096 = vtanh.pop %v3907
      %v4097 = vtanh.pop %v4013
      %v4098 = vtanh.pop %v3685
      %v4099 = vtanh.pop %v3687
      %v4100 = vtanh.pop %v3798
      %v4101 = vtanh.pop %v3800
      %v4102 = vtanh.pop %v3911
      %v4103 = vtanh.pop %v3913
      %v4104 = vtanh.pop %v4018
      %v4105 = vtanh.pop %v3689
      %v4106 = vtanh.pop %v3691
      %v4107 = vtanh.pop %v3802
      %v4108 = vtanh.pop %v3804
      %v4109 = vtanh.pop %v3915
      %v4110 = vtanh.pop %v3917
      %v4111 = vtanh.pop %v4021
      %v4112 = vtanh.pop %v3695
      %v4113 = vtanh.pop %v3697
      %v4114 = vtanh.pop %v3808
      %v4115 = vtanh.pop %v3810
      %v4116 = vtanh.pop %v3921
      %v4117 = vtanh.pop %v3923
      %v4118 = vtanh.pop %v4026
      %v4119 = vtanh.pop %v3699
      %v4120 = vtanh.pop %v3701
      %v4121 = vtanh.pop %v3812
      %v4122 = vtanh.pop %v3814
      %v4123 = vtanh.pop %v3925
      %v4124 = vtanh.pop %v3927
      %v4125 = vtanh.pop %v4029
      %v4126 = vtanh.pop %v3705
      %v4127 = vtanh.pop %v3707
      %v4128 = vtanh.pop %v3818
      %v4129 = vtanh.pop %v3820
      %v4130 = vtanh.pop %v3931
      %v4131 = vtanh.pop %v3933
      %v4132 = vtanh.pop %v4034
      %v4133 = vtanh.pop %v3709
      %v4134 = vtanh.pop %v3711
      %v4135 = vtanh.pop %v3822
      %v4136 = vtanh.pop %v3824
      %v4137 = vtanh.pop %v3935
      %v4138 = vtanh.pop %v3937
      %v4139 = vtanh.pop %v4037
      %v4140 = vtanh.pop %v3715
      %v4141 = vtanh.pop %v3717
      %v4142 = vtanh.pop %v3828
      %v4143 = vtanh.pop %v3830
      %v4144 = vtanh.pop %v3941
      %v4145 = vtanh.pop %v3943
      %v4146 = vtanh.pop %v4042
      %v4147 = vtanh.pop %v3719
      %v4148 = vtanh.pop %v3721
      %v4149 = vtanh.pop %v3832
      %v4150 = vtanh.pop %v3834
      %v4151 = vtanh.pop %v3945
      %v4152 = vtanh.pop %v3947
      %v4153 = vtanh.pop %v4045
      %v4154 = vtanh.pop %v3725
      %v4155 = vtanh.pop %v3727
      %v4156 = vtanh.pop %v3838
      %v4157 = vtanh.pop %v3840
      %v4158 = vtanh.pop %v3951
      %v4159 = vtanh.pop %v3953
      %v4160 = vtanh.pop %v4050
      %v4161 = vtanh.pop %v3729
      %v4162 = vtanh.pop %v3731
      %v4163 = vtanh.pop %v3842
      %v4164 = vtanh.pop %v3844
      %v4165 = vtanh.pop %v3955
      %v4166 = vtanh.pop %v3957
      %v4167 = vtanh.pop %v4053
      %4168 = vst [vmem:[%s531] sm:$0xff] %v4056
      %4169 = vst [vmem:[%s531 + $0x8] sm:$0xff] %v4057
      %4170 = vst [vmem:[%s531 + $0x10] sm:$0xff] %v4058
      %4171 = vst [vmem:[%s531 + $0x18] sm:$0xff] %v4059
      %4172 = vst [vmem:[%s531 + $0x20] sm:$0xff] %v4060
      %4173 = vst [vmem:[%s531 + $0x28] sm:$0xff] %v4061
      %4174 = vst.msk [vmem:[%s531 + $0x30] sm:$0xff] %vm1308, %v4062
      %4175 = vst [vmem:[%s531 + $0x38] sm:$0xff] %v4063
      %4176 = vst [vmem:[%s531 + $0x40] sm:$0xff] %v4064
      %4177 = vst [vmem:[%s531 + $0x48] sm:$0xff] %v4065
      %4178 = vst [vmem:[%s531 + $0x50] sm:$0xff] %v4066
      %4179 = vst [vmem:[%s531 + $0x58] sm:$0xff] %v4067
      %4180 = vst [vmem:[%s531 + $0x60] sm:$0xff] %v4068
      %4181 = vst.msk [vmem:[%s531 + $0x68] sm:$0xff] %vm1308, %v4069
      %4182 = vst [vmem:[%s531 + $0x70] sm:$0xff] %v4070
      %4183 = vst [vmem:[%s531 + $0x78] sm:$0xff] %v4071
      %4184 = vst [vmem:[%s531 + $0x80] sm:$0xff] %v4072
      %4185 = vst [vmem:[%s531 + $0x88] sm:$0xff] %v4073
      %4186 = vst [vmem:[%s531 + $0x90] sm:$0xff] %v4074
      %4187 = vst [vmem:[%s531 + $0x98] sm:$0xff] %v4075
      %4188 = vst.msk [vmem:[%s531 + $0xa0] sm:$0xff] %vm1308, %v4076
      %4189 = vst [vmem:[%s531 + $0xa8] sm:$0xff] %v4077
      %4190 = vst [vmem:[%s531 + $0xb0] sm:$0xff] %v4078
      %4191 = vst [vmem:[%s531 + $0xb8] sm:$0xff] %v4079
      %4192 = vst [vmem:[%s531 + $0xc0] sm:$0xff] %v4080
      %4193 = vst [vmem:[%s531 + $0xc8] sm:$0xff] %v4081
      %4194 = vst [vmem:[%s531 + $0xd0] sm:$0xff] %v4082
      %4195 = vst.msk [vmem:[%s531 + $0xd8] sm:$0xff] %vm1308, %v4083
      %4196 = vst [vmem:[%s531 + $0xe0] sm:$0xff] %v4084
      %4197 = vst [vmem:[%s531 + $0xe8] sm:$0xff] %v4085
      %4198 = vst [vmem:[%s531 + $0xf0] sm:$0xff] %v4086
      %4199 = vst [vmem:[%s531 + $0xf8] sm:$0xff] %v4087
      %4200 = vst [vmem:[%s531 + $0x100] sm:$0xff] %v4088
      %4201 = vst [vmem:[%s531 + $0x108] sm:$0xff] %v4089
      %4202 = vst.msk [vmem:[%s531 + $0x110] sm:$0xff] %vm1308, %v4090
      %4203 = vst [vmem:[%s531 + $0x118] sm:$0xff] %v4091
      %4204 = vst [vmem:[%s531 + $0x120] sm:$0xff] %v4092
      %4205 = vst [vmem:[%s531 + $0x128] sm:$0xff] %v4093
      %4206 = vst [vmem:[%s531 + $0x130] sm:$0xff] %v4094
      %4207 = vst [vmem:[%s531 + $0x138] sm:$0xff] %v4095
      %4208 = vst [vmem:[%s531 + $0x140] sm:$0xff] %v4096
      %4209 = vst.msk [vmem:[%s531 + $0x148] sm:$0xff] %vm1308, %v4097
      %4210 = vst [vmem:[%s531 + $0x150] sm:$0xff] %v4098
      %4211 = vst [vmem:[%s531 + $0x158] sm:$0xff] %v4099
      %4212 = vst [vmem:[%s531 + $0x160] sm:$0xff] %v4100
      %4213 = vst [vmem:[%s531 + $0x168] sm:$0xff] %v4101
      %4214 = vst [vmem:[%s531 + $0x170] sm:$0xff] %v4102
      %4215 = vst [vmem:[%s531 + $0x178] sm:$0xff] %v4103
      %4216 = vst.msk [vmem:[%s531 + $0x180] sm:$0xff] %vm1308, %v4104
      %4217 = vst [vmem:[%s531 + $0x188] sm:$0xff] %v4105
      %4218 = vst [vmem:[%s531 + $0x190] sm:$0xff] %v4106
      %4219 = vst [vmem:[%s531 + $0x198] sm:$0xff] %v4107
      %4220 = vst [vmem:[%s531 + $0x1a0] sm:$0xff] %v4108
      %4221 = vst [vmem:[%s531 + $0x1a8] sm:$0xff] %v4109
      %4222 = vst [vmem:[%s531 + $0x1b0] sm:$0xff] %v4110
      %4223 = vst.msk [vmem:[%s531 + $0x1b8] sm:$0xff] %vm1308, %v4111
      %4224 = vst [vmem:[%s531 + $0x1c0] sm:$0xff] %v4112
      %4225 = vst [vmem:[%s531 + $0x1c8] sm:$0xff] %v4113
      %4226 = vst [vmem:[%s531 + $0x1d0] sm:$0xff] %v4114
      %4227 = vst [vmem:[%s531 + $0x1d8] sm:$0xff] %v4115
      %4228 = vst [vmem:[%s531 + $0x1e0] sm:$0xff] %v4116
      %4229 = vst [vmem:[%s531 + $0x1e8] sm:$0xff] %v4117
      %4230 = vst.msk [vmem:[%s531 + $0x1f0] sm:$0xff] %vm1308, %v4118
      %4231 = vst [vmem:[%s531 + $0x1f8] sm:$0xff] %v4119
      %4232 = vst [vmem:[%s531 + $0x200] sm:$0xff] %v4120
      %4233 = vst [vmem:[%s531 + $0x208] sm:$0xff] %v4121
      %4234 = vst [vmem:[%s531 + $0x210] sm:$0xff] %v4122
      %4235 = vst [vmem:[%s531 + $0x218] sm:$0xff] %v4123
      %4236 = vst [vmem:[%s531 + $0x220] sm:$0xff] %v4124
      %4237 = vst.msk [vmem:[%s531 + $0x228] sm:$0xff] %vm1308, %v4125
      %4238 = vst [vmem:[%s531 + $0x230] sm:$0xff] %v4126
      %4239 = vst [vmem:[%s531 + $0x238] sm:$0xff] %v4127
      %4240 = vst [vmem:[%s531 + $0x240] sm:$0xff] %v4128
      %4241 = vst [vmem:[%s531 + $0x248] sm:$0xff] %v4129
      %4242 = vst [vmem:[%s531 + $0x250] sm:$0xff] %v4130
      %4243 = vst [vmem:[%s531 + $0x258] sm:$0xff] %v4131
      %4244 = vst.msk [vmem:[%s531 + $0x260] sm:$0xff] %vm1308, %v4132
      %4245 = vst [vmem:[%s531 + $0x268] sm:$0xff] %v4133
      %4246 = vst [vmem:[%s531 + $0x270] sm:$0xff] %v4134
      %4247 = vst [vmem:[%s531 + $0x278] sm:$0xff] %v4135
      %4248 = vst [vmem:[%s531 + $0x280] sm:$0xff] %v4136
      %4249 = vst [vmem:[%s531 + $0x288] sm:$0xff] %v4137
      %4250 = vst [vmem:[%s531 + $0x290] sm:$0xff] %v4138
      %4251 = vst.msk [vmem:[%s531 + $0x298] sm:$0xff] %vm1308, %v4139
      %4252 = vst [vmem:[%s531 + $0x2a0] sm:$0xff] %v4140
      %4253 = vst [vmem:[%s531 + $0x2a8] sm:$0xff] %v4141
      %4254 = vst [vmem:[%s531 + $0x2b0] sm:$0xff] %v4142
      %4255 = vst [vmem:[%s531 + $0x2b8] sm:$0xff] %v4143
      %4256 = vst [vmem:[%s531 + $0x2c0] sm:$0xff] %v4144
      %4257 = vst [vmem:[%s531 + $0x2c8] sm:$0xff] %v4145
      %4258 = vst.msk [vmem:[%s531 + $0x2d0] sm:$0xff] %vm1308, %v4146
      %4259 = vst [vmem:[%s531 + $0x2d8] sm:$0xff] %v4147
      %4260 = vst [vmem:[%s531 + $0x2e0] sm:$0xff] %v4148
      %4261 = vst [vmem:[%s531 + $0x2e8] sm:$0xff] %v4149
      %4262 = vst [vmem:[%s531 + $0x2f0] sm:$0xff] %v4150
      %4263 = vst [vmem:[%s531 + $0x2f8] sm:$0xff] %v4151
      %4264 = vst [vmem:[%s531 + $0x300] sm:$0xff] %v4152
      %4265 = vst.msk [vmem:[%s531 + $0x308] sm:$0xff] %vm1308, %v4153
      %4266 = vst [vmem:[%s531 + $0x310] sm:$0xff] %v4154
      %4267 = vst [vmem:[%s531 + $0x318] sm:$0xff] %v4155
      %4268 = vst [vmem:[%s531 + $0x320] sm:$0xff] %v4156
      %4269 = vst [vmem:[%s531 + $0x328] sm:$0xff] %v4157
      %4270 = vst [vmem:[%s531 + $0x330] sm:$0xff] %v4158
      %4271 = vst [vmem:[%s531 + $0x338] sm:$0xff] %v4159
      %4272 = vst.msk [vmem:[%s531 + $0x340] sm:$0xff] %vm1308, %v4160
      %4273 = vst [vmem:[%s531 + $0x348] sm:$0xff] %v4161
      %4274 = vst [vmem:[%s531 + $0x350] sm:$0xff] %v4162
      %4275 = vst [vmem:[%s531 + $0x358] sm:$0xff] %v4163
      %4276 = vst [vmem:[%s531 + $0x360] sm:$0xff] %v4164
      %4277 = vst [vmem:[%s531 + $0x368] sm:$0xff] %v4165
      %4278 = vst [vmem:[%s531 + $0x370] sm:$0xff] %v4166
      %4279 = vst.msk [vmem:[%s531 + $0x378] sm:$0xff] %vm1308, %v4167
      %s4280 = smul.u32 16, %s27
      %p4281 = scmp.lt.s32.totalorder %s4280, 31
      %s4282 = scalar_select %p4281, %s4280, 31
      %s4283 = smul.addr %s4282, 7
      %s4284 = smul.addr %s4283, 8
      %s4285 = scalar_lea.vmem %s14, %s4284
      %s4286 = smul.u32 16, %s27
      %p4287 = scmp.lt.s32.totalorder %s4286, 31
      %s4288 = scalar_select %p4287, %s4286, 31
      %s4289 = smul.addr %s4288, 8
      %s4290 = scalar_lea.vmem %s15, %s4289
      // Predicated region
      $region77: #{vae_forward.1} parent=75 // pred_check
        %p4291 = pneg %p349
      $region78: #{vae_forward.1} parent=75 // pred_check_branch
        %4293 = sbr.rel (%p4291) target = $region80
      $region79: #{vae_forward.1} parent=75 // pred_region
        %s4294 = smul.u32 16, %s27
      $region80: #{vae_forward.1} parent=75 // pred_fallthru
        _
      // Predicated region
      $region81: #{vae_forward.1} parent=75 // pred_check
        %p4295 = pneg %p375
      $region82: #{vae_forward.1} parent=75 // pred_check_branch
        %4297 = sbr.rel (%p4295) target = $region84
      $region83: #{vae_forward.1} parent=75 // pred_region
        %s4298 = smul.u32 16, %s27
      $region84: #{vae_forward.1} parent=75 // pred_fallthru
        _
    $region76: #{vae_forward.1} parent=5 // pred_fallthru
      _
    %p4299 = scmp.le.s32.totalorder 2, %s22
    // Predicated region
    $region85: #{vae_forward.1} parent=5 // pred_check
      %p4300 = pneg %p4299
    $region86: #{vae_forward.1} parent=5 // pred_check_branch
      %4302 = sbr.rel (%p4300) target = $region88
    $region87: #{vae_forward.1} parent=5 // pred_region
      %s4303 = ssub.s32 %s22, 2
      // Predicated region
      $region89: #{vae_forward.1} parent=87 // pred_check
        %p4304 = pneg %p355
      $region90: #{vae_forward.1} parent=87 // pred_check_branch
        %4306 = sbr.rel (%p4304) target = $region92
      $region91: #{vae_forward.1} parent=87 // pred_region
        %s4307 = smul.u32 16, %s28
        %p4308 = scmp.lt.s32.totalorder %s4307, 31
        %s4309 = scalar_select %p4308, %s4307, 31
        %s4310 = smul.addr %s4309, 7
        %s4311 = smul.addr %s4310, 8
        %s4312 = scalar_lea.vmem %s14, %s4311
      $region92: #{vae_forward.1} parent=87 // pred_fallthru
        _
      // Predicated region
      $region93: #{vae_forward.1} parent=87 // pred_check
        %p4313 = pneg %p381
      $region94: #{vae_forward.1} parent=87 // pred_check_branch
        %4315 = sbr.rel (%p4313) target = $region96
      $region95: #{vae_forward.1} parent=87 // pred_region
        %s4316 = smul.u32 16, %s28
        %p4317 = scmp.lt.s32.totalorder %s4316, 31
        %s4318 = scalar_select %p4317, %s4316, 31
        %s4319 = smul.addr %s4318, 8
        %s4320 = scalar_lea.vmem %s15, %s4319
      $region96: #{vae_forward.1} parent=87 // pred_fallthru
        _
    $region88: #{vae_forward.1} parent=5 // pred_fallthru
      _
  $region6: #{vae_forward.1} parent=0 // loop_footer
    %s26 = sadd.s32 1, %s22
  $region7: #{vae_forward.1} parent=0 // loop_footer_branch
    %21 = sbr.rel target = $region3
  $region8: #{vae_forward.1} parent=0 // loop_exit
    _

</llo_original>
